<compile_context>
chip_gen: v5e
topology: v5e:2x2
jax: 0.10.0
libtpu: 0.0.40
codegen_flags: <defaults>
</compile_context>

<pallas_src>
import math
from functools import partial

import jax
import jax.numpy as jnp
from jax.experimental import pallas as pl
from jax.experimental.pallas import tpu as pltpu


CFG = dict(
    batch=2,
    in_channels=3,
    img_size=16,
    patches=4,               # -> 4x4 grid -> seq_len = 17 (padded to 24)
    resnet_out_channels=8,
    emb=32,
    heads=4,
    depth=2,
    n_classes=2,
    mlp_expansion=4,
)


# ----------------------------------------------------------------------------
# In-kernel helpers
# ----------------------------------------------------------------------------
def _erf(x):
    # Abramowitz & Stegun 7.1.26 polynomial erf (max abs err ~1.5e-7).
    a1, a2, a3, a4, a5 = 0.254829592, -0.284496736, 1.421413741, -1.453152027, 1.061405429
    p = 0.3275911
    ax = jnp.abs(x)
    t = 1.0 / (1.0 + p * ax)
    poly = ((((a5 * t + a4) * t + a3) * t + a2) * t + a1) * t
    r = 1.0 - poly * jnp.exp(-ax * ax)          # exp -> EUP
    return jnp.where(x >= 0, r, -r)


def _gelu(x):
    return 0.5 * x * (1.0 + _erf(x * 0.7071067811865476))


def _ln_custom(x, g, b, eps):
    # Reference custom LayerNorm: unbiased std, eps added OUTSIDE the sqrt.
    d = x.shape[-1]
    mean = jnp.mean(x, axis=-1, keepdims=True)
    diff = x - mean
    var = jnp.sum(diff * diff, axis=-1, keepdims=True) * (1.0 / (d - 1))
    inv = pl.reciprocal(jnp.sqrt(var) + eps, approx=True)   # EUP
    return g * diff * inv + b


def _ln_torch(x, g, b, eps):
    # nn.LayerNorm: biased variance, eps inside the sqrt.
    mean = jnp.mean(x, axis=-1, keepdims=True)
    diff = x - mean
    var = jnp.mean(diff * diff, axis=-1, keepdims=True)
    return diff * jax.lax.rsqrt(var + eps) * g + b


# ----------------------------------------------------------------------------
# Fused ViT kernel: one grid step == one batch element, everything in VMEM.
# ----------------------------------------------------------------------------
def _vit_fused_kernel(
    xp_ref, cnn_w_ref, cnn_b_ref, proj_w_ref, proj_b_ref,
    cls_ref, pos_ref,
    ln1_g_ref, ln1_b_ref, wqkv_ref, bqkv_ref, wo_ref, bo_ref,
    ln2_g_ref, ln2_b_ref, w1_ref, b1_ref, w2_ref, b2_ref,
    clsn_g_ref, clsn_b_ref, head_w_ref, head_b_ref,
    out_ref,
    scr,                                   # VMEM scratch (S_pad, D)
    *, S, S_pad, NP, D, H, depth,
):
    f32 = jnp.float32
    dh = D // H
    scale = 1.0 / math.sqrt(dh)

    # ---- CNN stem: Conv2d(k=P, stride=P) as matmul over flattened patches --
    feat = jnp.dot(xp_ref[...], cnn_w_ref[...], preferred_element_type=f32)
    feat = jnp.maximum(feat + cnn_b_ref[...], 0.0)                 # (NP, Cr)

    # ---- PatchEmbedding: 1x1-conv projection --------------------------------
    tok = jnp.dot(feat, proj_w_ref[...], preferred_element_type=f32) + proj_b_ref[...]

    # ---- Assemble [cls | patch tokens | zero pad] + positional embedding ----
    pos = pos_ref[...]                                             # (S_pad, D), padded rows are 0
    scr[...] = jnp.zeros_like(scr)
    scr[pl.ds(0, 1), :] = cls_ref[...] + pos[0:1, :]
    scr[pl.ds(1, NP), :] = tok + pos[1:S, :]
    h = scr[...]                                                   # (S_pad, D)

    # Additive bias masking the padded keys (columns >= S).
    col = jax.lax.broadcasted_iota(jnp.int32, (1, S_pad), 1)
    key_bias = jnp.where(col < S, 0.0, -1e30).astype(f32)

    ln1_g, ln1_b = ln1_g_ref[...], ln1_b_ref[...]
    ln2_g, ln2_b = ln2_g_ref[...], ln2_b_ref[...]
    wqkv, bqkv = wqkv_ref[...], bqkv_ref[...]
    wo, bo = wo_ref[...], bo_ref[...]
    w1, b1 = w1_ref[...], b1_ref[...]
    w2, b2 = w2_ref[...], b2_ref[...]

    # clones() deep-copies one initialised EncoderLayer -> all layers share
    # the same weights; the (small, static) depth loop is unrolled.
    for _ in range(depth):
        # --- sublayer 0: x + MHA(LayerNorm_custom(x)) -------------------------
        nrm = _ln_custom(h, ln1_g, ln1_b, 1e-6)
        qkv = jnp.dot(nrm, wqkv, preferred_element_type=f32) + bqkv   # (S_pad, 3D)

        # All heads processed inside the kernel; ctx @ Wo is decomposed per
        # head (sum_h ctx_h @ Wo[h*dh:(h+1)*dh, :]) so no re-concat is needed.
        attn_out = jnp.zeros((S_pad, D), f32)
        for hd in range(H):
            c0 = hd * dh
            q = qkv[:, c0:c0 + dh]
            k = qkv[:, D + c0:D + c0 + dh]
            v = qkv[:, 2 * D + c0:2 * D + c0 + dh]
            s = jax.lax.dot_general(q, k, (((1,), (1,)), ((), ())),
                                    preferred_element_type=f32) * scale
            s = s + key_bias
            s = s - jnp.max(s, axis=-1, keepdims=True)
            p = jnp.exp(s)
            p = p * pl.reciprocal(jnp.sum(p, axis=-1, keepdims=True), approx=True)
            ctx_h = jnp.dot(p, v, preferred_element_type=f32)        # (S_pad, dh)
            attn_out = attn_out + jnp.dot(ctx_h, wo[c0:c0 + dh, :],
                                          preferred_element_type=f32)
        h = h + attn_out + bo

        # --- sublayer 1: x + MLP(LayerNorm_custom(x)) -------------------------
        nrm = _ln_custom(h, ln2_g, ln2_b, 1e-6)
        m = _gelu(jnp.dot(nrm, w1, preferred_element_type=f32) + b1)
        h = h + jnp.dot(m, w2, preferred_element_type=f32) + b2

    # ---- Classification head on the cls token (fused epilogue) --------------
    cls_tok = h[0:1, :]
    cn = _ln_torch(cls_tok, clsn_g_ref[...], clsn_b_ref[...], 1e-5)
    logits = jnp.dot(cn, head_w_ref[...], preferred_element_type=f32) + head_b_ref[...]
    out_ref[0] = logits                                            # (1, n_classes)


# ----------------------------------------------------------------------------
# Parameters + forward wrapper
# ----------------------------------------------------------------------------
def init_params(key, cfg):
    C, P = cfg["in_channels"], cfg["patches"]
    Cr, D = cfg["resnet_out_channels"], cfg["emb"]
    S = (cfg["img_size"] // P) ** 2 + 1
    Dh = D * cfg["mlp_expansion"]

    keys = jax.random.split(key, 16)
    n = lambda k, shp: (0.02 * jax.random.normal(k, shp)).astype(jnp.float32)

    wq, wk, wv = n(keys[5], (D, D)), n(keys[6], (D, D)), n(keys[7], (D, D))
    params = dict(
        cnn_w=n(keys[0], (C * P * P, Cr)),           # strided-conv stem weight
        cnn_b=jnp.zeros((Cr,), jnp.float32),
        proj_w=n(keys[1], (Cr, D)),                  # 1x1-conv patch projection
        proj_b=jnp.zeros((D,), jnp.float32),
        cls=n(keys[2], (1, 1, D)),
        pos=n(keys[3], (1, S, D)),
        cls_g=jnp.ones((D,), jnp.float32),           # classification nn.LayerNorm
        cls_b=jnp.zeros((D,), jnp.float32),
        head_w=n(keys[4], (D, cfg["n_classes"])),
        head_b=jnp.zeros((cfg["n_classes"],), jnp.float32),
        layer=dict(                                  # one layer, reused `depth` times
            ln1_g=jnp.ones((D,), jnp.float32), ln1_b=jnp.zeros((D,), jnp.float32),
            wqkv=jnp.concatenate([wq, wk, wv], axis=1),   # fused (D, 3D)
            bqkv=jnp.zeros((3 * D,), jnp.float32),
            wo=n(keys[8], (D, D)), bo=jnp.zeros((D,), jnp.float32),
            ln2_g=jnp.ones((D,), jnp.float32), ln2_b=jnp.zeros((D,), jnp.float32),
            w1=n(keys[9], (D, Dh)), b1=jnp.zeros((Dh,), jnp.float32),
            w2=n(keys[10], (Dh, D)), b2=jnp.zeros((D,), jnp.float32),
        ),
    )
    return params


def _rep_spec(arr):
    nd = arr.ndim
    return pl.BlockSpec(arr.shape, lambda b, _nd=nd: (0,) * _nd)


def vit_hybrid_forward(x, params, cfg):
    B, C, Himg, Wimg = x.shape
    P = cfg["patches"]
    nH, nW = Himg // P, Wimg // P
    NP = nH * nW
    D = cfg["emb"]
    S = NP + 1
    S_pad = ((S + 7) // 8) * 8                       # pad seq to sublane multiple
    n_cls = cfg["n_classes"]
    CPP = C * P * P

    # Patch flatten (pure layout op, done once in XLA): row-major over (C,P,P).
    xp = (x.reshape(B, C, nH, P, nW, P)
            .transpose(0, 2, 4, 1, 3, 5)
            .reshape(B * NP, CPP))

    lp = params["layer"]
    pos = params["pos"].reshape(S, D)
    pos_pad = jnp.pad(pos, ((0, S_pad - S), (0, 0)))
    r2 = lambda a: a.reshape(1, -1)

    args = (
        xp,
        params["cnn_w"], r2(params["cnn_b"]),
        params["proj_w"], r2(params["proj_b"]),
        params["cls"].reshape(1, D), pos_pad,
        r2(lp["ln1_g"]), r2(lp["ln1_b"]),
        lp["wqkv"], r2(lp["bqkv"]),
        lp["wo"], r2(lp["bo"]),
        r2(lp["ln2_g"]), r2(lp["ln2_b"]),
        lp["w1"], r2(lp["b1"]),
        lp["w2"], r2(lp["b2"]),
        r2(params["cls_g"]), r2(params["cls_b"]),
        params["head_w"], r2(params["head_b"]),
    )

    in_specs = [pl.BlockSpec((NP, CPP), lambda b: (b, 0))]          # per-batch patches
    in_specs += [_rep_spec(a) for a in args[1:]]                    # weights: same block

    out = pl.pallas_call(
        partial(_vit_fused_kernel, S=S, S_pad=S_pad, NP=NP, D=D,
                H=cfg["heads"], depth=cfg["depth"]),
        grid=(B,),
        in_specs=in_specs,
        out_specs=pl.BlockSpec((1, 1, n_cls), lambda b: (b, 0, 0)),
        out_shape=jax.ShapeDtypeStruct((B, 1, n_cls), jnp.float32),
        scratch_shapes=[pltpu.VMEM((S_pad, D), jnp.float32)],
        compiler_params=pltpu.CompilerParams(
            dimension_semantics=("parallel",)),                     # 2 TCs on v7x
    )(*args)
    return out.reshape(B, n_cls)


# ----------------------------------------------------------------------------
if __name__ == "__main__":
    key = jax.random.PRNGKey(0)
    k_param, k_x = jax.random.split(key)

    params = init_params(k_param, CFG)
    x = jax.random.normal(
        k_x, (CFG["batch"], CFG["in_channels"], CFG["img_size"], CFG["img_size"]),
        dtype=jnp.float32)

    fwd = jax.jit(partial(vit_hybrid_forward, cfg=CFG))
    out = jax.block_until_ready(fwd(x, params))

    assert out.shape == (CFG["batch"], CFG["n_classes"])
    assert bool(jnp.all(jnp.isfinite(out)))
    print("KERNEL_OK")
</pallas_src>

<mosaic_0001>
module attributes {stable_mosaic.version = 11 : i64} {
  func.func @_vit_fused_kernel(%arg0: i32, %arg1: memref<16x48xf32, #tpu.memory_space<vmem>>, %arg2: memref<48x8xf32, #tpu.memory_space<vmem>>, %arg3: memref<1x8xf32, #tpu.memory_space<vmem>>, %arg4: memref<8x32xf32, #tpu.memory_space<vmem>>, %arg5: memref<1x32xf32, #tpu.memory_space<vmem>>, %arg6: memref<1x32xf32, #tpu.memory_space<vmem>>, %arg7: memref<24x32xf32, #tpu.memory_space<vmem>>, %arg8: memref<1x32xf32, #tpu.memory_space<vmem>>, %arg9: memref<1x32xf32, #tpu.memory_space<vmem>>, %arg10: memref<32x96xf32, #tpu.memory_space<vmem>>, %arg11: memref<1x96xf32, #tpu.memory_space<vmem>>, %arg12: memref<32x32xf32, #tpu.memory_space<vmem>>, %arg13: memref<1x32xf32, #tpu.memory_space<vmem>>, %arg14: memref<1x32xf32, #tpu.memory_space<vmem>>, %arg15: memref<1x32xf32, #tpu.memory_space<vmem>>, %arg16: memref<32x128xf32, #tpu.memory_space<vmem>>, %arg17: memref<1x128xf32, #tpu.memory_space<vmem>>, %arg18: memref<128x32xf32, #tpu.memory_space<vmem>>, %arg19: memref<1x32xf32, #tpu.memory_space<vmem>>, %arg20: memref<1x32xf32, #tpu.memory_space<vmem>>, %arg21: memref<1x32xf32, #tpu.memory_space<vmem>>, %arg22: memref<32x2xf32, #tpu.memory_space<vmem>>, %arg23: memref<1x2xf32, #tpu.memory_space<vmem>>, %arg24: memref<1x1x2xf32, #tpu.memory_space<vmem>>, %arg25: memref<24x32xf32, #tpu.memory_space<vmem>>) attributes {dimension_semantics = [#tpu.dimension_semantics<parallel>], iteration_bounds = array<i64: 2>, scalar_prefetch = 0 : i64, scratch_operands = 1 : i64, tpu.core_type = #tpu.core_type<tc>, window_params = [{transform_indices = @transform_0, window_bounds = array<i64: 16, 48>}, {pipeline_mode = #tpu.pipeline_mode<synchronous>, transform_indices = @transform_1, window_bounds = array<i64: 48, 8>}, {pipeline_mode = #tpu.pipeline_mode<synchronous>, transform_indices = @transform_2, window_bounds = array<i64: 1, 8>}, {pipeline_mode = #tpu.pipeline_mode<synchronous>, transform_indices = @transform_3, window_bounds = array<i64: 8, 32>}, {pipeline_mode = #tpu.pipeline_mode<synchronous>, transform_indices = @transform_4, window_bounds = array<i64: 1, 32>}, {pipeline_mode = #tpu.pipeline_mode<synchronous>, transform_indices = @transform_5, window_bounds = array<i64: 1, 32>}, {pipeline_mode = #tpu.pipeline_mode<synchronous>, transform_indices = @transform_6, window_bounds = array<i64: 24, 32>}, {pipeline_mode = #tpu.pipeline_mode<synchronous>, transform_indices = @transform_7, window_bounds = array<i64: 1, 32>}, {pipeline_mode = #tpu.pipeline_mode<synchronous>, transform_indices = @transform_8, window_bounds = array<i64: 1, 32>}, {pipeline_mode = #tpu.pipeline_mode<synchronous>, transform_indices = @transform_9, window_bounds = array<i64: 32, 96>}, {pipeline_mode = #tpu.pipeline_mode<synchronous>, transform_indices = @transform_10, window_bounds = array<i64: 1, 96>}, {pipeline_mode = #tpu.pipeline_mode<synchronous>, transform_indices = @transform_11, window_bounds = array<i64: 32, 32>}, {pipeline_mode = #tpu.pipeline_mode<synchronous>, transform_indices = @transform_12, window_bounds = array<i64: 1, 32>}, {pipeline_mode = #tpu.pipeline_mode<synchronous>, transform_indices = @transform_13, window_bounds = array<i64: 1, 32>}, {pipeline_mode = #tpu.pipeline_mode<synchronous>, transform_indices = @transform_14, window_bounds = array<i64: 1, 32>}, {pipeline_mode = #tpu.pipeline_mode<synchronous>, transform_indices = @transform_15, window_bounds = array<i64: 32, 128>}, {pipeline_mode = #tpu.pipeline_mode<synchronous>, transform_indices = @transform_16, window_bounds = array<i64: 1, 128>}, {pipeline_mode = #tpu.pipeline_mode<synchronous>, transform_indices = @transform_17, window_bounds = array<i64: 128, 32>}, {pipeline_mode = #tpu.pipeline_mode<synchronous>, transform_indices = @transform_18, window_bounds = array<i64: 1, 32>}, {pipeline_mode = #tpu.pipeline_mode<synchronous>, transform_indices = @transform_19, window_bounds = array<i64: 1, 32>}, {pipeline_mode = #tpu.pipeline_mode<synchronous>, transform_indices = @transform_20, window_bounds = array<i64: 1, 32>}, {pipeline_mode = #tpu.pipeline_mode<synchronous>, transform_indices = @transform_21, window_bounds = array<i64: 32, 2>}, {pipeline_mode = #tpu.pipeline_mode<synchronous>, transform_indices = @transform_22, window_bounds = array<i64: 1, 2>}, {transform_indices = @transform_23, window_bounds = array<i64: 1, 1, 2>}]} {
    %c0 = arith.constant 0 : index
    %c0_0 = arith.constant 0 : index
    %0 = vector.load %arg1[%c0, %c0_0] : memref<16x48xf32, #tpu.memory_space<vmem>>, vector<16x48xf32>
    %c0_1 = arith.constant 0 : index
    %c0_2 = arith.constant 0 : index
    %1 = vector.load %arg2[%c0_1, %c0_2] : memref<48x8xf32, #tpu.memory_space<vmem>>, vector<48x8xf32>
    %cst = arith.constant dense<0.000000e+00> : vector<16x8xf32>
    %2 = tpu.matmul %0, %1, %cst {dimension_numbers = #tpu.dot_dimension_numbers<[1], [0], [0], [1], [0, 0, 1, 1], [], []>} : vector<16x48xf32>, vector<48x8xf32>, vector<16x8xf32> -> vector<16x8xf32>
    %c0_3 = arith.constant 0 : index
    %c0_4 = arith.constant 0 : index
    %3 = vector.load %arg3[%c0_3, %c0_4] : memref<1x8xf32, #tpu.memory_space<vmem>>, vector<1x8xf32>
    %4 = vector.broadcast %3 : vector<1x8xf32> to vector<16x8xf32>
    %5 = arith.addf %2, %4 : vector<16x8xf32>
    %cst_5 = arith.constant 0.000000e+00 : f32
    %6 = vector.broadcast %cst_5 : f32 to vector<16x8xf32>
    %7 = arith.maximumf %5, %6 : vector<16x8xf32>
    %c0_6 = arith.constant 0 : index
    %c0_7 = arith.constant 0 : index
    %8 = vector.load %arg4[%c0_6, %c0_7] : memref<8x32xf32, #tpu.memory_space<vmem>>, vector<8x32xf32>
    %cst_8 = arith.constant dense<0.000000e+00> : vector<16x32xf32>
    %9 = tpu.matmul %7, %8, %cst_8 {dimension_numbers = #tpu.dot_dimension_numbers<[1], [0], [0], [1], [0, 0, 1, 1], [], []>} : vector<16x8xf32>, vector<8x32xf32>, vector<16x32xf32> -> vector<16x32xf32>
    %c0_9 = arith.constant 0 : index
    %c0_10 = arith.constant 0 : index
    %10 = vector.load %arg5[%c0_9, %c0_10] : memref<1x32xf32, #tpu.memory_space<vmem>>, vector<1x32xf32>
    %11 = vector.broadcast %10 : vector<1x32xf32> to vector<16x32xf32>
    %12 = arith.addf %9, %11 : vector<16x32xf32>
    %c0_11 = arith.constant 0 : index
    %c0_12 = arith.constant 0 : index
    %13 = vector.load %arg7[%c0_11, %c0_12] : memref<24x32xf32, #tpu.memory_space<vmem>>, vector<24x32xf32>
    %cst_13 = arith.constant 0.000000e+00 : f32
    %14 = vector.broadcast %cst_13 : f32 to vector<24x32xf32>
    %c0_14 = arith.constant 0 : index
    %c0_15 = arith.constant 0 : index
    %15 = vector.load %arg25[%c0_14, %c0_15] : memref<24x32xf32, #tpu.memory_space<vmem>>, vector<24x32xf32>
    tpu.vector_store %arg25[%c0_14, %c0_15], %14 {strides = array<i32>} : memref<24x32xf32, #tpu.memory_space<vmem>>, vector<24x32xf32>,
    %c0_16 = arith.constant 0 : index
    %c0_17 = arith.constant 0 : index
    %16 = vector.load %arg6[%c0_16, %c0_17] : memref<1x32xf32, #tpu.memory_space<vmem>>, vector<1x32xf32>
    %17 = vector.extract_strided_slice %13 {offsets = [0, 0], sizes = [1, 32], strides = [1, 1]} : vector<24x32xf32> to vector<1x32xf32>
    %18 = arith.addf %16, %17 : vector<1x32xf32>
    %c0_18 = arith.constant 0 : index
    %c0_19 = arith.constant 0 : index
    %19 = vector.load %arg25[%c0_18, %c0_19] : memref<24x32xf32, #tpu.memory_space<vmem>>, vector<1x32xf32>
    tpu.vector_store %arg25[%c0_18, %c0_19], %18 {strides = array<i32>} : memref<24x32xf32, #tpu.memory_space<vmem>>, vector<1x32xf32>,
    %20 = vector.extract_strided_slice %13 {offsets = [1, 0], sizes = [16, 32], strides = [1, 1]} : vector<24x32xf32> to vector<16x32xf32>
    %21 = arith.addf %12, %20 : vector<16x32xf32>
    %c1 = arith.constant 1 : index
    %c0_20 = arith.constant 0 : index
    %22 = vector.load %arg25[%c1, %c0_20] : memref<24x32xf32, #tpu.memory_space<vmem>>, vector<16x32xf32>
    tpu.vector_store %arg25[%c1, %c0_20], %21 {strides = array<i32>} : memref<24x32xf32, #tpu.memory_space<vmem>>, vector<16x32xf32>,
    %c0_21 = arith.constant 0 : index
    %c0_22 = arith.constant 0 : index
    %23 = vector.load %arg25[%c0_21, %c0_22] : memref<24x32xf32, #tpu.memory_space<vmem>>, vector<24x32xf32>
    %24 = tpu.iota {dimensions = array<i32: 1>} : vector<1x24xi32>
    %c17_i32 = arith.constant 17 : i32
    %25 = vector.broadcast %c17_i32 : i32 to vector<1x24xi32>
    %26 = arith.cmpi slt, %24, %25 : vector<1x24xi32>
    %cst_23 = arith.constant 0.000000e+00 : f32
    %cst_24 = arith.constant -1.000000e+30 : f32
    %27 = vector.broadcast %cst_23 : f32 to vector<1x24xf32>
    %28 = vector.broadcast %cst_24 : f32 to vector<1x24xf32>
    %29 = arith.select %26, %27, %28 : vector<1x24xi1>, vector<1x24xf32>
    %c0_25 = arith.constant 0 : index
    %c0_26 = arith.constant 0 : index
    %30 = vector.load %arg8[%c0_25, %c0_26] : memref<1x32xf32, #tpu.memory_space<vmem>>, vector<1x32xf32>
    %c0_27 = arith.constant 0 : index
    %c0_28 = arith.constant 0 : index
    %31 = vector.load %arg9[%c0_27, %c0_28] : memref<1x32xf32, #tpu.memory_space<vmem>>, vector<1x32xf32>
    %c0_29 = arith.constant 0 : index
    %c0_30 = arith.constant 0 : index
    %32 = vector.load %arg14[%c0_29, %c0_30] : memref<1x32xf32, #tpu.memory_space<vmem>>, vector<1x32xf32>
    %c0_31 = arith.constant 0 : index
    %c0_32 = arith.constant 0 : index
    %33 = vector.load %arg15[%c0_31, %c0_32] : memref<1x32xf32, #tpu.memory_space<vmem>>, vector<1x32xf32>
    %c0_33 = arith.constant 0 : index
    %c0_34 = arith.constant 0 : index
    %34 = vector.load %arg10[%c0_33, %c0_34] : memref<32x96xf32, #tpu.memory_space<vmem>>, vector<32x96xf32>
    %c0_35 = arith.constant 0 : index
    %c0_36 = arith.constant 0 : index
    %35 = vector.load %arg11[%c0_35, %c0_36] : memref<1x96xf32, #tpu.memory_space<vmem>>, vector<1x96xf32>
    %c0_37 = arith.constant 0 : index
    %c0_38 = arith.constant 0 : index
    %36 = vector.load %arg12[%c0_37, %c0_38] : memref<32x32xf32, #tpu.memory_space<vmem>>, vector<32x32xf32>
    %c0_39 = arith.constant 0 : index
    %c0_40 = arith.constant 0 : index
    %37 = vector.load %arg13[%c0_39, %c0_40] : memref<1x32xf32, #tpu.memory_space<vmem>>, vector<1x32xf32>
    %c0_41 = arith.constant 0 : index
    %c0_42 = arith.constant 0 : index
    %38 = vector.load %arg16[%c0_41, %c0_42] : memref<32x128xf32, #tpu.memory_space<vmem>>, vector<32x128xf32>
    %c0_43 = arith.constant 0 : index
    %c0_44 = arith.constant 0 : index
    %39 = vector.load %arg17[%c0_43, %c0_44] : memref<1x128xf32, #tpu.memory_space<vmem>>, vector<1x128xf32>
    %c0_45 = arith.constant 0 : index
    %c0_46 = arith.constant 0 : index
    %40 = vector.load %arg18[%c0_45, %c0_46] : memref<128x32xf32, #tpu.memory_space<vmem>>, vector<128x32xf32>
    %c0_47 = arith.constant 0 : index
    %c0_48 = arith.constant 0 : index
    %41 = vector.load %arg19[%c0_47, %c0_48] : memref<1x32xf32, #tpu.memory_space<vmem>>, vector<1x32xf32>
    %cst_49 = arith.constant dense<0.000000e+00> : vector<24xf32>
    %42 = vector.multi_reduction <add>, %23, %cst_49 [1] : vector<24x32xf32> to vector<24xf32>
    %43 = vector.shape_cast %42 : vector<24xf32> to vector<24x1xf32>
    %cst_50 = arith.constant 3.200000e+01 : f32
    %44 = vector.broadcast %cst_50 : f32 to vector<24x1xf32>
    %45 = arith.divf %43, %44 : vector<24x1xf32>
    %46 = vector.broadcast %45 : vector<24x1xf32> to vector<24x32xf32>
    %47 = arith.subf %23, %46 : vector<24x32xf32>
    %48 = arith.mulf %47, %47 : vector<24x32xf32>
    %cst_51 = arith.constant dense<0.000000e+00> : vector<24xf32>
    %49 = vector.multi_reduction <add>, %48, %cst_51 [1] : vector<24x32xf32> to vector<24xf32>
    %50 = vector.shape_cast %49 : vector<24xf32> to vector<24x1xf32>
    %cst_52 = arith.constant 0.0322580636 : f32
    %51 = vector.broadcast %cst_52 : f32 to vector<24x1xf32>
    %52 = arith.mulf %50, %51 : vector<24x1xf32>
    %53 = math.sqrt %52 : vector<24x1xf32>
    %cst_53 = arith.constant 9.99999997E-7 : f32
    %54 = vector.broadcast %cst_53 : f32 to vector<24x1xf32>
    %55 = arith.addf %53, %54 : vector<24x1xf32>
    %56 = tpu.reciprocal %55 {approx = true} : vector<24x1xf32> -> vector<24x1xf32>
    %57 = vector.broadcast %30 : vector<1x32xf32> to vector<24x32xf32>
    %58 = arith.mulf %57, %47 : vector<24x32xf32>
    %59 = vector.broadcast %56 : vector<24x1xf32> to vector<24x32xf32>
    %60 = arith.mulf %58, %59 : vector<24x32xf32>
    %61 = vector.broadcast %31 : vector<1x32xf32> to vector<24x32xf32>
    %62 = arith.addf %60, %61 : vector<24x32xf32>
    %cst_54 = arith.constant dense<0.000000e+00> : vector<24x96xf32>
    %63 = tpu.matmul %62, %34, %cst_54 {dimension_numbers = #tpu.dot_dimension_numbers<[1], [0], [0], [1], [0, 0, 1, 1], [], []>} : vector<24x32xf32>, vector<32x96xf32>, vector<24x96xf32> -> vector<24x96xf32>
    %64 = vector.broadcast %35 : vector<1x96xf32> to vector<24x96xf32>
    %65 = arith.addf %63, %64 : vector<24x96xf32>
    %cst_55 = arith.constant 0.000000e+00 : f32
    %66 = vector.broadcast %cst_55 : f32 to vector<24x32xf32>
    %67 = vector.extract_strided_slice %65 {offsets = [0, 0], sizes = [24, 8], strides = [1, 1]} : vector<24x96xf32> to vector<24x8xf32>
    %68 = vector.extract_strided_slice %65 {offsets = [0, 32], sizes = [24, 8], strides = [1, 1]} : vector<24x96xf32> to vector<24x8xf32>
    %69 = vector.extract_strided_slice %65 {offsets = [0, 64], sizes = [24, 8], strides = [1, 1]} : vector<24x96xf32> to vector<24x8xf32>
    %cst_56 = arith.constant dense<0.000000e+00> : vector<24x24xf32>
    %70 = tpu.matmul %67, %68, %cst_56 {dimension_numbers = #tpu.dot_dimension_numbers<[1], [1], [0], [0], [0, 0, 1, 0], [], []>} : vector<24x8xf32>, vector<24x8xf32>, vector<24x24xf32> -> vector<24x24xf32>
    %cst_57 = arith.constant 0.353553385 : f32
    %71 = vector.broadcast %cst_57 : f32 to vector<24x24xf32>
    %72 = arith.mulf %70, %71 : vector<24x24xf32>
    %73 = vector.broadcast %29 : vector<1x24xf32> to vector<24x24xf32>
    %74 = arith.addf %72, %73 : vector<24x24xf32>
    %cst_58 = arith.constant dense<0xFF800000> : vector<24xf32>
    %75 = vector.multi_reduction <maximumf>, %74, %cst_58 [1] : vector<24x24xf32> to vector<24xf32>
    %76 = vector.shape_cast %75 : vector<24xf32> to vector<24x1xf32>
    %77 = vector.broadcast %76 : vector<24x1xf32> to vector<24x24xf32>
    %78 = arith.subf %74, %77 : vector<24x24xf32>
    %79 = math.exp %78 : vector<24x24xf32>
    %cst_59 = arith.constant dense<0.000000e+00> : vector<24xf32>
    %80 = vector.multi_reduction <add>, %79, %cst_59 [1] : vector<24x24xf32> to vector<24xf32>
    %81 = vector.shape_cast %80 : vector<24xf32> to vector<24x1xf32>
    %82 = tpu.reciprocal %81 {approx = true} : vector<24x1xf32> -> vector<24x1xf32>
    %83 = vector.broadcast %82 : vector<24x1xf32> to vector<24x24xf32>
    %84 = arith.mulf %79, %83 : vector<24x24xf32>
    %cst_60 = arith.constant dense<0.000000e+00> : vector<24x8xf32>
    %85 = tpu.matmul %84, %69, %cst_60 {dimension_numbers = #tpu.dot_dimension_numbers<[1], [0], [0], [1], [0, 0, 1, 1], [], []>} : vector<24x24xf32>, vector<24x8xf32>, vector<24x8xf32> -> vector<24x8xf32>
    %86 = vector.extract_strided_slice %36 {offsets = [0, 0], sizes = [8, 32], strides = [1, 1]} : vector<32x32xf32> to vector<8x32xf32>
    %cst_61 = arith.constant dense<0.000000e+00> : vector<24x32xf32>
    %87 = tpu.matmul %85, %86, %cst_61 {dimension_numbers = #tpu.dot_dimension_numbers<[1], [0], [0], [1], [0, 0, 1, 1], [], []>} : vector<24x8xf32>, vector<8x32xf32>, vector<24x32xf32> -> vector<24x32xf32>
    %88 = arith.addf %66, %87 : vector<24x32xf32>
    %89 = vector.extract_strided_slice %65 {offsets = [0, 8], sizes = [24, 8], strides = [1, 1]} : vector<24x96xf32> to vector<24x8xf32>
    %90 = vector.extract_strided_slice %65 {offsets = [0, 40], sizes = [24, 8], strides = [1, 1]} : vector<24x96xf32> to vector<24x8xf32>
    %91 = vector.extract_strided_slice %65 {offsets = [0, 72], sizes = [24, 8], strides = [1, 1]} : vector<24x96xf32> to vector<24x8xf32>
    %cst_62 = arith.constant dense<0.000000e+00> : vector<24x24xf32>
    %92 = tpu.matmul %89, %90, %cst_62 {dimension_numbers = #tpu.dot_dimension_numbers<[1], [1], [0], [0], [0, 0, 1, 0], [], []>} : vector<24x8xf32>, vector<24x8xf32>, vector<24x24xf32> -> vector<24x24xf32>
    %cst_63 = arith.constant 0.353553385 : f32
    %93 = vector.broadcast %cst_63 : f32 to vector<24x24xf32>
    %94 = arith.mulf %92, %93 : vector<24x24xf32>
    %95 = vector.broadcast %29 : vector<1x24xf32> to vector<24x24xf32>
    %96 = arith.addf %94, %95 : vector<24x24xf32>
    %cst_64 = arith.constant dense<0xFF800000> : vector<24xf32>
    %97 = vector.multi_reduction <maximumf>, %96, %cst_64 [1] : vector<24x24xf32> to vector<24xf32>
    %98 = vector.shape_cast %97 : vector<24xf32> to vector<24x1xf32>
    %99 = vector.broadcast %98 : vector<24x1xf32> to vector<24x24xf32>
    %100 = arith.subf %96, %99 : vector<24x24xf32>
    %101 = math.exp %100 : vector<24x24xf32>
    %cst_65 = arith.constant dense<0.000000e+00> : vector<24xf32>
    %102 = vector.multi_reduction <add>, %101, %cst_65 [1] : vector<24x24xf32> to vector<24xf32>
    %103 = vector.shape_cast %102 : vector<24xf32> to vector<24x1xf32>
    %104 = tpu.reciprocal %103 {approx = true} : vector<24x1xf32> -> vector<24x1xf32>
    %105 = vector.broadcast %104 : vector<24x1xf32> to vector<24x24xf32>
    %106 = arith.mulf %101, %105 : vector<24x24xf32>
    %cst_66 = arith.constant dense<0.000000e+00> : vector<24x8xf32>
    %107 = tpu.matmul %106, %91, %cst_66 {dimension_numbers = #tpu.dot_dimension_numbers<[1], [0], [0], [1], [0, 0, 1, 1], [], []>} : vector<24x24xf32>, vector<24x8xf32>, vector<24x8xf32> -> vector<24x8xf32>
    %108 = vector.extract_strided_slice %36 {offsets = [8, 0], sizes = [8, 32], strides = [1, 1]} : vector<32x32xf32> to vector<8x32xf32>
    %cst_67 = arith.constant dense<0.000000e+00> : vector<24x32xf32>
    %109 = tpu.matmul %107, %108, %cst_67 {dimension_numbers = #tpu.dot_dimension_numbers<[1], [0], [0], [1], [0, 0, 1, 1], [], []>} : vector<24x8xf32>, vector<8x32xf32>, vector<24x32xf32> -> vector<24x32xf32>
    %110 = arith.addf %88, %109 : vector<24x32xf32>
    %111 = vector.extract_strided_slice %65 {offsets = [0, 16], sizes = [24, 8], strides = [1, 1]} : vector<24x96xf32> to vector<24x8xf32>
    %112 = vector.extract_strided_slice %65 {offsets = [0, 48], sizes = [24, 8], strides = [1, 1]} : vector<24x96xf32> to vector<24x8xf32>
    %113 = vector.extract_strided_slice %65 {offsets = [0, 80], sizes = [24, 8], strides = [1, 1]} : vector<24x96xf32> to vector<24x8xf32>
    %cst_68 = arith.constant dense<0.000000e+00> : vector<24x24xf32>
    %114 = tpu.matmul %111, %112, %cst_68 {dimension_numbers = #tpu.dot_dimension_numbers<[1], [1], [0], [0], [0, 0, 1, 0], [], []>} : vector<24x8xf32>, vector<24x8xf32>, vector<24x24xf32> -> vector<24x24xf32>
    %cst_69 = arith.constant 0.353553385 : f32
    %115 = vector.broadcast %cst_69 : f32 to vector<24x24xf32>
    %116 = arith.mulf %114, %115 : vector<24x24xf32>
    %117 = vector.broadcast %29 : vector<1x24xf32> to vector<24x24xf32>
    %118 = arith.addf %116, %117 : vector<24x24xf32>
    %cst_70 = arith.constant dense<0xFF800000> : vector<24xf32>
    %119 = vector.multi_reduction <maximumf>, %118, %cst_70 [1] : vector<24x24xf32> to vector<24xf32>
    %120 = vector.shape_cast %119 : vector<24xf32> to vector<24x1xf32>
    %121 = vector.broadcast %120 : vector<24x1xf32> to vector<24x24xf32>
    %122 = arith.subf %118, %121 : vector<24x24xf32>
    %123 = math.exp %122 : vector<24x24xf32>
    %cst_71 = arith.constant dense<0.000000e+00> : vector<24xf32>
    %124 = vector.multi_reduction <add>, %123, %cst_71 [1] : vector<24x24xf32> to vector<24xf32>
    %125 = vector.shape_cast %124 : vector<24xf32> to vector<24x1xf32>
    %126 = tpu.reciprocal %125 {approx = true} : vector<24x1xf32> -> vector<24x1xf32>
    %127 = vector.broadcast %126 : vector<24x1xf32> to vector<24x24xf32>
    %128 = arith.mulf %123, %127 : vector<24x24xf32>
    %cst_72 = arith.constant dense<0.000000e+00> : vector<24x8xf32>
    %129 = tpu.matmul %128, %113, %cst_72 {dimension_numbers = #tpu.dot_dimension_numbers<[1], [0], [0], [1], [0, 0, 1, 1], [], []>} : vector<24x24xf32>, vector<24x8xf32>, vector<24x8xf32> -> vector<24x8xf32>
    %130 = vector.extract_strided_slice %36 {offsets = [16, 0], sizes = [8, 32], strides = [1, 1]} : vector<32x32xf32> to vector<8x32xf32>
    %cst_73 = arith.constant dense<0.000000e+00> : vector<24x32xf32>
    %131 = tpu.matmul %129, %130, %cst_73 {dimension_numbers = #tpu.dot_dimension_numbers<[1], [0], [0], [1], [0, 0, 1, 1], [], []>} : vector<24x8xf32>, vector<8x32xf32>, vector<24x32xf32> -> vector<24x32xf32>
    %132 = arith.addf %110, %131 : vector<24x32xf32>
    %133 = vector.extract_strided_slice %65 {offsets = [0, 24], sizes = [24, 8], strides = [1, 1]} : vector<24x96xf32> to vector<24x8xf32>
    %134 = vector.extract_strided_slice %65 {offsets = [0, 56], sizes = [24, 8], strides = [1, 1]} : vector<24x96xf32> to vector<24x8xf32>
    %135 = vector.extract_strided_slice %65 {offsets = [0, 88], sizes = [24, 8], strides = [1, 1]} : vector<24x96xf32> to vector<24x8xf32>
    %cst_74 = arith.constant dense<0.000000e+00> : vector<24x24xf32>
    %136 = tpu.matmul %133, %134, %cst_74 {dimension_numbers = #tpu.dot_dimension_numbers<[1], [1], [0], [0], [0, 0, 1, 0], [], []>} : vector<24x8xf32>, vector<24x8xf32>, vector<24x24xf32> -> vector<24x24xf32>
    %cst_75 = arith.constant 0.353553385 : f32
    %137 = vector.broadcast %cst_75 : f32 to vector<24x24xf32>
    %138 = arith.mulf %136, %137 : vector<24x24xf32>
    %139 = vector.broadcast %29 : vector<1x24xf32> to vector<24x24xf32>
    %140 = arith.addf %138, %139 : vector<24x24xf32>
    %cst_76 = arith.constant dense<0xFF800000> : vector<24xf32>
    %141 = vector.multi_reduction <maximumf>, %140, %cst_76 [1] : vector<24x24xf32> to vector<24xf32>
    %142 = vector.shape_cast %141 : vector<24xf32> to vector<24x1xf32>
    %143 = vector.broadcast %142 : vector<24x1xf32> to vector<24x24xf32>
    %144 = arith.subf %140, %143 : vector<24x24xf32>
    %145 = math.exp %144 : vector<24x24xf32>
    %cst_77 = arith.constant dense<0.000000e+00> : vector<24xf32>
    %146 = vector.multi_reduction <add>, %145, %cst_77 [1] : vector<24x24xf32> to vector<24xf32>
    %147 = vector.shape_cast %146 : vector<24xf32> to vector<24x1xf32>
    %148 = tpu.reciprocal %147 {approx = true} : vector<24x1xf32> -> vector<24x1xf32>
    %149 = vector.broadcast %148 : vector<24x1xf32> to vector<24x24xf32>
    %150 = arith.mulf %145, %149 : vector<24x24xf32>
    %cst_78 = arith.constant dense<0.000000e+00> : vector<24x8xf32>
    %151 = tpu.matmul %150, %135, %cst_78 {dimension_numbers = #tpu.dot_dimension_numbers<[1], [0], [0], [1], [0, 0, 1, 1], [], []>} : vector<24x24xf32>, vector<24x8xf32>, vector<24x8xf32> -> vector<24x8xf32>
    %152 = vector.extract_strided_slice %36 {offsets = [24, 0], sizes = [8, 32], strides = [1, 1]} : vector<32x32xf32> to vector<8x32xf32>
    %cst_79 = arith.constant dense<0.000000e+00> : vector<24x32xf32>
    %153 = tpu.matmul %151, %152, %cst_79 {dimension_numbers = #tpu.dot_dimension_numbers<[1], [0], [0], [1], [0, 0, 1, 1], [], []>} : vector<24x8xf32>, vector<8x32xf32>, vector<24x32xf32> -> vector<24x32xf32>
    %154 = arith.addf %132, %153 : vector<24x32xf32>
    %155 = arith.addf %23, %154 : vector<24x32xf32>
    %156 = vector.broadcast %37 : vector<1x32xf32> to vector<24x32xf32>
    %157 = arith.addf %155, %156 : vector<24x32xf32>
    %cst_80 = arith.constant dense<0.000000e+00> : vector<24xf32>
    %158 = vector.multi_reduction <add>, %157, %cst_80 [1] : vector<24x32xf32> to vector<24xf32>
    %159 = vector.shape_cast %158 : vector<24xf32> to vector<24x1xf32>
    %cst_81 = arith.constant 3.200000e+01 : f32
    %160 = vector.broadcast %cst_81 : f32 to vector<24x1xf32>
    %161 = arith.divf %159, %160 : vector<24x1xf32>
    %162 = vector.broadcast %161 : vector<24x1xf32> to vector<24x32xf32>
    %163 = arith.subf %157, %162 : vector<24x32xf32>
    %164 = arith.mulf %163, %163 : vector<24x32xf32>
    %cst_82 = arith.constant dense<0.000000e+00> : vector<24xf32>
    %165 = vector.multi_reduction <add>, %164, %cst_82 [1] : vector<24x32xf32> to vector<24xf32>
    %166 = vector.shape_cast %165 : vector<24xf32> to vector<24x1xf32>
    %cst_83 = arith.constant 0.0322580636 : f32
    %167 = vector.broadcast %cst_83 : f32 to vector<24x1xf32>
    %168 = arith.mulf %166, %167 : vector<24x1xf32>
    %169 = math.sqrt %168 : vector<24x1xf32>
    %cst_84 = arith.constant 9.99999997E-7 : f32
    %170 = vector.broadcast %cst_84 : f32 to vector<24x1xf32>
    %171 = arith.addf %169, %170 : vector<24x1xf32>
    %172 = tpu.reciprocal %171 {approx = true} : vector<24x1xf32> -> vector<24x1xf32>
    %173 = vector.broadcast %32 : vector<1x32xf32> to vector<24x32xf32>
    %174 = arith.mulf %173, %163 : vector<24x32xf32>
    %175 = vector.broadcast %172 : vector<24x1xf32> to vector<24x32xf32>
    %176 = arith.mulf %174, %175 : vector<24x32xf32>
    %177 = vector.broadcast %33 : vector<1x32xf32> to vector<24x32xf32>
    %178 = arith.addf %176, %177 : vector<24x32xf32>
    %cst_85 = arith.constant dense<0.000000e+00> : vector<24x128xf32>
    %179 = tpu.matmul %178, %38, %cst_85 {dimension_numbers = #tpu.dot_dimension_numbers<[1], [0], [0], [1], [0, 0, 1, 1], [], []>} : vector<24x32xf32>, vector<32x128xf32>, vector<24x128xf32> -> vector<24x128xf32>
    %180 = vector.broadcast %39 : vector<1x128xf32> to vector<24x128xf32>
    %181 = arith.addf %179, %180 : vector<24x128xf32>
    %cst_86 = arith.constant 5.000000e-01 : f32
    %182 = vector.broadcast %cst_86 : f32 to vector<24x128xf32>
    %183 = arith.mulf %182, %181 : vector<24x128xf32>
    %cst_87 = arith.constant 0.707106769 : f32
    %184 = vector.broadcast %cst_87 : f32 to vector<24x128xf32>
    %185 = arith.mulf %181, %184 : vector<24x128xf32>
    %186 = math.absf %185 : vector<24x128xf32>
    %cst_88 = arith.constant 0.327591091 : f32
    %187 = vector.broadcast %cst_88 : f32 to vector<24x128xf32>
    %188 = arith.mulf %187, %186 : vector<24x128xf32>
    %cst_89 = arith.constant 1.000000e+00 : f32
    %189 = vector.broadcast %cst_89 : f32 to vector<24x128xf32>
    %190 = arith.addf %189, %188 : vector<24x128xf32>
    %cst_90 = arith.constant 1.000000e+00 : f32
    %191 = vector.broadcast %cst_90 : f32 to vector<24x128xf32>
    %192 = arith.divf %191, %190 : vector<24x128xf32>
    %cst_91 = arith.constant 1.06140542 : f32
    %193 = vector.broadcast %cst_91 : f32 to vector<24x128xf32>
    %194 = arith.mulf %193, %192 : vector<24x128xf32>
    %cst_92 = arith.constant -1.45315206 : f32
    %195 = vector.broadcast %cst_92 : f32 to vector<24x128xf32>
    %196 = arith.addf %194, %195 : vector<24x128xf32>
    %197 = arith.mulf %196, %192 : vector<24x128xf32>
    %cst_93 = arith.constant 1.42141378 : f32
    %198 = vector.broadcast %cst_93 : f32 to vector<24x128xf32>
    %199 = arith.addf %197, %198 : vector<24x128xf32>
    %200 = arith.mulf %199, %192 : vector<24x128xf32>
    %cst_94 = arith.constant -0.284496725 : f32
    %201 = vector.broadcast %cst_94 : f32 to vector<24x128xf32>
    %202 = arith.addf %200, %201 : vector<24x128xf32>
    %203 = arith.mulf %202, %192 : vector<24x128xf32>
    %cst_95 = arith.constant 0.254829586 : f32
    %204 = vector.broadcast %cst_95 : f32 to vector<24x128xf32>
    %205 = arith.addf %203, %204 : vector<24x128xf32>
    %206 = arith.mulf %205, %192 : vector<24x128xf32>
    %cst_96 = arith.constant 0.000000e+00 : f32
    %207 = vector.broadcast %cst_96 : f32 to vector<24x128xf32>
    %208 = arith.subf %207, %186 : vector<24x128xf32>
    %209 = arith.mulf %208, %186 : vector<24x128xf32>
    %210 = math.exp %209 : vector<24x128xf32>
    %211 = arith.mulf %206, %210 : vector<24x128xf32>
    %cst_97 = arith.constant 1.000000e+00 : f32
    %212 = vector.broadcast %cst_97 : f32 to vector<24x128xf32>
    %213 = arith.subf %212, %211 : vector<24x128xf32>
    %cst_98 = arith.constant 0.000000e+00 : f32
    %214 = vector.broadcast %cst_98 : f32 to vector<24x128xf32>
    %215 = arith.cmpf oge, %185, %214 : vector<24x128xf32>
    %cst_99 = arith.constant 0.000000e+00 : f32
    %216 = vector.broadcast %cst_99 : f32 to vector<24x128xf32>
    %217 = arith.subf %216, %213 : vector<24x128xf32>
    %218 = arith.select %215, %213, %217 : vector<24x128xi1>, vector<24x128xf32>
    %cst_100 = arith.constant 1.000000e+00 : f32
    %219 = vector.broadcast %cst_100 : f32 to vector<24x128xf32>
    %220 = arith.addf %219, %218 : vector<24x128xf32>
    %221 = arith.mulf %183, %220 : vector<24x128xf32>
    %cst_101 = arith.constant dense<0.000000e+00> : vector<24x32xf32>
    %222 = tpu.matmul %221, %40, %cst_101 {dimension_numbers = #tpu.dot_dimension_numbers<[1], [0], [0], [1], [0, 0, 1, 1], [], []>} : vector<24x128xf32>, vector<128x32xf32>, vector<24x32xf32> -> vector<24x32xf32>
    %223 = arith.addf %157, %222 : vector<24x32xf32>
    %224 = vector.broadcast %41 : vector<1x32xf32> to vector<24x32xf32>
    %225 = arith.addf %223, %224 : vector<24x32xf32>
    %cst_102 = arith.constant dense<0.000000e+00> : vector<24xf32>
    %226 = vector.multi_reduction <add>, %225, %cst_102 [1] : vector<24x32xf32> to vector<24xf32>
    %227 = vector.shape_cast %226 : vector<24xf32> to vector<24x1xf32>
    %cst_103 = arith.constant 3.200000e+01 : f32
    %228 = vector.broadcast %cst_103 : f32 to vector<24x1xf32>
    %229 = arith.divf %227, %228 : vector<24x1xf32>
    %230 = vector.broadcast %229 : vector<24x1xf32> to vector<24x32xf32>
    %231 = arith.subf %225, %230 : vector<24x32xf32>
    %232 = arith.mulf %231, %231 : vector<24x32xf32>
    %cst_104 = arith.constant dense<0.000000e+00> : vector<24xf32>
    %233 = vector.multi_reduction <add>, %232, %cst_104 [1] : vector<24x32xf32> to vector<24xf32>
    %234 = vector.shape_cast %233 : vector<24xf32> to vector<24x1xf32>
    %cst_105 = arith.constant 0.0322580636 : f32
    %235 = vector.broadcast %cst_105 : f32 to vector<24x1xf32>
    %236 = arith.mulf %234, %235 : vector<24x1xf32>
    %237 = math.sqrt %236 : vector<24x1xf32>
    %cst_106 = arith.constant 9.99999997E-7 : f32
    %238 = vector.broadcast %cst_106 : f32 to vector<24x1xf32>
    %239 = arith.addf %237, %238 : vector<24x1xf32>
    %240 = tpu.reciprocal %239 {approx = true} : vector<24x1xf32> -> vector<24x1xf32>
    %241 = vector.broadcast %30 : vector<1x32xf32> to vector<24x32xf32>
    %242 = arith.mulf %241, %231 : vector<24x32xf32>
    %243 = vector.broadcast %240 : vector<24x1xf32> to vector<24x32xf32>
    %244 = arith.mulf %242, %243 : vector<24x32xf32>
    %245 = vector.broadcast %31 : vector<1x32xf32> to vector<24x32xf32>
    %246 = arith.addf %244, %245 : vector<24x32xf32>
    %cst_107 = arith.constant dense<0.000000e+00> : vector<24x96xf32>
    %247 = tpu.matmul %246, %34, %cst_107 {dimension_numbers = #tpu.dot_dimension_numbers<[1], [0], [0], [1], [0, 0, 1, 1], [], []>} : vector<24x32xf32>, vector<32x96xf32>, vector<24x96xf32> -> vector<24x96xf32>
    %248 = vector.broadcast %35 : vector<1x96xf32> to vector<24x96xf32>
    %249 = arith.addf %247, %248 : vector<24x96xf32>
    %cst_108 = arith.constant 0.000000e+00 : f32
    %250 = vector.broadcast %cst_108 : f32 to vector<24x32xf32>
    %251 = vector.extract_strided_slice %249 {offsets = [0, 0], sizes = [24, 8], strides = [1, 1]} : vector<24x96xf32> to vector<24x8xf32>
    %252 = vector.extract_strided_slice %249 {offsets = [0, 32], sizes = [24, 8], strides = [1, 1]} : vector<24x96xf32> to vector<24x8xf32>
    %253 = vector.extract_strided_slice %249 {offsets = [0, 64], sizes = [24, 8], strides = [1, 1]} : vector<24x96xf32> to vector<24x8xf32>
    %cst_109 = arith.constant dense<0.000000e+00> : vector<24x24xf32>
    %254 = tpu.matmul %251, %252, %cst_109 {dimension_numbers = #tpu.dot_dimension_numbers<[1], [1], [0], [0], [0, 0, 1, 0], [], []>} : vector<24x8xf32>, vector<24x8xf32>, vector<24x24xf32> -> vector<24x24xf32>
    %cst_110 = arith.constant 0.353553385 : f32
    %255 = vector.broadcast %cst_110 : f32 to vector<24x24xf32>
    %256 = arith.mulf %254, %255 : vector<24x24xf32>
    %257 = vector.broadcast %29 : vector<1x24xf32> to vector<24x24xf32>
    %258 = arith.addf %256, %257 : vector<24x24xf32>
    %cst_111 = arith.constant dense<0xFF800000> : vector<24xf32>
    %259 = vector.multi_reduction <maximumf>, %258, %cst_111 [1] : vector<24x24xf32> to vector<24xf32>
    %260 = vector.shape_cast %259 : vector<24xf32> to vector<24x1xf32>
    %261 = vector.broadcast %260 : vector<24x1xf32> to vector<24x24xf32>
    %262 = arith.subf %258, %261 : vector<24x24xf32>
    %263 = math.exp %262 : vector<24x24xf32>
    %cst_112 = arith.constant dense<0.000000e+00> : vector<24xf32>
    %264 = vector.multi_reduction <add>, %263, %cst_112 [1] : vector<24x24xf32> to vector<24xf32>
    %265 = vector.shape_cast %264 : vector<24xf32> to vector<24x1xf32>
    %266 = tpu.reciprocal %265 {approx = true} : vector<24x1xf32> -> vector<24x1xf32>
    %267 = vector.broadcast %266 : vector<24x1xf32> to vector<24x24xf32>
    %268 = arith.mulf %263, %267 : vector<24x24xf32>
    %cst_113 = arith.constant dense<0.000000e+00> : vector<24x8xf32>
    %269 = tpu.matmul %268, %253, %cst_113 {dimension_numbers = #tpu.dot_dimension_numbers<[1], [0], [0], [1], [0, 0, 1, 1], [], []>} : vector<24x24xf32>, vector<24x8xf32>, vector<24x8xf32> -> vector<24x8xf32>
    %270 = vector.extract_strided_slice %36 {offsets = [0, 0], sizes = [8, 32], strides = [1, 1]} : vector<32x32xf32> to vector<8x32xf32>
    %cst_114 = arith.constant dense<0.000000e+00> : vector<24x32xf32>
    %271 = tpu.matmul %269, %270, %cst_114 {dimension_numbers = #tpu.dot_dimension_numbers<[1], [0], [0], [1], [0, 0, 1, 1], [], []>} : vector<24x8xf32>, vector<8x32xf32>, vector<24x32xf32> -> vector<24x32xf32>
    %272 = arith.addf %250, %271 : vector<24x32xf32>
    %273 = vector.extract_strided_slice %249 {offsets = [0, 8], sizes = [24, 8], strides = [1, 1]} : vector<24x96xf32> to vector<24x8xf32>
    %274 = vector.extract_strided_slice %249 {offsets = [0, 40], sizes = [24, 8], strides = [1, 1]} : vector<24x96xf32> to vector<24x8xf32>
    %275 = vector.extract_strided_slice %249 {offsets = [0, 72], sizes = [24, 8], strides = [1, 1]} : vector<24x96xf32> to vector<24x8xf32>
    %cst_115 = arith.constant dense<0.000000e+00> : vector<24x24xf32>
    %276 = tpu.matmul %273, %274, %cst_115 {dimension_numbers = #tpu.dot_dimension_numbers<[1], [1], [0], [0], [0, 0, 1, 0], [], []>} : vector<24x8xf32>, vector<24x8xf32>, vector<24x24xf32> -> vector<24x24xf32>
    %cst_116 = arith.constant 0.353553385 : f32
    %277 = vector.broadcast %cst_116 : f32 to vector<24x24xf32>
    %278 = arith.mulf %276, %277 : vector<24x24xf32>
    %279 = vector.broadcast %29 : vector<1x24xf32> to vector<24x24xf32>
    %280 = arith.addf %278, %279 : vector<24x24xf32>
    %cst_117 = arith.constant dense<0xFF800000> : vector<24xf32>
    %281 = vector.multi_reduction <maximumf>, %280, %cst_117 [1] : vector<24x24xf32> to vector<24xf32>
    %282 = vector.shape_cast %281 : vector<24xf32> to vector<24x1xf32>
    %283 = vector.broadcast %282 : vector<24x1xf32> to vector<24x24xf32>
    %284 = arith.subf %280, %283 : vector<24x24xf32>
    %285 = math.exp %284 : vector<24x24xf32>
    %cst_118 = arith.constant dense<0.000000e+00> : vector<24xf32>
    %286 = vector.multi_reduction <add>, %285, %cst_118 [1] : vector<24x24xf32> to vector<24xf32>
    %287 = vector.shape_cast %286 : vector<24xf32> to vector<24x1xf32>
    %288 = tpu.reciprocal %287 {approx = true} : vector<24x1xf32> -> vector<24x1xf32>
    %289 = vector.broadcast %288 : vector<24x1xf32> to vector<24x24xf32>
    %290 = arith.mulf %285, %289 : vector<24x24xf32>
    %cst_119 = arith.constant dense<0.000000e+00> : vector<24x8xf32>
    %291 = tpu.matmul %290, %275, %cst_119 {dimension_numbers = #tpu.dot_dimension_numbers<[1], [0], [0], [1], [0, 0, 1, 1], [], []>} : vector<24x24xf32>, vector<24x8xf32>, vector<24x8xf32> -> vector<24x8xf32>
    %292 = vector.extract_strided_slice %36 {offsets = [8, 0], sizes = [8, 32], strides = [1, 1]} : vector<32x32xf32> to vector<8x32xf32>
    %cst_120 = arith.constant dense<0.000000e+00> : vector<24x32xf32>
    %293 = tpu.matmul %291, %292, %cst_120 {dimension_numbers = #tpu.dot_dimension_numbers<[1], [0], [0], [1], [0, 0, 1, 1], [], []>} : vector<24x8xf32>, vector<8x32xf32>, vector<24x32xf32> -> vector<24x32xf32>
    %294 = arith.addf %272, %293 : vector<24x32xf32>
    %295 = vector.extract_strided_slice %249 {offsets = [0, 16], sizes = [24, 8], strides = [1, 1]} : vector<24x96xf32> to vector<24x8xf32>
    %296 = vector.extract_strided_slice %249 {offsets = [0, 48], sizes = [24, 8], strides = [1, 1]} : vector<24x96xf32> to vector<24x8xf32>
    %297 = vector.extract_strided_slice %249 {offsets = [0, 80], sizes = [24, 8], strides = [1, 1]} : vector<24x96xf32> to vector<24x8xf32>
    %cst_121 = arith.constant dense<0.000000e+00> : vector<24x24xf32>
    %298 = tpu.matmul %295, %296, %cst_121 {dimension_numbers = #tpu.dot_dimension_numbers<[1], [1], [0], [0], [0, 0, 1, 0], [], []>} : vector<24x8xf32>, vector<24x8xf32>, vector<24x24xf32> -> vector<24x24xf32>
    %cst_122 = arith.constant 0.353553385 : f32
    %299 = vector.broadcast %cst_122 : f32 to vector<24x24xf32>
    %300 = arith.mulf %298, %299 : vector<24x24xf32>
    %301 = vector.broadcast %29 : vector<1x24xf32> to vector<24x24xf32>
    %302 = arith.addf %300, %301 : vector<24x24xf32>
    %cst_123 = arith.constant dense<0xFF800000> : vector<24xf32>
    %303 = vector.multi_reduction <maximumf>, %302, %cst_123 [1] : vector<24x24xf32> to vector<24xf32>
    %304 = vector.shape_cast %303 : vector<24xf32> to vector<24x1xf32>
    %305 = vector.broadcast %304 : vector<24x1xf32> to vector<24x24xf32>
    %306 = arith.subf %302, %305 : vector<24x24xf32>
    %307 = math.exp %306 : vector<24x24xf32>
    %cst_124 = arith.constant dense<0.000000e+00> : vector<24xf32>
    %308 = vector.multi_reduction <add>, %307, %cst_124 [1] : vector<24x24xf32> to vector<24xf32>
    %309 = vector.shape_cast %308 : vector<24xf32> to vector<24x1xf32>
    %310 = tpu.reciprocal %309 {approx = true} : vector<24x1xf32> -> vector<24x1xf32>
    %311 = vector.broadcast %310 : vector<24x1xf32> to vector<24x24xf32>
    %312 = arith.mulf %307, %311 : vector<24x24xf32>
    %cst_125 = arith.constant dense<0.000000e+00> : vector<24x8xf32>
    %313 = tpu.matmul %312, %297, %cst_125 {dimension_numbers = #tpu.dot_dimension_numbers<[1], [0], [0], [1], [0, 0, 1, 1], [], []>} : vector<24x24xf32>, vector<24x8xf32>, vector<24x8xf32> -> vector<24x8xf32>
    %314 = vector.extract_strided_slice %36 {offsets = [16, 0], sizes = [8, 32], strides = [1, 1]} : vector<32x32xf32> to vector<8x32xf32>
    %cst_126 = arith.constant dense<0.000000e+00> : vector<24x32xf32>
    %315 = tpu.matmul %313, %314, %cst_126 {dimension_numbers = #tpu.dot_dimension_numbers<[1], [0], [0], [1], [0, 0, 1, 1], [], []>} : vector<24x8xf32>, vector<8x32xf32>, vector<24x32xf32> -> vector<24x32xf32>
    %316 = arith.addf %294, %315 : vector<24x32xf32>
    %317 = vector.extract_strided_slice %249 {offsets = [0, 24], sizes = [24, 8], strides = [1, 1]} : vector<24x96xf32> to vector<24x8xf32>
    %318 = vector.extract_strided_slice %249 {offsets = [0, 56], sizes = [24, 8], strides = [1, 1]} : vector<24x96xf32> to vector<24x8xf32>
    %319 = vector.extract_strided_slice %249 {offsets = [0, 88], sizes = [24, 8], strides = [1, 1]} : vector<24x96xf32> to vector<24x8xf32>
    %cst_127 = arith.constant dense<0.000000e+00> : vector<24x24xf32>
    %320 = tpu.matmul %317, %318, %cst_127 {dimension_numbers = #tpu.dot_dimension_numbers<[1], [1], [0], [0], [0, 0, 1, 0], [], []>} : vector<24x8xf32>, vector<24x8xf32>, vector<24x24xf32> -> vector<24x24xf32>
    %cst_128 = arith.constant 0.353553385 : f32
    %321 = vector.broadcast %cst_128 : f32 to vector<24x24xf32>
    %322 = arith.mulf %320, %321 : vector<24x24xf32>
    %323 = vector.broadcast %29 : vector<1x24xf32> to vector<24x24xf32>
    %324 = arith.addf %322, %323 : vector<24x24xf32>
    %cst_129 = arith.constant dense<0xFF800000> : vector<24xf32>
    %325 = vector.multi_reduction <maximumf>, %324, %cst_129 [1] : vector<24x24xf32> to vector<24xf32>
    %326 = vector.shape_cast %325 : vector<24xf32> to vector<24x1xf32>
    %327 = vector.broadcast %326 : vector<24x1xf32> to vector<24x24xf32>
    %328 = arith.subf %324, %327 : vector<24x24xf32>
    %329 = math.exp %328 : vector<24x24xf32>
    %cst_130 = arith.constant dense<0.000000e+00> : vector<24xf32>
    %330 = vector.multi_reduction <add>, %329, %cst_130 [1] : vector<24x24xf32> to vector<24xf32>
    %331 = vector.shape_cast %330 : vector<24xf32> to vector<24x1xf32>
    %332 = tpu.reciprocal %331 {approx = true} : vector<24x1xf32> -> vector<24x1xf32>
    %333 = vector.broadcast %332 : vector<24x1xf32> to vector<24x24xf32>
    %334 = arith.mulf %329, %333 : vector<24x24xf32>
    %cst_131 = arith.constant dense<0.000000e+00> : vector<24x8xf32>
    %335 = tpu.matmul %334, %319, %cst_131 {dimension_numbers = #tpu.dot_dimension_numbers<[1], [0], [0], [1], [0, 0, 1, 1], [], []>} : vector<24x24xf32>, vector<24x8xf32>, vector<24x8xf32> -> vector<24x8xf32>
    %336 = vector.extract_strided_slice %36 {offsets = [24, 0], sizes = [8, 32], strides = [1, 1]} : vector<32x32xf32> to vector<8x32xf32>
    %cst_132 = arith.constant dense<0.000000e+00> : vector<24x32xf32>
    %337 = tpu.matmul %335, %336, %cst_132 {dimension_numbers = #tpu.dot_dimension_numbers<[1], [0], [0], [1], [0, 0, 1, 1], [], []>} : vector<24x8xf32>, vector<8x32xf32>, vector<24x32xf32> -> vector<24x32xf32>
    %338 = arith.addf %316, %337 : vector<24x32xf32>
    %339 = arith.addf %225, %338 : vector<24x32xf32>
    %340 = vector.broadcast %37 : vector<1x32xf32> to vector<24x32xf32>
    %341 = arith.addf %339, %340 : vector<24x32xf32>
    %cst_133 = arith.constant dense<0.000000e+00> : vector<24xf32>
    %342 = vector.multi_reduction <add>, %341, %cst_133 [1] : vector<24x32xf32> to vector<24xf32>
    %343 = vector.shape_cast %342 : vector<24xf32> to vector<24x1xf32>
    %cst_134 = arith.constant 3.200000e+01 : f32
    %344 = vector.broadcast %cst_134 : f32 to vector<24x1xf32>
    %345 = arith.divf %343, %344 : vector<24x1xf32>
    %346 = vector.broadcast %345 : vector<24x1xf32> to vector<24x32xf32>
    %347 = arith.subf %341, %346 : vector<24x32xf32>
    %348 = arith.mulf %347, %347 : vector<24x32xf32>
    %cst_135 = arith.constant dense<0.000000e+00> : vector<24xf32>
    %349 = vector.multi_reduction <add>, %348, %cst_135 [1] : vector<24x32xf32> to vector<24xf32>
    %350 = vector.shape_cast %349 : vector<24xf32> to vector<24x1xf32>
    %cst_136 = arith.constant 0.0322580636 : f32
    %351 = vector.broadcast %cst_136 : f32 to vector<24x1xf32>
    %352 = arith.mulf %350, %351 : vector<24x1xf32>
    %353 = math.sqrt %352 : vector<24x1xf32>
    %cst_137 = arith.constant 9.99999997E-7 : f32
    %354 = vector.broadcast %cst_137 : f32 to vector<24x1xf32>
    %355 = arith.addf %353, %354 : vector<24x1xf32>
    %356 = tpu.reciprocal %355 {approx = true} : vector<24x1xf32> -> vector<24x1xf32>
    %357 = vector.broadcast %32 : vector<1x32xf32> to vector<24x32xf32>
    %358 = arith.mulf %357, %347 : vector<24x32xf32>
    %359 = vector.broadcast %356 : vector<24x1xf32> to vector<24x32xf32>
    %360 = arith.mulf %358, %359 : vector<24x32xf32>
    %361 = vector.broadcast %33 : vector<1x32xf32> to vector<24x32xf32>
    %362 = arith.addf %360, %361 : vector<24x32xf32>
    %cst_138 = arith.constant dense<0.000000e+00> : vector<24x128xf32>
    %363 = tpu.matmul %362, %38, %cst_138 {dimension_numbers = #tpu.dot_dimension_numbers<[1], [0], [0], [1], [0, 0, 1, 1], [], []>} : vector<24x32xf32>, vector<32x128xf32>, vector<24x128xf32> -> vector<24x128xf32>
    %364 = vector.broadcast %39 : vector<1x128xf32> to vector<24x128xf32>
    %365 = arith.addf %363, %364 : vector<24x128xf32>
    %cst_139 = arith.constant 5.000000e-01 : f32
    %366 = vector.broadcast %cst_139 : f32 to vector<24x128xf32>
    %367 = arith.mulf %366, %365 : vector<24x128xf32>
    %cst_140 = arith.constant 0.707106769 : f32
    %368 = vector.broadcast %cst_140 : f32 to vector<24x128xf32>
    %369 = arith.mulf %365, %368 : vector<24x128xf32>
    %370 = math.absf %369 : vector<24x128xf32>
    %cst_141 = arith.constant 0.327591091 : f32
    %371 = vector.broadcast %cst_141 : f32 to vector<24x128xf32>
    %372 = arith.mulf %371, %370 : vector<24x128xf32>
    %cst_142 = arith.constant 1.000000e+00 : f32
    %373 = vector.broadcast %cst_142 : f32 to vector<24x128xf32>
    %374 = arith.addf %373, %372 : vector<24x128xf32>
    %cst_143 = arith.constant 1.000000e+00 : f32
    %375 = vector.broadcast %cst_143 : f32 to vector<24x128xf32>
    %376 = arith.divf %375, %374 : vector<24x128xf32>
    %cst_144 = arith.constant 1.06140542 : f32
    %377 = vector.broadcast %cst_144 : f32 to vector<24x128xf32>
    %378 = arith.mulf %377, %376 : vector<24x128xf32>
    %cst_145 = arith.constant -1.45315206 : f32
    %379 = vector.broadcast %cst_145 : f32 to vector<24x128xf32>
    %380 = arith.addf %378, %379 : vector<24x128xf32>
    %381 = arith.mulf %380, %376 : vector<24x128xf32>
    %cst_146 = arith.constant 1.42141378 : f32
    %382 = vector.broadcast %cst_146 : f32 to vector<24x128xf32>
    %383 = arith.addf %381, %382 : vector<24x128xf32>
    %384 = arith.mulf %383, %376 : vector<24x128xf32>
    %cst_147 = arith.constant -0.284496725 : f32
    %385 = vector.broadcast %cst_147 : f32 to vector<24x128xf32>
    %386 = arith.addf %384, %385 : vector<24x128xf32>
    %387 = arith.mulf %386, %376 : vector<24x128xf32>
    %cst_148 = arith.constant 0.254829586 : f32
    %388 = vector.broadcast %cst_148 : f32 to vector<24x128xf32>
    %389 = arith.addf %387, %388 : vector<24x128xf32>
    %390 = arith.mulf %389, %376 : vector<24x128xf32>
    %cst_149 = arith.constant 0.000000e+00 : f32
    %391 = vector.broadcast %cst_149 : f32 to vector<24x128xf32>
    %392 = arith.subf %391, %370 : vector<24x128xf32>
    %393 = arith.mulf %392, %370 : vector<24x128xf32>
    %394 = math.exp %393 : vector<24x128xf32>
    %395 = arith.mulf %390, %394 : vector<24x128xf32>
    %cst_150 = arith.constant 1.000000e+00 : f32
    %396 = vector.broadcast %cst_150 : f32 to vector<24x128xf32>
    %397 = arith.subf %396, %395 : vector<24x128xf32>
    %cst_151 = arith.constant 0.000000e+00 : f32
    %398 = vector.broadcast %cst_151 : f32 to vector<24x128xf32>
    %399 = arith.cmpf oge, %369, %398 : vector<24x128xf32>
    %cst_152 = arith.constant 0.000000e+00 : f32
    %400 = vector.broadcast %cst_152 : f32 to vector<24x128xf32>
    %401 = arith.subf %400, %397 : vector<24x128xf32>
    %402 = arith.select %399, %397, %401 : vector<24x128xi1>, vector<24x128xf32>
    %cst_153 = arith.constant 1.000000e+00 : f32
    %403 = vector.broadcast %cst_153 : f32 to vector<24x128xf32>
    %404 = arith.addf %403, %402 : vector<24x128xf32>
    %405 = arith.mulf %367, %404 : vector<24x128xf32>
    %cst_154 = arith.constant dense<0.000000e+00> : vector<24x32xf32>
    %406 = tpu.matmul %405, %40, %cst_154 {dimension_numbers = #tpu.dot_dimension_numbers<[1], [0], [0], [1], [0, 0, 1, 1], [], []>} : vector<24x128xf32>, vector<128x32xf32>, vector<24x32xf32> -> vector<24x32xf32>
    %407 = arith.addf %341, %406 : vector<24x32xf32>
    %408 = vector.broadcast %41 : vector<1x32xf32> to vector<24x32xf32>
    %409 = arith.addf %407, %408 : vector<24x32xf32>
    %410 = vector.extract_strided_slice %409 {offsets = [0, 0], sizes = [1, 32], strides = [1, 1]} : vector<24x32xf32> to vector<1x32xf32>
    %c0_155 = arith.constant 0 : index
    %c0_156 = arith.constant 0 : index
    %411 = vector.load %arg20[%c0_155, %c0_156] : memref<1x32xf32, #tpu.memory_space<vmem>>, vector<1x32xf32>
    %c0_157 = arith.constant 0 : index
    %c0_158 = arith.constant 0 : index
    %412 = vector.load %arg21[%c0_157, %c0_158] : memref<1x32xf32, #tpu.memory_space<vmem>>, vector<1x32xf32>
    %cst_159 = arith.constant dense<0.000000e+00> : vector<1xf32>
    %413 = vector.multi_reduction <add>, %410, %cst_159 [1] : vector<1x32xf32> to vector<1xf32>
    %414 = vector.shape_cast %413 : vector<1xf32> to vector<1x1xf32>
    %cst_160 = arith.constant 3.200000e+01 : f32
    %415 = vector.broadcast %cst_160 : f32 to vector<1x1xf32>
    %416 = arith.divf %414, %415 : vector<1x1xf32>
    %417 = vector.broadcast %416 : vector<1x1xf32> to vector<1x32xf32>
    %418 = arith.subf %410, %417 : vector<1x32xf32>
    %419 = arith.mulf %418, %418 : vector<1x32xf32>
    %cst_161 = arith.constant dense<0.000000e+00> : vector<1xf32>
    %420 = vector.multi_reduction <add>, %419, %cst_161 [1] : vector<1x32xf32> to vector<1xf32>
    %421 = vector.shape_cast %420 : vector<1xf32> to vector<1x1xf32>
    %cst_162 = arith.constant 3.200000e+01 : f32
    %422 = vector.broadcast %cst_162 : f32 to vector<1x1xf32>
    %423 = arith.divf %421, %422 : vector<1x1xf32>
    %cst_163 = arith.constant 9.99999974E-6 : f32
    %424 = vector.broadcast %cst_163 : f32 to vector<1x1xf32>
    %425 = arith.addf %423, %424 : vector<1x1xf32>
    %426 = math.rsqrt %425 : vector<1x1xf32>
    %427 = vector.broadcast %426 : vector<1x1xf32> to vector<1x32xf32>
    %428 = arith.mulf %418, %427 : vector<1x32xf32>
    %429 = arith.mulf %428, %411 : vector<1x32xf32>
    %430 = arith.addf %429, %412 : vector<1x32xf32>
    %c0_164 = arith.constant 0 : index
    %c0_165 = arith.constant 0 : index
    %431 = vector.load %arg22[%c0_164, %c0_165] : memref<32x2xf32, #tpu.memory_space<vmem>>, vector<32x2xf32>
    %cst_166 = arith.constant dense<0.000000e+00> : vector<1x2xf32>
    %432 = tpu.matmul %430, %431, %cst_166 {dimension_numbers = #tpu.dot_dimension_numbers<[1], [0], [0], [1], [0, 0, 1, 1], [], []>} : vector<1x32xf32>, vector<32x2xf32>, vector<1x2xf32> -> vector<1x2xf32>
    %c0_167 = arith.constant 0 : index
    %c0_168 = arith.constant 0 : index
    %433 = vector.load %arg23[%c0_167, %c0_168] : memref<1x2xf32, #tpu.memory_space<vmem>>, vector<1x2xf32>
    %434 = arith.addf %432, %433 : vector<1x2xf32>
    %c0_169 = arith.constant 0 : index
    %c0_170 = arith.constant 0 : index
    %c0_171 = arith.constant 0 : index
    %435 = vector.load %arg24[%c0_169, %c0_170, %c0_171] : memref<1x1x2xf32, #tpu.memory_space<vmem>>, vector<1x1x2xf32>
    %436 = vector.shape_cast %435 : vector<1x1x2xf32> to vector<1x2xf32>
    %437 = vector.shape_cast %434 : vector<1x2xf32> to vector<1x1x2xf32>
    tpu.vector_store %arg24[%c0_169, %c0_170, %c0_171], %437 {strides = array<i32>} : memref<1x1x2xf32, #tpu.memory_space<vmem>>, vector<1x1x2xf32>,
    return
  }
  func.func @transform_0(%arg0: i32) -> (i32, i32) {
    %c0_i32 = arith.constant 0 : i32
    %c0_i32_0 = arith.constant 0 : i32
    return %arg0, %c0_i32 : i32, i32
  }
  func.func @transform_1(%arg0: i32) -> (i32, i32) {
    %c0_i32 = arith.constant 0 : i32
    %c0_i32_0 = arith.constant 0 : i32
    %c0_i32_1 = arith.constant 0 : i32
    return %c0_i32, %c0_i32_0 : i32, i32
  }
  func.func @transform_2(%arg0: i32) -> (i32, i32) {
    %c0_i32 = arith.constant 0 : i32
    %c0_i32_0 = arith.constant 0 : i32
    %c0_i32_1 = arith.constant 0 : i32
    return %c0_i32, %c0_i32_0 : i32, i32
  }
  func.func @transform_3(%arg0: i32) -> (i32, i32) {
    %c0_i32 = arith.constant 0 : i32
    %c0_i32_0 = arith.constant 0 : i32
    %c0_i32_1 = arith.constant 0 : i32
    return %c0_i32, %c0_i32_0 : i32, i32
  }
  func.func @transform_4(%arg0: i32) -> (i32, i32) {
    %c0_i32 = arith.constant 0 : i32
    %c0_i32_0 = arith.constant 0 : i32
    %c0_i32_1 = arith.constant 0 : i32
    return %c0_i32, %c0_i32_0 : i32, i32
  }
  func.func @transform_5(%arg0: i32) -> (i32, i32) {
    %c0_i32 = arith.constant 0 : i32
    %c0_i32_0 = arith.constant 0 : i32
    %c0_i32_1 = arith.constant 0 : i32
    return %c0_i32, %c0_i32_0 : i32, i32
  }
  func.func @transform_6(%arg0: i32) -> (i32, i32) {
    %c0_i32 = arith.constant 0 : i32
    %c0_i32_0 = arith.constant 0 : i32
    %c0_i32_1 = arith.constant 0 : i32
    return %c0_i32, %c0_i32_0 : i32, i32
  }
  func.func @transform_7(%arg0: i32) -> (i32, i32) {
    %c0_i32 = arith.constant 0 : i32
    %c0_i32_0 = arith.constant 0 : i32
    %c0_i32_1 = arith.constant 0 : i32
    return %c0_i32, %c0_i32_0 : i32, i32
  }
  func.func @transform_8(%arg0: i32) -> (i32, i32) {
    %c0_i32 = arith.constant 0 : i32
    %c0_i32_0 = arith.constant 0 : i32
    %c0_i32_1 = arith.constant 0 : i32
    return %c0_i32, %c0_i32_0 : i32, i32
  }
  func.func @transform_9(%arg0: i32) -> (i32, i32) {
    %c0_i32 = arith.constant 0 : i32
    %c0_i32_0 = arith.constant 0 : i32
    %c0_i32_1 = arith.constant 0 : i32
    return %c0_i32, %c0_i32_0 : i32, i32
  }
  func.func @transform_10(%arg0: i32) -> (i32, i32) {
    %c0_i32 = arith.constant 0 : i32
    %c0_i32_0 = arith.constant 0 : i32
    %c0_i32_1 = arith.constant 0 : i32
    return %c0_i32, %c0_i32_0 : i32, i32
  }
  func.func @transform_11(%arg0: i32) -> (i32, i32) {
    %c0_i32 = arith.constant 0 : i32
    %c0_i32_0 = arith.constant 0 : i32
    %c0_i32_1 = arith.constant 0 : i32
    return %c0_i32, %c0_i32_0 : i32, i32
  }
  func.func @transform_12(%arg0: i32) -> (i32, i32) {
    %c0_i32 = arith.constant 0 : i32
    %c0_i32_0 = arith.constant 0 : i32
    %c0_i32_1 = arith.constant 0 : i32
    return %c0_i32, %c0_i32_0 : i32, i32
  }
  func.func @transform_13(%arg0: i32) -> (i32, i32) {
    %c0_i32 = arith.constant 0 : i32
    %c0_i32_0 = arith.constant 0 : i32
    %c0_i32_1 = arith.constant 0 : i32
    return %c0_i32, %c0_i32_0 : i32, i32
  }
  func.func @transform_14(%arg0: i32) -> (i32, i32) {
    %c0_i32 = arith.constant 0 : i32
    %c0_i32_0 = arith.constant 0 : i32
    %c0_i32_1 = arith.constant 0 : i32
    return %c0_i32, %c0_i32_0 : i32, i32
  }
  func.func @transform_15(%arg0: i32) -> (i32, i32) {
    %c0_i32 = arith.constant 0 : i32
    %c0_i32_0 = arith.constant 0 : i32
    %c0_i32_1 = arith.constant 0 : i32
    return %c0_i32, %c0_i32_0 : i32, i32
  }
  func.func @transform_16(%arg0: i32) -> (i32, i32) {
    %c0_i32 = arith.constant 0 : i32
    %c0_i32_0 = arith.constant 0 : i32
    %c0_i32_1 = arith.constant 0 : i32
    return %c0_i32, %c0_i32_0 : i32, i32
  }
  func.func @transform_17(%arg0: i32) -> (i32, i32) {
    %c0_i32 = arith.constant 0 : i32
    %c0_i32_0 = arith.constant 0 : i32
    %c0_i32_1 = arith.constant 0 : i32
    return %c0_i32, %c0_i32_0 : i32, i32
  }
  func.func @transform_18(%arg0: i32) -> (i32, i32) {
    %c0_i32 = arith.constant 0 : i32
    %c0_i32_0 = arith.constant 0 : i32
    %c0_i32_1 = arith.constant 0 : i32
    return %c0_i32, %c0_i32_0 : i32, i32
  }
  func.func @transform_19(%arg0: i32) -> (i32, i32) {
    %c0_i32 = arith.constant 0 : i32
    %c0_i32_0 = arith.constant 0 : i32
    %c0_i32_1 = arith.constant 0 : i32
    return %c0_i32, %c0_i32_0 : i32, i32
  }
  func.func @transform_20(%arg0: i32) -> (i32, i32) {
    %c0_i32 = arith.constant 0 : i32
    %c0_i32_0 = arith.constant 0 : i32
    %c0_i32_1 = arith.constant 0 : i32
    return %c0_i32, %c0_i32_0 : i32, i32
  }
  func.func @transform_21(%arg0: i32) -> (i32, i32) {
    %c0_i32 = arith.constant 0 : i32
    %c0_i32_0 = arith.constant 0 : i32
    %c0_i32_1 = arith.constant 0 : i32
    return %c0_i32, %c0_i32_0 : i32, i32
  }
  func.func @transform_22(%arg0: i32) -> (i32, i32) {
    %c0_i32 = arith.constant 0 : i32
    %c0_i32_0 = arith.constant 0 : i32
    %c0_i32_1 = arith.constant 0 : i32
    return %c0_i32, %c0_i32_0 : i32, i32
  }
  func.func @transform_23(%arg0: i32) -> (i32, i32, i32) {
    %c0_i32 = arith.constant 0 : i32
    %c0_i32_0 = arith.constant 0 : i32
    %c0_i32_1 = arith.constant 0 : i32
    return %arg0, %c0_i32, %c0_i32_0 : i32, i32, i32
  }
}

</mosaic_0001>

<llo_original>
// kernel: vit_hybrid_forward.1
$region0: #{vit_hybrid_forward.1}
  #allocation0 [shape = 'u32[]', space=smem, size = 0x4, offset = 0x4, fixed_abs, tag = 'smem constant byte address 0x4 - core index']
  #allocation1 [shape = 'u32[72,128]{1,0:T(1,128)}', space=vmem, size = 0x9000, scoped, tag = 'internal scratch']
  #allocation2 [shape = 'f32[24,32]{1,0:T(8,128)}', space=vmem, size = 0x3000, scoped, tag = 'scratch operand']
  %s0 = inlined_call_operand.vmem [shape: f32[32,48], index: 0, kind: input, shape index: {}]
  %s1 = inlined_call_operand.vmem [shape: f32[48,8], index: 1, kind: input, shape index: {}]
  %s2 = inlined_call_operand.vmem [shape: f32[1,8], index: 2, kind: input, shape index: {}]
  %s3 = inlined_call_operand.vmem [shape: f32[8,32], index: 3, kind: input, shape index: {}]
  %s4 = inlined_call_operand.vmem [shape: f32[1,32], index: 4, kind: input, shape index: {}]
  %s5 = inlined_call_operand.vmem [shape: f32[1,32], index: 5, kind: input, shape index: {}]
  %s6 = inlined_call_operand.vmem [shape: f32[24,32], index: 6, kind: input, shape index: {}]
  %s7 = inlined_call_operand.vmem [shape: f32[1,32], index: 7, kind: input, shape index: {}]
  %s8 = inlined_call_operand.vmem [shape: f32[1,32], index: 8, kind: input, shape index: {}]
  %s9 = inlined_call_operand.vmem [shape: f32[32,96], index: 9, kind: input, shape index: {}]
  %s10 = inlined_call_operand.vmem [shape: f32[1,96], index: 10, kind: input, shape index: {}]
  %s11 = inlined_call_operand.vmem [shape: f32[32,32], index: 11, kind: input, shape index: {}]
  %s12 = inlined_call_operand.vmem [shape: f32[1,32], index: 12, kind: input, shape index: {}]
  %s13 = inlined_call_operand.vmem [shape: f32[1,32], index: 13, kind: input, shape index: {}]
  %s14 = inlined_call_operand.vmem [shape: f32[1,32], index: 14, kind: input, shape index: {}]
  %s15 = inlined_call_operand.vmem [shape: f32[32,128], index: 15, kind: input, shape index: {}]
  %s16 = inlined_call_operand.vmem [shape: f32[1,128], index: 16, kind: input, shape index: {}]
  %s17 = inlined_call_operand.vmem [shape: f32[128,32], index: 17, kind: input, shape index: {}]
  %s18 = inlined_call_operand.vmem [shape: f32[1,32], index: 18, kind: input, shape index: {}]
  %s19 = inlined_call_operand.vmem [shape: f32[1,32], index: 19, kind: input, shape index: {}]
  %s20 = inlined_call_operand.vmem [shape: f32[1,32], index: 20, kind: input, shape index: {}]
  %s21 = inlined_call_operand.vmem [shape: f32[32,2], index: 21, kind: input, shape index: {}]
  %s22 = inlined_call_operand.vmem [shape: f32[1,2], index: 22, kind: input, shape index: {}]
  %s23 = inlined_call_operand.hbm [shape: f32[2,1,2], index: 23, kind: output, shape index: {}]
  %s24 = sld [smem:[#allocation0]]
  $region125: #{vit_hybrid_forward.1} parent=0
    _
  %s26 = ssub.s32 1, %s24
  %s27 = scalar_select 0, %s26, %s24
  $region1: #{vit_hybrid_forward.1} parent=0
    #allocation3 [shape = 'u8[1024]{0}', space=vmem, size = 0x400, scoped, tag = 'output window, operand 0']
    #allocation4 [shape = 's32[2]{0}', space=sflag, size = 0x8, scoped, tag = 'scoped memory for vit_hybrid_forward.1']
    %28 = vsyncpa [#allocation4], 0
    %s29 = scalar_lea.sflag [#allocation4], 1
    %30 = vsyncpa %s29, 0
    loop: start=0, step=1, limit=4
    $region2: #{vit_hybrid_forward.1} parent=1 // loop_pre_header
      _
    $region3: #{vit_hybrid_forward.1} parent=1 // loop_header
      %s32 = sphi 0, %s36
      %p33 = scmp.ge.s32.totalorder %s32, 4
      %s42 = sphi 0, %s44
      %s45 = sphi 0, %s42
      %s46 = sphi 0, %s45
      %s62 = sphi 0, %s46
      %s66 = sphi 0, %s66
      %s68 = sphi 0, %s66
      %s69 = sphi 0, %s68
      %s83 = sphi 0, %s69
      %s87 = sphi 0, %s87
      %s89 = sphi 0, %s87
      %s90 = sphi 0, %s89
      %s104 = sphi 0, %s90
      %s108 = sphi 0, %s108
      %s110 = sphi 0, %s108
      %s111 = sphi 0, %s110
      %s125 = sphi 0, %s111
      %s129 = sphi 0, %s129
      %s131 = sphi 0, %s129
      %s132 = sphi 0, %s131
      %s146 = sphi 0, %s132
      %s150 = sphi 0, %s150
      %s152 = sphi 0, %s150
      %s153 = sphi 0, %s152
      %s167 = sphi 0, %s153
      %s171 = sphi 0, %s171
      %s173 = sphi 0, %s171
      %s174 = sphi 0, %s173
      %s188 = sphi 0, %s174
      %s192 = sphi 0, %s192
      %s194 = sphi 0, %s192
      %s195 = sphi 0, %s194
      %s209 = sphi 0, %s195
      %s213 = sphi 0, %s213
      %s215 = sphi 0, %s213
      %s216 = sphi 0, %s215
      %s230 = sphi 0, %s216
      %s234 = sphi 0, %s234
      %s236 = sphi 0, %s234
      %s237 = sphi 0, %s236
      %s251 = sphi 0, %s237
      %s255 = sphi 0, %s255
      %s257 = sphi 0, %s255
      %s258 = sphi 0, %s257
      %s272 = sphi 0, %s258
      %s276 = sphi 0, %s276
      %s278 = sphi 0, %s276
      %s279 = sphi 0, %s278
      %s293 = sphi 0, %s279
      %s297 = sphi 0, %s297
      %s299 = sphi 0, %s297
      %s300 = sphi 0, %s299
      %s314 = sphi 0, %s300
      %s318 = sphi 0, %s318
      %s320 = sphi 0, %s318
      %s321 = sphi 0, %s320
      %s335 = sphi 0, %s321
      %s339 = sphi 0, %s339
      %s341 = sphi 0, %s339
      %s342 = sphi 0, %s341
      %s356 = sphi 0, %s342
      %s360 = sphi 0, %s360
      %s362 = sphi 0, %s360
      %s363 = sphi 0, %s362
      %s377 = sphi 0, %s363
      %s381 = sphi 0, %s381
      %s383 = sphi 0, %s381
      %s384 = sphi 0, %s383
      %s398 = sphi 0, %s384
      %s402 = sphi 0, %s402
      %s404 = sphi 0, %s402
      %s405 = sphi 0, %s404
      %s419 = sphi 0, %s405
      %s423 = sphi 0, %s423
      %s425 = sphi 0, %s423
      %s426 = sphi 0, %s425
      %s440 = sphi 0, %s426
      %s444 = sphi 0, %s444
      %s446 = sphi 0, %s444
      %s447 = sphi 0, %s446
      %s461 = sphi 0, %s447
      %s465 = sphi 0, %s465
      %s467 = sphi 0, %s465
      %s468 = sphi 0, %s467
      %s482 = sphi 0, %s468
      %s486 = sphi 0, %s486
      %s488 = sphi 0, %s486
      %s489 = sphi 0, %s488
      %s503 = sphi 0, %s489
      %s507 = sphi 0, %s507
      %s509 = sphi 0, %s507
      %s510 = sphi 0, %s509
      %s524 = sphi 0, %s510
      %s530 = sphi 0, %s532
      %s533 = sphi 0, %s530
      %s534 = sphi 0, %s533
      %s550 = sphi 0, %s534
    $region4: #{vit_hybrid_forward.1} parent=1 // loop_header_branch
      %35 = sbr.rel (%p33) target = $region8
    $region5: #{vit_hybrid_forward.1} parent=1 // loop_body
      %s37 = ssub.s32 %s32, 1
      %s38 = ssub.s32 %s32, 2
      %s39 = sadd.s32 %s32, 1
      %s40 = ssub.s32 %s32, %s39
      %p41 = scmp.eq.s32.totalorder %s40, 0
      %s43 = sadd.s32 %s42, 1
      %s44 = scalar_select %p41, %s42, %s43
      %p47 = pneg %p41
      %p48 = scmp.eq.s32.totalorder %s32, 1
      %p49 = por %p47, %p48
      %p50 = scmp.ne.s32.totalorder %s42, %s45
      %p51 = scmp.eq.s32.totalorder %s32, 0
      %p52 = por %p50, %p51
      %p53 = scmp.ne.s32.totalorder %s42, %s45
      %p54 = scmp.eq.s32.totalorder %s37, 1
      %p55 = por %p53, %p54
      %p56 = scmp.ne.s32.totalorder %s45, %s46
      %p57 = scmp.eq.s32.totalorder %s37, 0
      %p58 = por %p56, %p57
      %p59 = scmp.ne.s32.totalorder %s45, %s46
      %p60 = scmp.eq.s32.totalorder %s38, 1
      %p61 = por %p59, %p60
      %p63 = scmp.ne.s32.totalorder %s46, %s62
      %p64 = scmp.eq.s32.totalorder %s38, 0
      %p65 = por %p63, %p64
      %s67 = sadd.s32 %s66, 1
      %p70 = scmp.eq.s32.totalorder %s32, 1
      %p71 = scmp.ne.s32.totalorder %s66, %s68
      %p72 = scmp.eq.s32.totalorder %s32, 0
      %p73 = por %p71, %p72
      %p74 = scmp.ne.s32.totalorder %s66, %s68
      %p75 = scmp.eq.s32.totalorder %s37, 1
      %p76 = por %p74, %p75
      %p77 = scmp.ne.s32.totalorder %s68, %s69
      %p78 = scmp.eq.s32.totalorder %s37, 0
      %p79 = por %p77, %p78
      %p80 = scmp.ne.s32.totalorder %s68, %s69
      %p81 = scmp.eq.s32.totalorder %s38, 1
      %p82 = por %p80, %p81
      %p84 = scmp.ne.s32.totalorder %s69, %s83
      %p85 = scmp.eq.s32.totalorder %s38, 0
      %p86 = por %p84, %p85
      %s88 = sadd.s32 %s87, 1
      %p91 = scmp.eq.s32.totalorder %s32, 1
      %p92 = scmp.ne.s32.totalorder %s87, %s89
      %p93 = scmp.eq.s32.totalorder %s32, 0
      %p94 = por %p92, %p93
      %p95 = scmp.ne.s32.totalorder %s87, %s89
      %p96 = scmp.eq.s32.totalorder %s37, 1
      %p97 = por %p95, %p96
      %p98 = scmp.ne.s32.totalorder %s89, %s90
      %p99 = scmp.eq.s32.totalorder %s37, 0
      %p100 = por %p98, %p99
      %p101 = scmp.ne.s32.totalorder %s89, %s90
      %p102 = scmp.eq.s32.totalorder %s38, 1
      %p103 = por %p101, %p102
      %p105 = scmp.ne.s32.totalorder %s90, %s104
      %p106 = scmp.eq.s32.totalorder %s38, 0
      %p107 = por %p105, %p106
      %s109 = sadd.s32 %s108, 1
      %p112 = scmp.eq.s32.totalorder %s32, 1
      %p113 = scmp.ne.s32.totalorder %s108, %s110
      %p114 = scmp.eq.s32.totalorder %s32, 0
      %p115 = por %p113, %p114
      %p116 = scmp.ne.s32.totalorder %s108, %s110
      %p117 = scmp.eq.s32.totalorder %s37, 1
      %p118 = por %p116, %p117
      %p119 = scmp.ne.s32.totalorder %s110, %s111
      %p120 = scmp.eq.s32.totalorder %s37, 0
      %p121 = por %p119, %p120
      %p122 = scmp.ne.s32.totalorder %s110, %s111
      %p123 = scmp.eq.s32.totalorder %s38, 1
      %p124 = por %p122, %p123
      %p126 = scmp.ne.s32.totalorder %s111, %s125
      %p127 = scmp.eq.s32.totalorder %s38, 0
      %p128 = por %p126, %p127
      %s130 = sadd.s32 %s129, 1
      %p133 = scmp.eq.s32.totalorder %s32, 1
      %p134 = scmp.ne.s32.totalorder %s129, %s131
      %p135 = scmp.eq.s32.totalorder %s32, 0
      %p136 = por %p134, %p135
      %p137 = scmp.ne.s32.totalorder %s129, %s131
      %p138 = scmp.eq.s32.totalorder %s37, 1
      %p139 = por %p137, %p138
      %p140 = scmp.ne.s32.totalorder %s131, %s132
      %p141 = scmp.eq.s32.totalorder %s37, 0
      %p142 = por %p140, %p141
      %p143 = scmp.ne.s32.totalorder %s131, %s132
      %p144 = scmp.eq.s32.totalorder %s38, 1
      %p145 = por %p143, %p144
      %p147 = scmp.ne.s32.totalorder %s132, %s146
      %p148 = scmp.eq.s32.totalorder %s38, 0
      %p149 = por %p147, %p148
      %s151 = sadd.s32 %s150, 1
      %p154 = scmp.eq.s32.totalorder %s32, 1
      %p155 = scmp.ne.s32.totalorder %s150, %s152
      %p156 = scmp.eq.s32.totalorder %s32, 0
      %p157 = por %p155, %p156
      %p158 = scmp.ne.s32.totalorder %s150, %s152
      %p159 = scmp.eq.s32.totalorder %s37, 1
      %p160 = por %p158, %p159
      %p161 = scmp.ne.s32.totalorder %s152, %s153
      %p162 = scmp.eq.s32.totalorder %s37, 0
      %p163 = por %p161, %p162
      %p164 = scmp.ne.s32.totalorder %s152, %s153
      %p165 = scmp.eq.s32.totalorder %s38, 1
      %p166 = por %p164, %p165
      %p168 = scmp.ne.s32.totalorder %s153, %s167
      %p169 = scmp.eq.s32.totalorder %s38, 0
      %p170 = por %p168, %p169
      %s172 = sadd.s32 %s171, 1
      %p175 = scmp.eq.s32.totalorder %s32, 1
      %p176 = scmp.ne.s32.totalorder %s171, %s173
      %p177 = scmp.eq.s32.totalorder %s32, 0
      %p178 = por %p176, %p177
      %p179 = scmp.ne.s32.totalorder %s171, %s173
      %p180 = scmp.eq.s32.totalorder %s37, 1
      %p181 = por %p179, %p180
      %p182 = scmp.ne.s32.totalorder %s173, %s174
      %p183 = scmp.eq.s32.totalorder %s37, 0
      %p184 = por %p182, %p183
      %p185 = scmp.ne.s32.totalorder %s173, %s174
      %p186 = scmp.eq.s32.totalorder %s38, 1
      %p187 = por %p185, %p186
      %p189 = scmp.ne.s32.totalorder %s174, %s188
      %p190 = scmp.eq.s32.totalorder %s38, 0
      %p191 = por %p189, %p190
      %s193 = sadd.s32 %s192, 1
      %p196 = scmp.eq.s32.totalorder %s32, 1
      %p197 = scmp.ne.s32.totalorder %s192, %s194
      %p198 = scmp.eq.s32.totalorder %s32, 0
      %p199 = por %p197, %p198
      %p200 = scmp.ne.s32.totalorder %s192, %s194
      %p201 = scmp.eq.s32.totalorder %s37, 1
      %p202 = por %p200, %p201
      %p203 = scmp.ne.s32.totalorder %s194, %s195
      %p204 = scmp.eq.s32.totalorder %s37, 0
      %p205 = por %p203, %p204
      %p206 = scmp.ne.s32.totalorder %s194, %s195
      %p207 = scmp.eq.s32.totalorder %s38, 1
      %p208 = por %p206, %p207
      %p210 = scmp.ne.s32.totalorder %s195, %s209
      %p211 = scmp.eq.s32.totalorder %s38, 0
      %p212 = por %p210, %p211
      %s214 = sadd.s32 %s213, 1
      %p217 = scmp.eq.s32.totalorder %s32, 1
      %p218 = scmp.ne.s32.totalorder %s213, %s215
      %p219 = scmp.eq.s32.totalorder %s32, 0
      %p220 = por %p218, %p219
      %p221 = scmp.ne.s32.totalorder %s213, %s215
      %p222 = scmp.eq.s32.totalorder %s37, 1
      %p223 = por %p221, %p222
      %p224 = scmp.ne.s32.totalorder %s215, %s216
      %p225 = scmp.eq.s32.totalorder %s37, 0
      %p226 = por %p224, %p225
      %p227 = scmp.ne.s32.totalorder %s215, %s216
      %p228 = scmp.eq.s32.totalorder %s38, 1
      %p229 = por %p227, %p228
      %p231 = scmp.ne.s32.totalorder %s216, %s230
      %p232 = scmp.eq.s32.totalorder %s38, 0
      %p233 = por %p231, %p232
      %s235 = sadd.s32 %s234, 1
      %p238 = scmp.eq.s32.totalorder %s32, 1
      %p239 = scmp.ne.s32.totalorder %s234, %s236
      %p240 = scmp.eq.s32.totalorder %s32, 0
      %p241 = por %p239, %p240
      %p242 = scmp.ne.s32.totalorder %s234, %s236
      %p243 = scmp.eq.s32.totalorder %s37, 1
      %p244 = por %p242, %p243
      %p245 = scmp.ne.s32.totalorder %s236, %s237
      %p246 = scmp.eq.s32.totalorder %s37, 0
      %p247 = por %p245, %p246
      %p248 = scmp.ne.s32.totalorder %s236, %s237
      %p249 = scmp.eq.s32.totalorder %s38, 1
      %p250 = por %p248, %p249
      %p252 = scmp.ne.s32.totalorder %s237, %s251
      %p253 = scmp.eq.s32.totalorder %s38, 0
      %p254 = por %p252, %p253
      %s256 = sadd.s32 %s255, 1
      %p259 = scmp.eq.s32.totalorder %s32, 1
      %p260 = scmp.ne.s32.totalorder %s255, %s257
      %p261 = scmp.eq.s32.totalorder %s32, 0
      %p262 = por %p260, %p261
      %p263 = scmp.ne.s32.totalorder %s255, %s257
      %p264 = scmp.eq.s32.totalorder %s37, 1
      %p265 = por %p263, %p264
      %p266 = scmp.ne.s32.totalorder %s257, %s258
      %p267 = scmp.eq.s32.totalorder %s37, 0
      %p268 = por %p266, %p267
      %p269 = scmp.ne.s32.totalorder %s257, %s258
      %p270 = scmp.eq.s32.totalorder %s38, 1
      %p271 = por %p269, %p270
      %p273 = scmp.ne.s32.totalorder %s258, %s272
      %p274 = scmp.eq.s32.totalorder %s38, 0
      %p275 = por %p273, %p274
      %s277 = sadd.s32 %s276, 1
      %p280 = scmp.eq.s32.totalorder %s32, 1
      %p281 = scmp.ne.s32.totalorder %s276, %s278
      %p282 = scmp.eq.s32.totalorder %s32, 0
      %p283 = por %p281, %p282
      %p284 = scmp.ne.s32.totalorder %s276, %s278
      %p285 = scmp.eq.s32.totalorder %s37, 1
      %p286 = por %p284, %p285
      %p287 = scmp.ne.s32.totalorder %s278, %s279
      %p288 = scmp.eq.s32.totalorder %s37, 0
      %p289 = por %p287, %p288
      %p290 = scmp.ne.s32.totalorder %s278, %s279
      %p291 = scmp.eq.s32.totalorder %s38, 1
      %p292 = por %p290, %p291
      %p294 = scmp.ne.s32.totalorder %s279, %s293
      %p295 = scmp.eq.s32.totalorder %s38, 0
      %p296 = por %p294, %p295
      %s298 = sadd.s32 %s297, 1
      %p301 = scmp.eq.s32.totalorder %s32, 1
      %p302 = scmp.ne.s32.totalorder %s297, %s299
      %p303 = scmp.eq.s32.totalorder %s32, 0
      %p304 = por %p302, %p303
      %p305 = scmp.ne.s32.totalorder %s297, %s299
      %p306 = scmp.eq.s32.totalorder %s37, 1
      %p307 = por %p305, %p306
      %p308 = scmp.ne.s32.totalorder %s299, %s300
      %p309 = scmp.eq.s32.totalorder %s37, 0
      %p310 = por %p308, %p309
      %p311 = scmp.ne.s32.totalorder %s299, %s300
      %p312 = scmp.eq.s32.totalorder %s38, 1
      %p313 = por %p311, %p312
      %p315 = scmp.ne.s32.totalorder %s300, %s314
      %p316 = scmp.eq.s32.totalorder %s38, 0
      %p317 = por %p315, %p316
      %s319 = sadd.s32 %s318, 1
      %p322 = scmp.eq.s32.totalorder %s32, 1
      %p323 = scmp.ne.s32.totalorder %s318, %s320
      %p324 = scmp.eq.s32.totalorder %s32, 0
      %p325 = por %p323, %p324
      %p326 = scmp.ne.s32.totalorder %s318, %s320
      %p327 = scmp.eq.s32.totalorder %s37, 1
      %p328 = por %p326, %p327
      %p329 = scmp.ne.s32.totalorder %s320, %s321
      %p330 = scmp.eq.s32.totalorder %s37, 0
      %p331 = por %p329, %p330
      %p332 = scmp.ne.s32.totalorder %s320, %s321
      %p333 = scmp.eq.s32.totalorder %s38, 1
      %p334 = por %p332, %p333
      %p336 = scmp.ne.s32.totalorder %s321, %s335
      %p337 = scmp.eq.s32.totalorder %s38, 0
      %p338 = por %p336, %p337
      %s340 = sadd.s32 %s339, 1
      %p343 = scmp.eq.s32.totalorder %s32, 1
      %p344 = scmp.ne.s32.totalorder %s339, %s341
      %p345 = scmp.eq.s32.totalorder %s32, 0
      %p346 = por %p344, %p345
      %p347 = scmp.ne.s32.totalorder %s339, %s341
      %p348 = scmp.eq.s32.totalorder %s37, 1
      %p349 = por %p347, %p348
      %p350 = scmp.ne.s32.totalorder %s341, %s342
      %p351 = scmp.eq.s32.totalorder %s37, 0
      %p352 = por %p350, %p351
      %p353 = scmp.ne.s32.totalorder %s341, %s342
      %p354 = scmp.eq.s32.totalorder %s38, 1
      %p355 = por %p353, %p354
      %p357 = scmp.ne.s32.totalorder %s342, %s356
      %p358 = scmp.eq.s32.totalorder %s38, 0
      %p359 = por %p357, %p358
      %s361 = sadd.s32 %s360, 1
      %p364 = scmp.eq.s32.totalorder %s32, 1
      %p365 = scmp.ne.s32.totalorder %s360, %s362
      %p366 = scmp.eq.s32.totalorder %s32, 0
      %p367 = por %p365, %p366
      %p368 = scmp.ne.s32.totalorder %s360, %s362
      %p369 = scmp.eq.s32.totalorder %s37, 1
      %p370 = por %p368, %p369
      %p371 = scmp.ne.s32.totalorder %s362, %s363
      %p372 = scmp.eq.s32.totalorder %s37, 0
      %p373 = por %p371, %p372
      %p374 = scmp.ne.s32.totalorder %s362, %s363
      %p375 = scmp.eq.s32.totalorder %s38, 1
      %p376 = por %p374, %p375
      %p378 = scmp.ne.s32.totalorder %s363, %s377
      %p379 = scmp.eq.s32.totalorder %s38, 0
      %p380 = por %p378, %p379
      %s382 = sadd.s32 %s381, 1
      %p385 = scmp.eq.s32.totalorder %s32, 1
      %p386 = scmp.ne.s32.totalorder %s381, %s383
      %p387 = scmp.eq.s32.totalorder %s32, 0
      %p388 = por %p386, %p387
      %p389 = scmp.ne.s32.totalorder %s381, %s383
      %p390 = scmp.eq.s32.totalorder %s37, 1
      %p391 = por %p389, %p390
      %p392 = scmp.ne.s32.totalorder %s383, %s384
      %p393 = scmp.eq.s32.totalorder %s37, 0
      %p394 = por %p392, %p393
      %p395 = scmp.ne.s32.totalorder %s383, %s384
      %p396 = scmp.eq.s32.totalorder %s38, 1
      %p397 = por %p395, %p396
      %p399 = scmp.ne.s32.totalorder %s384, %s398
      %p400 = scmp.eq.s32.totalorder %s38, 0
      %p401 = por %p399, %p400
      %s403 = sadd.s32 %s402, 1
      %p406 = scmp.eq.s32.totalorder %s32, 1
      %p407 = scmp.ne.s32.totalorder %s402, %s404
      %p408 = scmp.eq.s32.totalorder %s32, 0
      %p409 = por %p407, %p408
      %p410 = scmp.ne.s32.totalorder %s402, %s404
      %p411 = scmp.eq.s32.totalorder %s37, 1
      %p412 = por %p410, %p411
      %p413 = scmp.ne.s32.totalorder %s404, %s405
      %p414 = scmp.eq.s32.totalorder %s37, 0
      %p415 = por %p413, %p414
      %p416 = scmp.ne.s32.totalorder %s404, %s405
      %p417 = scmp.eq.s32.totalorder %s38, 1
      %p418 = por %p416, %p417
      %p420 = scmp.ne.s32.totalorder %s405, %s419
      %p421 = scmp.eq.s32.totalorder %s38, 0
      %p422 = por %p420, %p421
      %s424 = sadd.s32 %s423, 1
      %p427 = scmp.eq.s32.totalorder %s32, 1
      %p428 = scmp.ne.s32.totalorder %s423, %s425
      %p429 = scmp.eq.s32.totalorder %s32, 0
      %p430 = por %p428, %p429
      %p431 = scmp.ne.s32.totalorder %s423, %s425
      %p432 = scmp.eq.s32.totalorder %s37, 1
      %p433 = por %p431, %p432
      %p434 = scmp.ne.s32.totalorder %s425, %s426
      %p435 = scmp.eq.s32.totalorder %s37, 0
      %p436 = por %p434, %p435
      %p437 = scmp.ne.s32.totalorder %s425, %s426
      %p438 = scmp.eq.s32.totalorder %s38, 1
      %p439 = por %p437, %p438
      %p441 = scmp.ne.s32.totalorder %s426, %s440
      %p442 = scmp.eq.s32.totalorder %s38, 0
      %p443 = por %p441, %p442
      %s445 = sadd.s32 %s444, 1
      %p448 = scmp.eq.s32.totalorder %s32, 1
      %p449 = scmp.ne.s32.totalorder %s444, %s446
      %p450 = scmp.eq.s32.totalorder %s32, 0
      %p451 = por %p449, %p450
      %p452 = scmp.ne.s32.totalorder %s444, %s446
      %p453 = scmp.eq.s32.totalorder %s37, 1
      %p454 = por %p452, %p453
      %p455 = scmp.ne.s32.totalorder %s446, %s447
      %p456 = scmp.eq.s32.totalorder %s37, 0
      %p457 = por %p455, %p456
      %p458 = scmp.ne.s32.totalorder %s446, %s447
      %p459 = scmp.eq.s32.totalorder %s38, 1
      %p460 = por %p458, %p459
      %p462 = scmp.ne.s32.totalorder %s447, %s461
      %p463 = scmp.eq.s32.totalorder %s38, 0
      %p464 = por %p462, %p463
      %s466 = sadd.s32 %s465, 1
      %p469 = scmp.eq.s32.totalorder %s32, 1
      %p470 = scmp.ne.s32.totalorder %s465, %s467
      %p471 = scmp.eq.s32.totalorder %s32, 0
      %p472 = por %p470, %p471
      %p473 = scmp.ne.s32.totalorder %s465, %s467
      %p474 = scmp.eq.s32.totalorder %s37, 1
      %p475 = por %p473, %p474
      %p476 = scmp.ne.s32.totalorder %s467, %s468
      %p477 = scmp.eq.s32.totalorder %s37, 0
      %p478 = por %p476, %p477
      %p479 = scmp.ne.s32.totalorder %s467, %s468
      %p480 = scmp.eq.s32.totalorder %s38, 1
      %p481 = por %p479, %p480
      %p483 = scmp.ne.s32.totalorder %s468, %s482
      %p484 = scmp.eq.s32.totalorder %s38, 0
      %p485 = por %p483, %p484
      %s487 = sadd.s32 %s486, 1
      %p490 = scmp.eq.s32.totalorder %s32, 1
      %p491 = scmp.ne.s32.totalorder %s486, %s488
      %p492 = scmp.eq.s32.totalorder %s32, 0
      %p493 = por %p491, %p492
      %p494 = scmp.ne.s32.totalorder %s486, %s488
      %p495 = scmp.eq.s32.totalorder %s37, 1
      %p496 = por %p494, %p495
      %p497 = scmp.ne.s32.totalorder %s488, %s489
      %p498 = scmp.eq.s32.totalorder %s37, 0
      %p499 = por %p497, %p498
      %p500 = scmp.ne.s32.totalorder %s488, %s489
      %p501 = scmp.eq.s32.totalorder %s38, 1
      %p502 = por %p500, %p501
      %p504 = scmp.ne.s32.totalorder %s489, %s503
      %p505 = scmp.eq.s32.totalorder %s38, 0
      %p506 = por %p504, %p505
      %s508 = sadd.s32 %s507, 1
      %p511 = scmp.eq.s32.totalorder %s32, 1
      %p512 = scmp.ne.s32.totalorder %s507, %s509
      %p513 = scmp.eq.s32.totalorder %s32, 0
      %p514 = por %p512, %p513
      %p515 = scmp.ne.s32.totalorder %s507, %s509
      %p516 = scmp.eq.s32.totalorder %s37, 1
      %p517 = por %p515, %p516
      %p518 = scmp.ne.s32.totalorder %s509, %s510
      %p519 = scmp.eq.s32.totalorder %s37, 0
      %p520 = por %p518, %p519
      %p521 = scmp.ne.s32.totalorder %s509, %s510
      %p522 = scmp.eq.s32.totalorder %s38, 1
      %p523 = por %p521, %p522
      %p525 = scmp.ne.s32.totalorder %s510, %s524
      %p526 = scmp.eq.s32.totalorder %s38, 0
      %p527 = por %p525, %p526
      %s528 = ssub.s32 %s32, %s39
      %p529 = scmp.eq.s32.totalorder %s528, 0
      %s531 = sadd.s32 %s530, 1
      %s532 = scalar_select %p529, %s530, %s531
      %p535 = pneg %p529
      %p536 = scmp.eq.s32.totalorder %s32, 1
      %p537 = por %p535, %p536
      %p538 = scmp.ne.s32.totalorder %s530, %s533
      %p539 = scmp.eq.s32.totalorder %s32, 0
      %p540 = por %p538, %p539
      %p541 = scmp.ne.s32.totalorder %s530, %s533
      %p542 = scmp.eq.s32.totalorder %s37, 1
      %p543 = por %p541, %p542
      %p544 = scmp.ne.s32.totalorder %s533, %s534
      %p545 = scmp.eq.s32.totalorder %s37, 0
      %p546 = por %p544, %p545
      %p547 = scmp.ne.s32.totalorder %s533, %s534
      %p548 = scmp.eq.s32.totalorder %s38, 1
      %p549 = por %p547, %p548
      %p551 = scmp.ne.s32.totalorder %s534, %s550
      %p552 = scmp.eq.s32.totalorder %s38, 0
      %p553 = por %p551, %p552
      %p554 = scmp.le.s32.totalorder 1, %s32
      %p555 = scmp.lt.s32.totalorder %s32, 3
      %p556 = pnand %p554, %p555
      %p557 = pneg %p556
      // Predicated region
      $region9: #{vit_hybrid_forward.1} parent=5 // pred_check
        _
      $region10: #{vit_hybrid_forward.1} parent=5 // pred_check_branch
        %559 = sbr.rel (%p556) target = $region12
      $region11: #{vit_hybrid_forward.1} parent=5 // pred_region
        %s560 = ssub.s32 %s32, 1
        // Predicated region
        $region13: #{vit_hybrid_forward.1} parent=11 // pred_check
          %p561 = pneg %p79
        $region14: #{vit_hybrid_forward.1} parent=11 // pred_check_branch
          %563 = sbr.rel (%p561) target = $region16
        $region15: #{vit_hybrid_forward.1} parent=11 // pred_region
          _
        $region16: #{vit_hybrid_forward.1} parent=11 // pred_fallthru
          _
        // Predicated region
        $region17: #{vit_hybrid_forward.1} parent=11 // pred_check
          %p564 = pneg %p100
        $region18: #{vit_hybrid_forward.1} parent=11 // pred_check_branch
          %566 = sbr.rel (%p564) target = $region20
        $region19: #{vit_hybrid_forward.1} parent=11 // pred_region
          _
        $region20: #{vit_hybrid_forward.1} parent=11 // pred_fallthru
          _
        // Predicated region
        $region21: #{vit_hybrid_forward.1} parent=11 // pred_check
          %p567 = pneg %p121
        $region22: #{vit_hybrid_forward.1} parent=11 // pred_check_branch
          %569 = sbr.rel (%p567) target = $region24
        $region23: #{vit_hybrid_forward.1} parent=11 // pred_region
          _
        $region24: #{vit_hybrid_forward.1} parent=11 // pred_fallthru
          _
        // Predicated region
        $region25: #{vit_hybrid_forward.1} parent=11 // pred_check
          %p570 = pneg %p142
        $region26: #{vit_hybrid_forward.1} parent=11 // pred_check_branch
          %572 = sbr.rel (%p570) target = $region28
        $region27: #{vit_hybrid_forward.1} parent=11 // pred_region
          _
        $region28: #{vit_hybrid_forward.1} parent=11 // pred_fallthru
          _
        // Predicated region
        $region29: #{vit_hybrid_forward.1} parent=11 // pred_check
          %p573 = pneg %p163
        $region30: #{vit_hybrid_forward.1} parent=11 // pred_check_branch
          %575 = sbr.rel (%p573) target = $region32
        $region31: #{vit_hybrid_forward.1} parent=11 // pred_region
          _
        $region32: #{vit_hybrid_forward.1} parent=11 // pred_fallthru
          _
        // Predicated region
        $region33: #{vit_hybrid_forward.1} parent=11 // pred_check
          %p576 = pneg %p184
        $region34: #{vit_hybrid_forward.1} parent=11 // pred_check_branch
          %578 = sbr.rel (%p576) target = $region36
        $region35: #{vit_hybrid_forward.1} parent=11 // pred_region
          _
        $region36: #{vit_hybrid_forward.1} parent=11 // pred_fallthru
          _
        // Predicated region
        $region37: #{vit_hybrid_forward.1} parent=11 // pred_check
          %p579 = pneg %p205
        $region38: #{vit_hybrid_forward.1} parent=11 // pred_check_branch
          %581 = sbr.rel (%p579) target = $region40
        $region39: #{vit_hybrid_forward.1} parent=11 // pred_region
          _
        $region40: #{vit_hybrid_forward.1} parent=11 // pred_fallthru
          _
        // Predicated region
        $region41: #{vit_hybrid_forward.1} parent=11 // pred_check
          %p582 = pneg %p226
        $region42: #{vit_hybrid_forward.1} parent=11 // pred_check_branch
          %584 = sbr.rel (%p582) target = $region44
        $region43: #{vit_hybrid_forward.1} parent=11 // pred_region
          _
        $region44: #{vit_hybrid_forward.1} parent=11 // pred_fallthru
          _
        // Predicated region
        $region45: #{vit_hybrid_forward.1} parent=11 // pred_check
          %p585 = pneg %p247
        $region46: #{vit_hybrid_forward.1} parent=11 // pred_check_branch
          %587 = sbr.rel (%p585) target = $region48
        $region47: #{vit_hybrid_forward.1} parent=11 // pred_region
          _
        $region48: #{vit_hybrid_forward.1} parent=11 // pred_fallthru
          _
        // Predicated region
        $region49: #{vit_hybrid_forward.1} parent=11 // pred_check
          %p588 = pneg %p268
        $region50: #{vit_hybrid_forward.1} parent=11 // pred_check_branch
          %590 = sbr.rel (%p588) target = $region52
        $region51: #{vit_hybrid_forward.1} parent=11 // pred_region
          _
        $region52: #{vit_hybrid_forward.1} parent=11 // pred_fallthru
          _
        // Predicated region
        $region53: #{vit_hybrid_forward.1} parent=11 // pred_check
          %p591 = pneg %p289
        $region54: #{vit_hybrid_forward.1} parent=11 // pred_check_branch
          %593 = sbr.rel (%p591) target = $region56
        $region55: #{vit_hybrid_forward.1} parent=11 // pred_region
          _
        $region56: #{vit_hybrid_forward.1} parent=11 // pred_fallthru
          _
        // Predicated region
        $region57: #{vit_hybrid_forward.1} parent=11 // pred_check
          %p594 = pneg %p310
        $region58: #{vit_hybrid_forward.1} parent=11 // pred_check_branch
          %596 = sbr.rel (%p594) target = $region60
        $region59: #{vit_hybrid_forward.1} parent=11 // pred_region
          _
        $region60: #{vit_hybrid_forward.1} parent=11 // pred_fallthru
          _
        // Predicated region
        $region61: #{vit_hybrid_forward.1} parent=11 // pred_check
          %p597 = pneg %p331
        $region62: #{vit_hybrid_forward.1} parent=11 // pred_check_branch
          %599 = sbr.rel (%p597) target = $region64
        $region63: #{vit_hybrid_forward.1} parent=11 // pred_region
          _
        $region64: #{vit_hybrid_forward.1} parent=11 // pred_fallthru
          _
        // Predicated region
        $region65: #{vit_hybrid_forward.1} parent=11 // pred_check
          %p600 = pneg %p352
        $region66: #{vit_hybrid_forward.1} parent=11 // pred_check_branch
          %602 = sbr.rel (%p600) target = $region68
        $region67: #{vit_hybrid_forward.1} parent=11 // pred_region
          _
        $region68: #{vit_hybrid_forward.1} parent=11 // pred_fallthru
          _
        // Predicated region
        $region69: #{vit_hybrid_forward.1} parent=11 // pred_check
          %p603 = pneg %p373
        $region70: #{vit_hybrid_forward.1} parent=11 // pred_check_branch
          %605 = sbr.rel (%p603) target = $region72
        $region71: #{vit_hybrid_forward.1} parent=11 // pred_region
          _
        $region72: #{vit_hybrid_forward.1} parent=11 // pred_fallthru
          _
        // Predicated region
        $region73: #{vit_hybrid_forward.1} parent=11 // pred_check
          %p606 = pneg %p394
        $region74: #{vit_hybrid_forward.1} parent=11 // pred_check_branch
          %608 = sbr.rel (%p606) target = $region76
        $region75: #{vit_hybrid_forward.1} parent=11 // pred_region
          _
        $region76: #{vit_hybrid_forward.1} parent=11 // pred_fallthru
          _
        // Predicated region
        $region77: #{vit_hybrid_forward.1} parent=11 // pred_check
          %p609 = pneg %p415
        $region78: #{vit_hybrid_forward.1} parent=11 // pred_check_branch
          %611 = sbr.rel (%p609) target = $region80
        $region79: #{vit_hybrid_forward.1} parent=11 // pred_region
          _
        $region80: #{vit_hybrid_forward.1} parent=11 // pred_fallthru
          _
        // Predicated region
        $region81: #{vit_hybrid_forward.1} parent=11 // pred_check
          %p612 = pneg %p436
        $region82: #{vit_hybrid_forward.1} parent=11 // pred_check_branch
          %614 = sbr.rel (%p612) target = $region84
        $region83: #{vit_hybrid_forward.1} parent=11 // pred_region
          _
        $region84: #{vit_hybrid_forward.1} parent=11 // pred_fallthru
          _
        // Predicated region
        $region85: #{vit_hybrid_forward.1} parent=11 // pred_check
          %p615 = pneg %p457
        $region86: #{vit_hybrid_forward.1} parent=11 // pred_check_branch
          %617 = sbr.rel (%p615) target = $region88
        $region87: #{vit_hybrid_forward.1} parent=11 // pred_region
          _
        $region88: #{vit_hybrid_forward.1} parent=11 // pred_fallthru
          _
        // Predicated region
        $region89: #{vit_hybrid_forward.1} parent=11 // pred_check
          %p618 = pneg %p478
        $region90: #{vit_hybrid_forward.1} parent=11 // pred_check_branch
          %620 = sbr.rel (%p618) target = $region92
        $region91: #{vit_hybrid_forward.1} parent=11 // pred_region
          _
        $region92: #{vit_hybrid_forward.1} parent=11 // pred_fallthru
          _
        // Predicated region
        $region93: #{vit_hybrid_forward.1} parent=11 // pred_check
          %p621 = pneg %p499
        $region94: #{vit_hybrid_forward.1} parent=11 // pred_check_branch
          %623 = sbr.rel (%p621) target = $region96
        $region95: #{vit_hybrid_forward.1} parent=11 // pred_region
          _
        $region96: #{vit_hybrid_forward.1} parent=11 // pred_fallthru
          _
        // Predicated region
        $region97: #{vit_hybrid_forward.1} parent=11 // pred_check
          %p624 = pneg %p520
        $region98: #{vit_hybrid_forward.1} parent=11 // pred_check_branch
          %626 = sbr.rel (%p624) target = $region100
        $region99: #{vit_hybrid_forward.1} parent=11 // pred_region
          _
        $region100: #{vit_hybrid_forward.1} parent=11 // pred_fallthru
          _
      $region12: #{vit_hybrid_forward.1} parent=5 // pred_fallthru
        _
      %p627 = scmp.lt.s32.totalorder %s32, 2
      // Predicated region
      $region101: #{vit_hybrid_forward.1} parent=5 // pred_check
        %p628 = pneg %p627
      $region102: #{vit_hybrid_forward.1} parent=5 // pred_check_branch
        %630 = sbr.rel (%p628) target = $region104
      $region103: #{vit_hybrid_forward.1} parent=5 // pred_region
        // Predicated region
        $region105: #{vit_hybrid_forward.1} parent=103 // pred_check
          %p631 = pneg %p52
        $region106: #{vit_hybrid_forward.1} parent=103 // pred_check_branch
          %633 = sbr.rel (%p631) target = $region108
        $region107: #{vit_hybrid_forward.1} parent=103 // pred_region
          %s634 = smul.u32 2, %s32
          %p635 = scmp.lt.s32.totalorder %s634, 3
          %s636 = scalar_select %p635, %s634, 3
          %s637 = smul.addr %s636, 8
          %s638 = scalar_lea.vmem %s0, %s637
          %s639 = smul.u32 2, %s32
        $region108: #{vit_hybrid_forward.1} parent=103 // pred_fallthru
          _
      $region104: #{vit_hybrid_forward.1} parent=5 // pred_fallthru
        _
      %p640 = scmp.le.s32.totalorder 1, %s32
      %p641 = scmp.lt.s32.totalorder %s32, 3
      %p642 = pnand %p640, %p641
      %p643 = pneg %p642
      // Predicated region
      $region109: #{vit_hybrid_forward.1} parent=5 // pred_check
        _
      $region110: #{vit_hybrid_forward.1} parent=5 // pred_check_branch
        %645 = sbr.rel (%p642) target = $region112
      $region111: #{vit_hybrid_forward.1} parent=5 // pred_region
        %s646 = ssub.s32 %s32, 1
        %s647 = smul.u32 2, %s37
        %p648 = scmp.lt.s32.totalorder %s647, 3
        %s649 = scalar_select %p648, %s647, 3
        %s650 = smul.addr %s649, 8
        %s651 = scalar_lea.vmem %s0, %s650
        %p652 = pneg %p58
        %p653 = pneg %p55
        %p654 = pneg %p79
        %p655 = pneg %p76
        %p656 = pneg %p100
        %p657 = pneg %p97
        %p658 = pneg %p121
        %p659 = pneg %p118
        %p660 = pneg %p142
        %p661 = pneg %p139
        %p662 = pneg %p163
        %p663 = pneg %p160
        %p664 = pneg %p184
        %p665 = pneg %p181
        %p666 = pneg %p205
        %p667 = pneg %p202
        %p668 = pneg %p226
        %p669 = pneg %p223
        %p670 = pneg %p247
        %p671 = pneg %p244
        %p672 = pneg %p268
        %p673 = pneg %p265
        %p674 = pneg %p289
        %p675 = pneg %p286
        %p676 = pneg %p310
        %p677 = pneg %p307
        %p678 = pneg %p331
        %p679 = pneg %p328
        %p680 = pneg %p352
        %p681 = pneg %p349
        %p682 = pneg %p373
        %p683 = pneg %p370
        %p684 = pneg %p394
        %p685 = pneg %p391
        %p686 = pneg %p415
        %p687 = pneg %p412
        %p688 = pneg %p436
        %p689 = pneg %p433
        %p690 = pneg %p457
        %p691 = pneg %p454
        %p692 = pneg %p478
        %p693 = pneg %p475
        %p694 = pneg %p499
        %p695 = pneg %p496
        %p696 = pneg %p520
        %p697 = pneg %p517
        %p698 = pneg %p546
        %p699 = pneg %p543
        %s700 = sand.u32 %s533, 1
        %s701 = scalar_lea.sflag [#allocation4], %s700
        %s702 = sand.u32 %s533, 1
        %s703 = scalar_lea.vmem [#allocation3], %s702
        %s704 = smul.u32 2, %s37
        %p705 = scmp.lt.s32.totalorder %s704, 3
        %s706 = scalar_select %p705, %s704, 3
        %s707 = smul.addr %s706, 8
        %s708 = scalar_lea.vmem %s0, %s707
        %s709 = smul.u32 2, %s37
        %v710 = vld [vmem:[%s708] sm:$0xff]
        %v711 = vld [vmem:[%s708 + $0x8] sm:$0xff]
        %v712 = vld [vmem:[%s1] sm:$0xff]
        %v713 = vld [vmem:[%s1 + $0x8] sm:$0xff]
        %v714 = vld [vmem:[%s1 + $0x10] sm:$0xff]
        %v715 = vld [vmem:[%s1 + $0x18] sm:$0xff]
        %v716 = vld [vmem:[%s1 + $0x20] sm:$0xff]
        %v717 = vld [vmem:[%s1 + $0x28] sm:$0xff]
        %v718 = vld [vmem:[%s2] sm:$0x1]
        %v720 = vperm.slane %v718, 0
        %vm722 = vcmask 392192
        %v724 = vsel %vm722, %v710, 0
        %v727 = vsel %vm722, %v711, 0
        %729 = vmatpush.msra.mxu0 0.0
        %730 = vmatpush.msra.mxu0 0.0
        %731 = vmatpush.msra.mxu0 0.0
        %732 = vmatpush.msra.mxu0 0.0
        %733 = vmatpush.msra.mxu0 0.0
        %734 = vmatpush.msra.mxu0 0.0
        %735 = vmatpush.msra.mxu0 0.0
        %736 = vmatpush.msra.mxu0 0.0
        %737 = vmatpush.msra.mxu0 0.0
        %738 = vmatpush.msra.mxu0 0.0
        %739 = vmatpush.msra.mxu0 %v717
        %740 = vmatpush.msra.mxu0 %v716
        %741 = vmatpush.msra.mxu0 %v715
        %742 = vmatpush.msra.mxu0 %v714
        %743 = vmatpush.msra.mxu0 %v713
        %744 = vmatpush.msra.mxu0 %v712
        %745 = vmatmul.f32.gmra.mxu0 %v724
        %v746 = vpop.f32.mrf.mxu0
        %v747 = vadd.f32 %v720, %v746
        %748 = vmatmul.f32.gmra.mxu0 %v727
        %v749 = vpop.f32.mrf.mxu0
        %v750 = vadd.f32 %v720, %v749
        %751 = vdwg.mxu0
        %v752 = vmax.f32 %v747, 0.0
        %v753 = vmax.f32 %v750, 0.0
        %v754 = vld [vmem:[%s3] sm:$0xff]
        %v755 = vld [vmem:[%s4] sm:$0x1]
        %v757 = vperm.slane %v755, 0
        %vm759 = vcmask 64512
        %v761 = vsel %vm759, %v752, 0
        %v764 = vsel %vm759, %v753, 0
        %766 = vmatpush.msra.mxu0 0.0
        %767 = vmatpush.msra.mxu0 0.0
        %768 = vmatpush.msra.mxu0 0.0
        %769 = vmatpush.msra.mxu0 0.0
        %770 = vmatpush.msra.mxu0 0.0
        %771 = vmatpush.msra.mxu0 0.0
        %772 = vmatpush.msra.mxu0 0.0
        %773 = vmatpush.msra.mxu0 0.0
        %774 = vmatpush.msra.mxu0 0.0
        %775 = vmatpush.msra.mxu0 0.0
        %776 = vmatpush.msra.mxu0 0.0
        %777 = vmatpush.msra.mxu0 0.0
        %778 = vmatpush.msra.mxu0 0.0
        %779 = vmatpush.msra.mxu0 0.0
        %780 = vmatpush.msra.mxu0 0.0
        %781 = vmatpush.msra.mxu0 %v754
        %782 = vmatmul.f32.gmra.mxu0 %v761
        %v783 = vpop.f32.mrf.mxu0
        %v784 = vadd.f32 %v757, %v783
        %785 = vmatmul.f32.gmra.mxu0 %v764
        %v786 = vpop.f32.mrf.mxu0
        %v787 = vadd.f32 %v757, %v786
        %788 = vdwg.mxu0
        %v789 = vld [vmem:[%s6] sm:$0xff]
        %v790 = vld [vmem:[%s6 + $0x8] sm:$0xff]
        %v791 = vld [vmem:[%s6 + $0x10] sm:$0xff]
        %vm792 = vcmask 261120
        %793 = vst.msk [vmem:[#allocation2] sm:$0xff] %vm792, 0.0
        %794 = vst.msk [vmem:[#allocation2 + $0x8] sm:$0xff] %vm792, 0.0
        %795 = vst.msk [vmem:[#allocation2 + $0x10] sm:$0xff] %vm792, 0.0
        %v796 = vld [vmem:[%s5] sm:$0x1]
        %v797 = vadd.f32 %v796, %v789
        %vm798 = vcmask 253952
        %799 = vst.msk [vmem:[#allocation2] sm:$0x1] %vm798, %v797
        %vm803 = vcmask 1046528
        %v804 = vrot.slane %v789, 1
        %v805 = vrot.slane %v790, 1
        %v806 = vsel %vm803, %v804, %v805
        %v807 = vrot.slane %v791, 1
        %v808 = vsel %vm803, %v805, %v807
        %v811 = vadd.f32 %v784, %v806
        %v812 = vadd.f32 %v787, %v808
        %813 = vst.msk [vmem:[#allocation2 + $0x1] sm:$0xff] %vm792, %v811
        %814 = vst.msk [vmem:[#allocation2 + $0x9] sm:$0xff] %vm792, %v812
        %v815 = vld [vmem:[#allocation2] sm:$0xff]
        %v816 = vld [vmem:[#allocation2 + $0x8] sm:$0xff]
        %v817 = vld [vmem:[#allocation2 + $0x10] sm:$0xff]
        %v818 = vlaneseq
        %v819 = vand.u32 %v818, 127
        %vm820 = vcmp.lt.s32.totalorder %v819, 17
        %v821 = vsel %vm820, 0.0, -1e+30
        %v822 = vld [vmem:[%s7] sm:$0x1]
        %v823 = vld [vmem:[%s8] sm:$0x1]
        %v824 = vld [vmem:[%s13] sm:$0x1]
        %v825 = vld [vmem:[%s14] sm:$0x1]
        %v826 = vld [vmem:[%s9] sm:$0xff]
        %v827 = vld [vmem:[%s9 + $0x8] sm:$0xff]
        %v828 = vld [vmem:[%s9 + $0x10] sm:$0xff]
        %v829 = vld [vmem:[%s9 + $0x18] sm:$0xff]
        %v830 = vld [vmem:[%s10] sm:$0x1]
        %v831 = vld [vmem:[%s11] sm:$0xff]
        %v832 = vld [vmem:[%s11 + $0x8] sm:$0xff]
        %v833 = vld [vmem:[%s11 + $0x10] sm:$0xff]
        %v834 = vld [vmem:[%s11 + $0x18] sm:$0xff]
        %v835 = vld [vmem:[%s12] sm:$0x1]
        %v836 = vld [vmem:[%s15] sm:$0xff]
        %v837 = vld [vmem:[%s15 + $0x8] sm:$0xff]
        %v838 = vld [vmem:[%s15 + $0x10] sm:$0xff]
        %v839 = vld [vmem:[%s15 + $0x18] sm:$0xff]
        %v840 = vld [vmem:[%s16] sm:$0x1]
        %v841 = vld [vmem:[%s17] sm:$0xff]
        %v842 = vld [vmem:[%s17 + $0x8] sm:$0xff]
        %v843 = vld [vmem:[%s17 + $0x10] sm:$0xff]
        %v844 = vld [vmem:[%s17 + $0x18] sm:$0xff]
        %v845 = vld [vmem:[%s17 + $0x20] sm:$0xff]
        %v846 = vld [vmem:[%s17 + $0x28] sm:$0xff]
        %v847 = vld [vmem:[%s17 + $0x30] sm:$0xff]
        %v848 = vld [vmem:[%s17 + $0x38] sm:$0xff]
        %v849 = vld [vmem:[%s17 + $0x40] sm:$0xff]
        %v850 = vld [vmem:[%s17 + $0x48] sm:$0xff]
        %v851 = vld [vmem:[%s17 + $0x50] sm:$0xff]
        %v852 = vld [vmem:[%s17 + $0x58] sm:$0xff]
        %v853 = vld [vmem:[%s17 + $0x60] sm:$0xff]
        %v854 = vld [vmem:[%s17 + $0x68] sm:$0xff]
        %v855 = vld [vmem:[%s17 + $0x70] sm:$0xff]
        %v856 = vld [vmem:[%s17 + $0x78] sm:$0xff]
        %v857 = vld [vmem:[%s18] sm:$0x1]
        %v858 = vsel %vm792, %v815, 0.0
        %859 = vadd.xlane.f32.xlu0 %v858
        %v860 = vpop.xlane.xlu0 %859
        %v861 = vsel %vm792, %v816, 0.0
        %862 = vadd.xlane.f32.xlu0 %v861
        %v863 = vpop.xlane.xlu0 %862
        %v864 = vsel %vm792, %v817, 0.0
        %865 = vadd.xlane.f32.xlu0 %v864
        %v866 = vpop.xlane.xlu0 %865
        %v867 = vrcp.pop 32.0
        %v868 = vmul.f32 32.0, %v867
        %v869 = vsub.f32 1.0, %v868
        %v870 = vmul.f32 %v867, %v869
        %v871 = vadd.f32 %v867, %v870
        %vm872 = vweird.f32 %v867
        %v873 = vsel %vm872, %v867, %v871
        %v874 = vmul.f32 %v860, %v873
        %v875 = vmul.f32 %v863, %v873
        %v876 = vmul.f32 %v866, %v873
        %v877 = vsub.f32 %v815, %v874
        %v878 = vsub.f32 %v816, %v875
        %v879 = vsub.f32 %v817, %v876
        %v880 = vmul.f32 %v877, %v877
        %v881 = vmul.f32 %v878, %v878
        %v882 = vmul.f32 %v879, %v879
        %v883 = vsel %vm792, %v880, 0.0
        %884 = vadd.xlane.f32.xlu0 %v883
        %v885 = vpop.xlane.xlu0 %884
        %v886 = vsel %vm792, %v881, 0.0
        %887 = vadd.xlane.f32.xlu0 %v886
        %v888 = vpop.xlane.xlu0 %887
        %v889 = vsel %vm792, %v882, 0.0
        %890 = vadd.xlane.f32.xlu0 %v889
        %v891 = vpop.xlane.xlu0 %890
        %v892 = vmul.f32 %v885, 0.032258064
        %v893 = vmul.f32 %v888, 0.032258064
        %v894 = vmul.f32 %v891, 0.032258064
        %v895 = vrsqrt.pop %v892
        %v896 = vmul.f32 %v895, %v892
        %v897 = vmul.f32 %v896, %v895
        %v898 = vmul.f32 0.5, %v897
        %v899 = vsub.f32 1.5, %v898
        %v900 = vmul.f32 %v895, %v899
        %v901 = vmul.f32 %v892, %v900
        %vm902 = vcmp.eq.f32.partialorder %v892, inf
        %v903 = vsel %vm902, %v892, %v901
        %vm904 = vcmp.eq.f32.partialorder %v892, 0.0
        %v905 = vand.u32 %v892, 2147483648
        %v906 = vsel %vm904, %v905, %v903
        %v907 = vrsqrt.pop %v893
        %v908 = vmul.f32 %v907, %v893
        %v909 = vmul.f32 %v908, %v907
        %v910 = vmul.f32 0.5, %v909
        %v911 = vsub.f32 1.5, %v910
        %v912 = vmul.f32 %v907, %v911
        %v913 = vmul.f32 %v893, %v912
        %vm914 = vcmp.eq.f32.partialorder %v893, inf
        %v915 = vsel %vm914, %v893, %v913
        %vm916 = vcmp.eq.f32.partialorder %v893, 0.0
        %v917 = vand.u32 %v893, 2147483648
        %v918 = vsel %vm916, %v917, %v915
        %v919 = vrsqrt.pop %v894
        %v920 = vmul.f32 %v919, %v894
        %v921 = vmul.f32 %v920, %v919
        %v922 = vmul.f32 0.5, %v921
        %v923 = vsub.f32 1.5, %v922
        %v924 = vmul.f32 %v919, %v923
        %v925 = vmul.f32 %v894, %v924
        %vm926 = vcmp.eq.f32.partialorder %v894, inf
        %v927 = vsel %vm926, %v894, %v925
        %vm928 = vcmp.eq.f32.partialorder %v894, 0.0
        %v929 = vand.u32 %v894, 2147483648
        %v930 = vsel %vm928, %v929, %v927
        %v931 = vadd.f32 %v906, 1e-06
        %v932 = vadd.f32 %v918, 1e-06
        %v933 = vadd.f32 %v930, 1e-06
        %v934 = vrcp.pop %v931
        %v935 = vrcp.pop %v932
        %v936 = vrcp.pop %v933
        %v938 = vperm.slane %v822, 0
        %v940 = vmul.f32 %v938, %v877
        %v941 = vmul.f32 %v938, %v878
        %v942 = vmul.f32 %v938, %v879
        %v943 = vmul.f32 %v940, %v934
        %v944 = vmul.f32 %v941, %v935
        %v945 = vmul.f32 %v942, %v936
        %v947 = vperm.slane %v823, 0
        %v949 = vadd.f32 %v943, %v947
        %v950 = vadd.f32 %v944, %v947
        %v951 = vadd.f32 %v945, %v947
        %v953 = vperm.slane %v830, 0
        %v956 = vsel %vm792, %v949, 0
        %v959 = vsel %vm792, %v950, 0
        %v962 = vsel %vm792, %v951, 0
        %964 = vmatpush.msra.mxu0 0.0
        %965 = vmatpush.msra.mxu0 0.0
        %966 = vmatpush.msra.mxu0 0.0
        %967 = vmatpush.msra.mxu0 0.0
        %968 = vmatpush.msra.mxu0 0.0
        %969 = vmatpush.msra.mxu0 0.0
        %970 = vmatpush.msra.mxu0 0.0
        %971 = vmatpush.msra.mxu0 0.0
        %972 = vmatpush.msra.mxu0 0.0
        %973 = vmatpush.msra.mxu0 0.0
        %974 = vmatpush.msra.mxu0 0.0
        %975 = vmatpush.msra.mxu0 0.0
        %976 = vmatpush.msra.mxu0 %v829
        %977 = vmatpush.msra.mxu0 %v828
        %978 = vmatpush.msra.mxu0 %v827
        %979 = vmatpush.msra.mxu0 %v826
        %980 = vmatmul.f32.gmra.mxu0 %v956
        %v981 = vpop.f32.mrf.mxu0
        %v982 = vadd.f32 %v953, %v981
        %983 = vmatmul.f32.gmra.mxu0 %v959
        %v984 = vpop.f32.mrf.mxu0
        %v985 = vadd.f32 %v953, %v984
        %986 = vmatmul.f32.gmra.mxu0 %v962
        %v987 = vpop.f32.mrf.mxu0
        %v988 = vadd.f32 %v953, %v987
        %989 = vdwg.mxu0
        %993 = vrot.lane.b32.xlu0 %v982, 96
        %v994 = vpop.permute.xlu0 %993
        %995 = vrot.lane.b32.xlu0 %v985, 96
        %v996 = vpop.permute.xlu0 %995
        %997 = vrot.lane.b32.xlu0 %v988, 96
        %v998 = vpop.permute.xlu0 %997
        %v999 = vsel %vm759, %v982, 0
        %v1001 = vsel %vm759, %v985, 0
        %v1003 = vsel %vm759, %v988, 0
        %v1005 = vsel %vm759, %v994, 0
        %v1007 = vsel %vm759, %v996, 0
        %v1009 = vsel %vm759, %v998, 0
        %1011 = vmatpush.xpose.msra.mxu0 0.0
        %1012 = vmatpush.xpose.msra.mxu0 0.0
        %1013 = vmatpush.xpose.msra.mxu0 0.0
        %1014 = vmatpush.xpose.msra.mxu0 0.0
        %1015 = vmatpush.xpose.msra.mxu0 0.0
        %1016 = vmatpush.xpose.msra.mxu0 0.0
        %1017 = vmatpush.xpose.msra.mxu0 0.0
        %1018 = vmatpush.xpose.msra.mxu0 0.0
        %1019 = vmatpush.xpose.msra.mxu0 0.0
        %1020 = vmatpush.xpose.msra.mxu0 0.0
        %1021 = vmatpush.xpose.msra.mxu0 0.0
        %1022 = vmatpush.xpose.msra.mxu0 0.0
        %1023 = vmatpush.xpose.msra.mxu0 0.0
        %1024 = vmatpush.xpose.msra.mxu0 %v1009
        %1025 = vmatpush.xpose.msra.mxu0 %v1007
        %1026 = vmatpush.xpose.msra.mxu0 %v1005
        %1027 = vmatmul.f32.gmra.mxu0 %v999
        %v1028 = vpop.f32.mrf.mxu0
        %v1029 = vadd.f32 0.0, %v1028
        %1030 = vmatmul.f32.gmra.mxu0 %v1001
        %v1031 = vpop.f32.mrf.mxu0
        %v1032 = vadd.f32 0.0, %v1031
        %1033 = vmatmul.f32.gmra.mxu0 %v1003
        %v1034 = vpop.f32.mrf.mxu0
        %v1035 = vadd.f32 0.0, %v1034
        %1036 = vdwg.mxu0
        %v1037 = vmul.f32 %v1029, 0.35355338
        %v1038 = vmul.f32 %v1032, 0.35355338
        %v1039 = vmul.f32 %v1035, 0.35355338
        %v1040 = vadd.f32 %v1037, %v821
        %v1041 = vadd.f32 %v1038, %v821
        %v1042 = vadd.f32 %v1039, %v821
        %vm1043 = vcmask 195584
        %v1044 = vsel %vm1043, %v1040, -inf
        %1045 = vmax.xlane.f32.xlu0 %v1044
        %v1046 = vpop.xlane.xlu0 %1045
        %v1047 = vsel %vm1043, %v1041, -inf
        %1048 = vmax.xlane.f32.xlu0 %v1047
        %v1049 = vpop.xlane.xlu0 %1048
        %v1050 = vsel %vm1043, %v1042, -inf
        %1051 = vmax.xlane.f32.xlu0 %v1050
        %v1052 = vpop.xlane.xlu0 %1051
        %v1053 = vsub.f32 %v1040, %v1046
        %v1054 = vsub.f32 %v1041, %v1049
        %v1055 = vsub.f32 %v1042, %v1052
        %v1056 = vmul.f32 %v1053, 1.442695
        %v1057 = vpow.pop %v1056
        %v1058 = vmul.f32 %v1054, 1.442695
        %v1059 = vpow.pop %v1058
        %v1060 = vmul.f32 %v1055, 1.442695
        %v1061 = vpow.pop %v1060
        %v1062 = vsel %vm1043, %v1057, 0.0
        %1063 = vadd.xlane.f32.xlu0 %v1062
        %v1064 = vpop.xlane.xlu0 %1063
        %v1065 = vsel %vm1043, %v1059, 0.0
        %1066 = vadd.xlane.f32.xlu0 %v1065
        %v1067 = vpop.xlane.xlu0 %1066
        %v1068 = vsel %vm1043, %v1061, 0.0
        %1069 = vadd.xlane.f32.xlu0 %v1068
        %v1070 = vpop.xlane.xlu0 %1069
        %v1071 = vrcp.pop %v1064
        %v1072 = vrcp.pop %v1067
        %v1073 = vrcp.pop %v1070
        %v1074 = vmul.f32 %v1057, %v1071
        %v1075 = vmul.f32 %v1059, %v1072
        %v1076 = vmul.f32 %v1061, %v1073
        %1077 = vrot.lane.b32.xlu0 %v982, 64
        %v1078 = vpop.permute.xlu0 %1077
        %1079 = vrot.lane.b32.xlu0 %v985, 64
        %v1080 = vpop.permute.xlu0 %1079
        %1081 = vrot.lane.b32.xlu0 %v988, 64
        %v1082 = vpop.permute.xlu0 %1081
        %v1087 = vsel %vm1043, %v1074, 0
        %v1090 = vsel %vm1043, %v1075, 0
        %v1093 = vsel %vm1043, %v1076, 0
        %1095 = vmatpush.msra.mxu0 0.0
        %1096 = vmatpush.msra.mxu0 0.0
        %1097 = vmatpush.msra.mxu0 0.0
        %1098 = vmatpush.msra.mxu0 0.0
        %1099 = vmatpush.msra.mxu0 0.0
        %1100 = vmatpush.msra.mxu0 0.0
        %1101 = vmatpush.msra.mxu0 0.0
        %1102 = vmatpush.msra.mxu0 0.0
        %1103 = vmatpush.msra.mxu0 0.0
        %1104 = vmatpush.msra.mxu0 0.0
        %1105 = vmatpush.msra.mxu0 0.0
        %1106 = vmatpush.msra.mxu0 0.0
        %1107 = vmatpush.msra.mxu0 0.0
        %1108 = vmatpush.msra.mxu0 %v1082
        %1109 = vmatpush.msra.mxu0 %v1080
        %1110 = vmatpush.msra.mxu0 %v1078
        %1111 = vmatmul.f32.gmra.mxu0 %v1087
        %v1112 = vpop.f32.mrf.mxu0
        %v1113 = vadd.f32 0.0, %v1112
        %1114 = vmatmul.f32.gmra.mxu0 %v1090
        %v1115 = vpop.f32.mrf.mxu0
        %v1116 = vadd.f32 0.0, %v1115
        %1117 = vmatmul.f32.gmra.mxu0 %v1093
        %v1118 = vpop.f32.mrf.mxu0
        %v1119 = vadd.f32 0.0, %v1118
        %1120 = vdwg.mxu0
        %1121 = vrot.lane.b32.xlu0 %v982, 120
        %v1122 = vpop.permute.xlu0 %1121
        %1123 = vrot.lane.b32.xlu0 %v985, 120
        %v1124 = vpop.permute.xlu0 %1123
        %1125 = vrot.lane.b32.xlu0 %v988, 120
        %v1126 = vpop.permute.xlu0 %1125
        %1127 = vrot.lane.b32.xlu0 %v982, 88
        %v1128 = vpop.permute.xlu0 %1127
        %1129 = vrot.lane.b32.xlu0 %v985, 88
        %v1130 = vpop.permute.xlu0 %1129
        %1131 = vrot.lane.b32.xlu0 %v988, 88
        %v1132 = vpop.permute.xlu0 %1131
        %v1133 = vsel %vm759, %v1122, 0
        %v1135 = vsel %vm759, %v1124, 0
        %v1137 = vsel %vm759, %v1126, 0
        %v1139 = vsel %vm759, %v1128, 0
        %v1141 = vsel %vm759, %v1130, 0
        %v1143 = vsel %vm759, %v1132, 0
        %1145 = vmatpush.xpose.msra.mxu0 0.0
        %1146 = vmatpush.xpose.msra.mxu0 0.0
        %1147 = vmatpush.xpose.msra.mxu0 0.0
        %1148 = vmatpush.xpose.msra.mxu0 0.0
        %1149 = vmatpush.xpose.msra.mxu0 0.0
        %1150 = vmatpush.xpose.msra.mxu0 0.0
        %1151 = vmatpush.xpose.msra.mxu0 0.0
        %1152 = vmatpush.xpose.msra.mxu0 0.0
        %1153 = vmatpush.xpose.msra.mxu0 0.0
        %1154 = vmatpush.xpose.msra.mxu0 0.0
        %1155 = vmatpush.xpose.msra.mxu0 0.0
        %1156 = vmatpush.xpose.msra.mxu0 0.0
        %1157 = vmatpush.xpose.msra.mxu0 0.0
        %1158 = vmatpush.xpose.msra.mxu0 %v1143
        %1159 = vmatpush.xpose.msra.mxu0 %v1141
        %1160 = vmatpush.xpose.msra.mxu0 %v1139
        %1161 = vmatmul.f32.gmra.mxu0 %v1133
        %v1162 = vpop.f32.mrf.mxu0
        %v1163 = vadd.f32 0.0, %v1162
        %1164 = vmatmul.f32.gmra.mxu0 %v1135
        %v1165 = vpop.f32.mrf.mxu0
        %v1166 = vadd.f32 0.0, %v1165
        %1167 = vmatmul.f32.gmra.mxu0 %v1137
        %v1168 = vpop.f32.mrf.mxu0
        %v1169 = vadd.f32 0.0, %v1168
        %1170 = vdwg.mxu0
        %v1171 = vmul.f32 %v1163, 0.35355338
        %v1172 = vmul.f32 %v1166, 0.35355338
        %v1173 = vmul.f32 %v1169, 0.35355338
        %v1174 = vadd.f32 %v1171, %v821
        %v1175 = vadd.f32 %v1172, %v821
        %v1176 = vadd.f32 %v1173, %v821
        %v1177 = vsel %vm1043, %v1174, -inf
        %1178 = vmax.xlane.f32.xlu0 %v1177
        %v1179 = vpop.xlane.xlu0 %1178
        %v1180 = vsel %vm1043, %v1175, -inf
        %1181 = vmax.xlane.f32.xlu0 %v1180
        %v1182 = vpop.xlane.xlu0 %1181
        %v1183 = vsel %vm1043, %v1176, -inf
        %1184 = vmax.xlane.f32.xlu0 %v1183
        %v1185 = vpop.xlane.xlu0 %1184
        %v1186 = vsub.f32 %v1174, %v1179
        %v1187 = vsub.f32 %v1175, %v1182
        %v1188 = vsub.f32 %v1176, %v1185
        %v1189 = vmul.f32 %v1186, 1.442695
        %v1190 = vpow.pop %v1189
        %v1191 = vmul.f32 %v1187, 1.442695
        %v1192 = vpow.pop %v1191
        %v1193 = vmul.f32 %v1188, 1.442695
        %v1194 = vpow.pop %v1193
        %v1195 = vsel %vm1043, %v1190, 0.0
        %1196 = vadd.xlane.f32.xlu0 %v1195
        %v1197 = vpop.xlane.xlu0 %1196
        %v1198 = vsel %vm1043, %v1192, 0.0
        %1199 = vadd.xlane.f32.xlu0 %v1198
        %v1200 = vpop.xlane.xlu0 %1199
        %v1201 = vsel %vm1043, %v1194, 0.0
        %1202 = vadd.xlane.f32.xlu0 %v1201
        %v1203 = vpop.xlane.xlu0 %1202
        %v1204 = vrcp.pop %v1197
        %v1205 = vrcp.pop %v1200
        %v1206 = vrcp.pop %v1203
        %v1207 = vmul.f32 %v1190, %v1204
        %v1208 = vmul.f32 %v1192, %v1205
        %v1209 = vmul.f32 %v1194, %v1206
        %1210 = vrot.lane.b32.xlu0 %v982, 56
        %v1211 = vpop.permute.xlu0 %1210
        %1212 = vrot.lane.b32.xlu0 %v985, 56
        %v1213 = vpop.permute.xlu0 %1212
        %1214 = vrot.lane.b32.xlu0 %v988, 56
        %v1215 = vpop.permute.xlu0 %1214
        %v1220 = vsel %vm1043, %v1207, 0
        %v1223 = vsel %vm1043, %v1208, 0
        %v1226 = vsel %vm1043, %v1209, 0
        %1228 = vmatpush.msra.mxu0 0.0
        %1229 = vmatpush.msra.mxu0 0.0
        %1230 = vmatpush.msra.mxu0 0.0
        %1231 = vmatpush.msra.mxu0 0.0
        %1232 = vmatpush.msra.mxu0 0.0
        %1233 = vmatpush.msra.mxu0 0.0
        %1234 = vmatpush.msra.mxu0 0.0
        %1235 = vmatpush.msra.mxu0 0.0
        %1236 = vmatpush.msra.mxu0 0.0
        %1237 = vmatpush.msra.mxu0 0.0
        %1238 = vmatpush.msra.mxu0 0.0
        %1239 = vmatpush.msra.mxu0 0.0
        %1240 = vmatpush.msra.mxu0 0.0
        %1241 = vmatpush.msra.mxu0 %v1215
        %1242 = vmatpush.msra.mxu0 %v1213
        %1243 = vmatpush.msra.mxu0 %v1211
        %1244 = vmatmul.f32.gmra.mxu0 %v1220
        %v1245 = vpop.f32.mrf.mxu0
        %v1246 = vadd.f32 0.0, %v1245
        %1247 = vmatmul.f32.gmra.mxu0 %v1223
        %v1248 = vpop.f32.mrf.mxu0
        %v1249 = vadd.f32 0.0, %v1248
        %1250 = vmatmul.f32.gmra.mxu0 %v1226
        %v1251 = vpop.f32.mrf.mxu0
        %v1252 = vadd.f32 0.0, %v1251
        %1253 = vdwg.mxu0
        %v1255 = vsel %vm759, %v1246, 0
        %v1258 = vsel %vm759, %v1249, 0
        %v1261 = vsel %vm759, %v1252, 0
        %1263 = vmatpush.msra.mxu0 0.0
        %1264 = vmatpush.msra.mxu0 0.0
        %1265 = vmatpush.msra.mxu0 0.0
        %1266 = vmatpush.msra.mxu0 0.0
        %1267 = vmatpush.msra.mxu0 0.0
        %1268 = vmatpush.msra.mxu0 0.0
        %1269 = vmatpush.msra.mxu0 0.0
        %1270 = vmatpush.msra.mxu0 0.0
        %1271 = vmatpush.msra.mxu0 0.0
        %1272 = vmatpush.msra.mxu0 0.0
        %1273 = vmatpush.msra.mxu0 0.0
        %1274 = vmatpush.msra.mxu0 0.0
        %1275 = vmatpush.msra.mxu0 0.0
        %1276 = vmatpush.msra.mxu0 0.0
        %1277 = vmatpush.msra.mxu0 0.0
        %1278 = vmatpush.msra.mxu0 %v832
        %1279 = vmatmul.f32.gmra.mxu0 %v1255
        %v1280 = vpop.f32.mrf.mxu0
        %v1281 = vadd.f32 0.0, %v1280
        %1282 = vmatmul.f32.gmra.mxu0 %v1258
        %v1283 = vpop.f32.mrf.mxu0
        %v1284 = vadd.f32 0.0, %v1283
        %1285 = vmatmul.f32.gmra.mxu0 %v1261
        %v1286 = vpop.f32.mrf.mxu0
        %v1287 = vadd.f32 0.0, %v1286
        %1288 = vdwg.mxu0
        %v1290 = vsel %vm759, %v1113, 0
        %v1293 = vsel %vm759, %v1116, 0
        %v1296 = vsel %vm759, %v1119, 0
        %1298 = vmatpush.msra.mxu0 0.0
        %1299 = vmatpush.msra.mxu0 0.0
        %1300 = vmatpush.msra.mxu0 0.0
        %1301 = vmatpush.msra.mxu0 0.0
        %1302 = vmatpush.msra.mxu0 0.0
        %1303 = vmatpush.msra.mxu0 0.0
        %1304 = vmatpush.msra.mxu0 0.0
        %1305 = vmatpush.msra.mxu0 0.0
        %1306 = vmatpush.msra.mxu0 0.0
        %1307 = vmatpush.msra.mxu0 0.0
        %1308 = vmatpush.msra.mxu0 0.0
        %1309 = vmatpush.msra.mxu0 0.0
        %1310 = vmatpush.msra.mxu0 0.0
        %1311 = vmatpush.msra.mxu0 0.0
        %1312 = vmatpush.msra.mxu0 0.0
        %1313 = vmatpush.msra.mxu0 %v831
        %1314 = vmatmul.f32.gmra.mxu0 %v1290
        %v1315 = vpop.f32.mrf.mxu0
        %v1316 = vadd.f32 %v1281, %v1315
        %1317 = vmatmul.f32.gmra.mxu0 %v1293
        %v1318 = vpop.f32.mrf.mxu0
        %v1319 = vadd.f32 %v1284, %v1318
        %1320 = vmatmul.f32.gmra.mxu0 %v1296
        %v1321 = vpop.f32.mrf.mxu0
        %v1322 = vadd.f32 %v1287, %v1321
        %1323 = vdwg.mxu0
        %1324 = vrot.lane.b32.xlu0 %v982, 112
        %v1325 = vpop.permute.xlu0 %1324
        %1326 = vrot.lane.b32.xlu0 %v985, 112
        %v1327 = vpop.permute.xlu0 %1326
        %1328 = vrot.lane.b32.xlu0 %v988, 112
        %v1329 = vpop.permute.xlu0 %1328
        %1330 = vrot.lane.b32.xlu0 %v982, 80
        %v1331 = vpop.permute.xlu0 %1330
        %1332 = vrot.lane.b32.xlu0 %v985, 80
        %v1333 = vpop.permute.xlu0 %1332
        %1334 = vrot.lane.b32.xlu0 %v988, 80
        %v1335 = vpop.permute.xlu0 %1334
        %v1336 = vsel %vm759, %v1325, 0
        %v1338 = vsel %vm759, %v1327, 0
        %v1340 = vsel %vm759, %v1329, 0
        %v1342 = vsel %vm759, %v1331, 0
        %v1344 = vsel %vm759, %v1333, 0
        %v1346 = vsel %vm759, %v1335, 0
        %1348 = vmatpush.xpose.msra.mxu0 0.0
        %1349 = vmatpush.xpose.msra.mxu0 0.0
        %1350 = vmatpush.xpose.msra.mxu0 0.0
        %1351 = vmatpush.xpose.msra.mxu0 0.0
        %1352 = vmatpush.xpose.msra.mxu0 0.0
        %1353 = vmatpush.xpose.msra.mxu0 0.0
        %1354 = vmatpush.xpose.msra.mxu0 0.0
        %1355 = vmatpush.xpose.msra.mxu0 0.0
        %1356 = vmatpush.xpose.msra.mxu0 0.0
        %1357 = vmatpush.xpose.msra.mxu0 0.0
        %1358 = vmatpush.xpose.msra.mxu0 0.0
        %1359 = vmatpush.xpose.msra.mxu0 0.0
        %1360 = vmatpush.xpose.msra.mxu0 0.0
        %1361 = vmatpush.xpose.msra.mxu0 %v1346
        %1362 = vmatpush.xpose.msra.mxu0 %v1344
        %1363 = vmatpush.xpose.msra.mxu0 %v1342
        %1364 = vmatmul.f32.gmra.mxu0 %v1336
        %v1365 = vpop.f32.mrf.mxu0
        %v1366 = vadd.f32 0.0, %v1365
        %1367 = vmatmul.f32.gmra.mxu0 %v1338
        %v1368 = vpop.f32.mrf.mxu0
        %v1369 = vadd.f32 0.0, %v1368
        %1370 = vmatmul.f32.gmra.mxu0 %v1340
        %v1371 = vpop.f32.mrf.mxu0
        %v1372 = vadd.f32 0.0, %v1371
        %1373 = vdwg.mxu0
        %v1374 = vmul.f32 %v1366, 0.35355338
        %v1375 = vmul.f32 %v1369, 0.35355338
        %v1376 = vmul.f32 %v1372, 0.35355338
        %v1377 = vadd.f32 %v1374, %v821
        %v1378 = vadd.f32 %v1375, %v821
        %v1379 = vadd.f32 %v1376, %v821
        %v1380 = vsel %vm1043, %v1377, -inf
        %1381 = vmax.xlane.f32.xlu0 %v1380
        %v1382 = vpop.xlane.xlu0 %1381
        %v1383 = vsel %vm1043, %v1378, -inf
        %1384 = vmax.xlane.f32.xlu0 %v1383
        %v1385 = vpop.xlane.xlu0 %1384
        %v1386 = vsel %vm1043, %v1379, -inf
        %1387 = vmax.xlane.f32.xlu0 %v1386
        %v1388 = vpop.xlane.xlu0 %1387
        %v1389 = vsub.f32 %v1377, %v1382
        %v1390 = vsub.f32 %v1378, %v1385
        %v1391 = vsub.f32 %v1379, %v1388
        %v1392 = vmul.f32 %v1389, 1.442695
        %v1393 = vpow.pop %v1392
        %v1394 = vmul.f32 %v1390, 1.442695
        %v1395 = vpow.pop %v1394
        %v1396 = vmul.f32 %v1391, 1.442695
        %v1397 = vpow.pop %v1396
        %v1398 = vsel %vm1043, %v1393, 0.0
        %1399 = vadd.xlane.f32.xlu0 %v1398
        %v1400 = vpop.xlane.xlu0 %1399
        %v1401 = vsel %vm1043, %v1395, 0.0
        %1402 = vadd.xlane.f32.xlu0 %v1401
        %v1403 = vpop.xlane.xlu0 %1402
        %v1404 = vsel %vm1043, %v1397, 0.0
        %1405 = vadd.xlane.f32.xlu0 %v1404
        %v1406 = vpop.xlane.xlu0 %1405
        %v1407 = vrcp.pop %v1400
        %v1408 = vrcp.pop %v1403
        %v1409 = vrcp.pop %v1406
        %v1410 = vmul.f32 %v1393, %v1407
        %v1411 = vmul.f32 %v1395, %v1408
        %v1412 = vmul.f32 %v1397, %v1409
        %1413 = vrot.lane.b32.xlu0 %v982, 48
        %v1414 = vpop.permute.xlu0 %1413
        %1415 = vrot.lane.b32.xlu0 %v985, 48
        %v1416 = vpop.permute.xlu0 %1415
        %1417 = vrot.lane.b32.xlu0 %v988, 48
        %v1418 = vpop.permute.xlu0 %1417
        %v1423 = vsel %vm1043, %v1410, 0
        %v1426 = vsel %vm1043, %v1411, 0
        %v1429 = vsel %vm1043, %v1412, 0
        %1431 = vmatpush.msra.mxu0 0.0
        %1432 = vmatpush.msra.mxu0 0.0
        %1433 = vmatpush.msra.mxu0 0.0
        %1434 = vmatpush.msra.mxu0 0.0
        %1435 = vmatpush.msra.mxu0 0.0
        %1436 = vmatpush.msra.mxu0 0.0
        %1437 = vmatpush.msra.mxu0 0.0
        %1438 = vmatpush.msra.mxu0 0.0
        %1439 = vmatpush.msra.mxu0 0.0
        %1440 = vmatpush.msra.mxu0 0.0
        %1441 = vmatpush.msra.mxu0 0.0
        %1442 = vmatpush.msra.mxu0 0.0
        %1443 = vmatpush.msra.mxu0 0.0
        %1444 = vmatpush.msra.mxu0 %v1418
        %1445 = vmatpush.msra.mxu0 %v1416
        %1446 = vmatpush.msra.mxu0 %v1414
        %1447 = vmatmul.f32.gmra.mxu0 %v1423
        %v1448 = vpop.f32.mrf.mxu0
        %v1449 = vadd.f32 0.0, %v1448
        %1450 = vmatmul.f32.gmra.mxu0 %v1426
        %v1451 = vpop.f32.mrf.mxu0
        %v1452 = vadd.f32 0.0, %v1451
        %1453 = vmatmul.f32.gmra.mxu0 %v1429
        %v1454 = vpop.f32.mrf.mxu0
        %v1455 = vadd.f32 0.0, %v1454
        %1456 = vdwg.mxu0
        %v1458 = vsel %vm759, %v1449, 0
        %v1461 = vsel %vm759, %v1452, 0
        %v1464 = vsel %vm759, %v1455, 0
        %1466 = vmatpush.msra.mxu0 0.0
        %1467 = vmatpush.msra.mxu0 0.0
        %1468 = vmatpush.msra.mxu0 0.0
        %1469 = vmatpush.msra.mxu0 0.0
        %1470 = vmatpush.msra.mxu0 0.0
        %1471 = vmatpush.msra.mxu0 0.0
        %1472 = vmatpush.msra.mxu0 0.0
        %1473 = vmatpush.msra.mxu0 0.0
        %1474 = vmatpush.msra.mxu0 0.0
        %1475 = vmatpush.msra.mxu0 0.0
        %1476 = vmatpush.msra.mxu0 0.0
        %1477 = vmatpush.msra.mxu0 0.0
        %1478 = vmatpush.msra.mxu0 0.0
        %1479 = vmatpush.msra.mxu0 0.0
        %1480 = vmatpush.msra.mxu0 0.0
        %1481 = vmatpush.msra.mxu0 %v833
        %1482 = vmatmul.f32.gmra.mxu0 %v1458
        %v1483 = vpop.f32.mrf.mxu0
        %v1484 = vadd.f32 0.0, %v1483
        %1485 = vmatmul.f32.gmra.mxu0 %v1461
        %v1486 = vpop.f32.mrf.mxu0
        %v1487 = vadd.f32 0.0, %v1486
        %1488 = vmatmul.f32.gmra.mxu0 %v1464
        %v1489 = vpop.f32.mrf.mxu0
        %v1490 = vadd.f32 0.0, %v1489
        %1491 = vdwg.mxu0
        %v1492 = vadd.f32 %v1316, %v1484
        %v1493 = vadd.f32 %v1319, %v1487
        %v1494 = vadd.f32 %v1322, %v1490
        %1495 = vrot.lane.b32.xlu0 %v982, 104
        %v1496 = vpop.permute.xlu0 %1495
        %1497 = vrot.lane.b32.xlu0 %v985, 104
        %v1498 = vpop.permute.xlu0 %1497
        %1499 = vrot.lane.b32.xlu0 %v988, 104
        %v1500 = vpop.permute.xlu0 %1499
        %1501 = vrot.lane.b32.xlu0 %v982, 72
        %v1502 = vpop.permute.xlu0 %1501
        %1503 = vrot.lane.b32.xlu0 %v985, 72
        %v1504 = vpop.permute.xlu0 %1503
        %1505 = vrot.lane.b32.xlu0 %v988, 72
        %v1506 = vpop.permute.xlu0 %1505
        %v1507 = vsel %vm759, %v1496, 0
        %v1509 = vsel %vm759, %v1498, 0
        %v1511 = vsel %vm759, %v1500, 0
        %v1513 = vsel %vm759, %v1502, 0
        %v1515 = vsel %vm759, %v1504, 0
        %v1517 = vsel %vm759, %v1506, 0
        %1519 = vmatpush.xpose.msra.mxu0 0.0
        %1520 = vmatpush.xpose.msra.mxu0 0.0
        %1521 = vmatpush.xpose.msra.mxu0 0.0
        %1522 = vmatpush.xpose.msra.mxu0 0.0
        %1523 = vmatpush.xpose.msra.mxu0 0.0
        %1524 = vmatpush.xpose.msra.mxu0 0.0
        %1525 = vmatpush.xpose.msra.mxu0 0.0
        %1526 = vmatpush.xpose.msra.mxu0 0.0
        %1527 = vmatpush.xpose.msra.mxu0 0.0
        %1528 = vmatpush.xpose.msra.mxu0 0.0
        %1529 = vmatpush.xpose.msra.mxu0 0.0
        %1530 = vmatpush.xpose.msra.mxu0 0.0
        %1531 = vmatpush.xpose.msra.mxu0 0.0
        %1532 = vmatpush.xpose.msra.mxu0 %v1517
        %1533 = vmatpush.xpose.msra.mxu0 %v1515
        %1534 = vmatpush.xpose.msra.mxu0 %v1513
        %1535 = vmatmul.f32.gmra.mxu0 %v1507
        %v1536 = vpop.f32.mrf.mxu0
        %v1537 = vadd.f32 0.0, %v1536
        %1538 = vmatmul.f32.gmra.mxu0 %v1509
        %v1539 = vpop.f32.mrf.mxu0
        %v1540 = vadd.f32 0.0, %v1539
        %1541 = vmatmul.f32.gmra.mxu0 %v1511
        %v1542 = vpop.f32.mrf.mxu0
        %v1543 = vadd.f32 0.0, %v1542
        %1544 = vdwg.mxu0
        %v1545 = vmul.f32 %v1537, 0.35355338
        %v1546 = vmul.f32 %v1540, 0.35355338
        %v1547 = vmul.f32 %v1543, 0.35355338
        %v1548 = vadd.f32 %v1545, %v821
        %v1549 = vadd.f32 %v1546, %v821
        %v1550 = vadd.f32 %v1547, %v821
        %v1551 = vsel %vm1043, %v1548, -inf
        %1552 = vmax.xlane.f32.xlu0 %v1551
        %v1553 = vpop.xlane.xlu0 %1552
        %v1554 = vsel %vm1043, %v1549, -inf
        %1555 = vmax.xlane.f32.xlu0 %v1554
        %v1556 = vpop.xlane.xlu0 %1555
        %v1557 = vsel %vm1043, %v1550, -inf
        %1558 = vmax.xlane.f32.xlu0 %v1557
        %v1559 = vpop.xlane.xlu0 %1558
        %v1560 = vsub.f32 %v1548, %v1553
        %v1561 = vsub.f32 %v1549, %v1556
        %v1562 = vsub.f32 %v1550, %v1559
        %v1563 = vmul.f32 %v1560, 1.442695
        %v1564 = vpow.pop %v1563
        %v1565 = vmul.f32 %v1561, 1.442695
        %v1566 = vpow.pop %v1565
        %v1567 = vmul.f32 %v1562, 1.442695
        %v1568 = vpow.pop %v1567
        %v1569 = vsel %vm1043, %v1564, 0.0
        %1570 = vadd.xlane.f32.xlu0 %v1569
        %v1571 = vpop.xlane.xlu0 %1570
        %v1572 = vsel %vm1043, %v1566, 0.0
        %1573 = vadd.xlane.f32.xlu0 %v1572
        %v1574 = vpop.xlane.xlu0 %1573
        %v1575 = vsel %vm1043, %v1568, 0.0
        %1576 = vadd.xlane.f32.xlu0 %v1575
        %v1577 = vpop.xlane.xlu0 %1576
        %v1578 = vrcp.pop %v1571
        %v1579 = vrcp.pop %v1574
        %v1580 = vrcp.pop %v1577
        %v1581 = vmul.f32 %v1564, %v1578
        %v1582 = vmul.f32 %v1566, %v1579
        %v1583 = vmul.f32 %v1568, %v1580
        %1584 = vrot.lane.b32.xlu0 %v982, 40
        %v1585 = vpop.permute.xlu0 %1584
        %1586 = vrot.lane.b32.xlu0 %v985, 40
        %v1587 = vpop.permute.xlu0 %1586
        %1588 = vrot.lane.b32.xlu0 %v988, 40
        %v1589 = vpop.permute.xlu0 %1588
        %v1594 = vsel %vm1043, %v1581, 0
        %v1597 = vsel %vm1043, %v1582, 0
        %v1600 = vsel %vm1043, %v1583, 0
        %1602 = vmatpush.msra.mxu0 0.0
        %1603 = vmatpush.msra.mxu0 0.0
        %1604 = vmatpush.msra.mxu0 0.0
        %1605 = vmatpush.msra.mxu0 0.0
        %1606 = vmatpush.msra.mxu0 0.0
        %1607 = vmatpush.msra.mxu0 0.0
        %1608 = vmatpush.msra.mxu0 0.0
        %1609 = vmatpush.msra.mxu0 0.0
        %1610 = vmatpush.msra.mxu0 0.0
        %1611 = vmatpush.msra.mxu0 0.0
        %1612 = vmatpush.msra.mxu0 0.0
        %1613 = vmatpush.msra.mxu0 0.0
        %1614 = vmatpush.msra.mxu0 0.0
        %1615 = vmatpush.msra.mxu0 %v1589
        %1616 = vmatpush.msra.mxu0 %v1587
        %1617 = vmatpush.msra.mxu0 %v1585
        %1618 = vmatmul.f32.gmra.mxu0 %v1594
        %v1619 = vpop.f32.mrf.mxu0
        %v1620 = vadd.f32 0.0, %v1619
        %1621 = vmatmul.f32.gmra.mxu0 %v1597
        %v1622 = vpop.f32.mrf.mxu0
        %v1623 = vadd.f32 0.0, %v1622
        %1624 = vmatmul.f32.gmra.mxu0 %v1600
        %v1625 = vpop.f32.mrf.mxu0
        %v1626 = vadd.f32 0.0, %v1625
        %1627 = vdwg.mxu0
        %v1629 = vsel %vm759, %v1620, 0
        %v1632 = vsel %vm759, %v1623, 0
        %v1635 = vsel %vm759, %v1626, 0
        %1637 = vmatpush.msra.mxu0 0.0
        %1638 = vmatpush.msra.mxu0 0.0
        %1639 = vmatpush.msra.mxu0 0.0
        %1640 = vmatpush.msra.mxu0 0.0
        %1641 = vmatpush.msra.mxu0 0.0
        %1642 = vmatpush.msra.mxu0 0.0
        %1643 = vmatpush.msra.mxu0 0.0
        %1644 = vmatpush.msra.mxu0 0.0
        %1645 = vmatpush.msra.mxu0 0.0
        %1646 = vmatpush.msra.mxu0 0.0
        %1647 = vmatpush.msra.mxu0 0.0
        %1648 = vmatpush.msra.mxu0 0.0
        %1649 = vmatpush.msra.mxu0 0.0
        %1650 = vmatpush.msra.mxu0 0.0
        %1651 = vmatpush.msra.mxu0 0.0
        %1652 = vmatpush.msra.mxu0 %v834
        %1653 = vmatmul.f32.gmra.mxu0 %v1629
        %v1654 = vpop.f32.mrf.mxu0
        %v1655 = vadd.f32 0.0, %v1654
        %1656 = vmatmul.f32.gmra.mxu0 %v1632
        %v1657 = vpop.f32.mrf.mxu0
        %v1658 = vadd.f32 0.0, %v1657
        %1659 = vmatmul.f32.gmra.mxu0 %v1635
        %v1660 = vpop.f32.mrf.mxu0
        %v1661 = vadd.f32 0.0, %v1660
        %1662 = vdwg.mxu0
        %v1663 = vadd.f32 %v1492, %v1655
        %v1664 = vadd.f32 %v1493, %v1658
        %v1665 = vadd.f32 %v1494, %v1661
        %v1666 = vadd.f32 %v815, %v1663
        %v1667 = vadd.f32 %v816, %v1664
        %v1668 = vadd.f32 %v817, %v1665
        %v1670 = vperm.slane %v835, 0
        %v1672 = vadd.f32 %v1666, %v1670
        %v1673 = vadd.f32 %v1667, %v1670
        %v1674 = vadd.f32 %v1668, %v1670
        %v1675 = vsel %vm792, %v1672, 0.0
        %1676 = vadd.xlane.f32.xlu0 %v1675
        %v1677 = vpop.xlane.xlu0 %1676
        %v1678 = vsel %vm792, %v1673, 0.0
        %1679 = vadd.xlane.f32.xlu0 %v1678
        %v1680 = vpop.xlane.xlu0 %1679
        %v1681 = vsel %vm792, %v1674, 0.0
        %1682 = vadd.xlane.f32.xlu0 %v1681
        %v1683 = vpop.xlane.xlu0 %1682
        %v1684 = vmul.f32 %v1677, %v873
        %v1685 = vmul.f32 %v1680, %v873
        %v1686 = vmul.f32 %v1683, %v873
        %v1687 = vsub.f32 %v1672, %v1684
        %v1688 = vsub.f32 %v1673, %v1685
        %v1689 = vsub.f32 %v1674, %v1686
        %v1690 = vmul.f32 %v1687, %v1687
        %v1691 = vmul.f32 %v1688, %v1688
        %v1692 = vmul.f32 %v1689, %v1689
        %v1693 = vsel %vm792, %v1690, 0.0
        %1694 = vadd.xlane.f32.xlu0 %v1693
        %v1695 = vpop.xlane.xlu0 %1694
        %v1696 = vsel %vm792, %v1691, 0.0
        %1697 = vadd.xlane.f32.xlu0 %v1696
        %v1698 = vpop.xlane.xlu0 %1697
        %v1699 = vsel %vm792, %v1692, 0.0
        %1700 = vadd.xlane.f32.xlu0 %v1699
        %v1701 = vpop.xlane.xlu0 %1700
        %v1702 = vmul.f32 %v1695, 0.032258064
        %v1703 = vmul.f32 %v1698, 0.032258064
        %v1704 = vmul.f32 %v1701, 0.032258064
        %v1705 = vrsqrt.pop %v1702
        %v1706 = vmul.f32 %v1705, %v1702
        %v1707 = vmul.f32 %v1706, %v1705
        %v1708 = vmul.f32 0.5, %v1707
        %v1709 = vsub.f32 1.5, %v1708
        %v1710 = vmul.f32 %v1705, %v1709
        %v1711 = vmul.f32 %v1702, %v1710
        %vm1712 = vcmp.eq.f32.partialorder %v1702, inf
        %v1713 = vsel %vm1712, %v1702, %v1711
        %vm1714 = vcmp.eq.f32.partialorder %v1702, 0.0
        %v1715 = vand.u32 %v1702, 2147483648
        %v1716 = vsel %vm1714, %v1715, %v1713
        %v1717 = vrsqrt.pop %v1703
        %v1718 = vmul.f32 %v1717, %v1703
        %v1719 = vmul.f32 %v1718, %v1717
        %v1720 = vmul.f32 0.5, %v1719
        %v1721 = vsub.f32 1.5, %v1720
        %v1722 = vmul.f32 %v1717, %v1721
        %v1723 = vmul.f32 %v1703, %v1722
        %vm1724 = vcmp.eq.f32.partialorder %v1703, inf
        %v1725 = vsel %vm1724, %v1703, %v1723
        %vm1726 = vcmp.eq.f32.partialorder %v1703, 0.0
        %v1727 = vand.u32 %v1703, 2147483648
        %v1728 = vsel %vm1726, %v1727, %v1725
        %v1729 = vrsqrt.pop %v1704
        %v1730 = vmul.f32 %v1729, %v1704
        %v1731 = vmul.f32 %v1730, %v1729
        %v1732 = vmul.f32 0.5, %v1731
        %v1733 = vsub.f32 1.5, %v1732
        %v1734 = vmul.f32 %v1729, %v1733
        %v1735 = vmul.f32 %v1704, %v1734
        %vm1736 = vcmp.eq.f32.partialorder %v1704, inf
        %v1737 = vsel %vm1736, %v1704, %v1735
        %vm1738 = vcmp.eq.f32.partialorder %v1704, 0.0
        %v1739 = vand.u32 %v1704, 2147483648
        %v1740 = vsel %vm1738, %v1739, %v1737
        %v1741 = vadd.f32 %v1716, 1e-06
        %v1742 = vadd.f32 %v1728, 1e-06
        %v1743 = vadd.f32 %v1740, 1e-06
        %v1744 = vrcp.pop %v1741
        %v1745 = vrcp.pop %v1742
        %v1746 = vrcp.pop %v1743
        %v1748 = vperm.slane %v824, 0
        %v1750 = vmul.f32 %v1748, %v1687
        %v1751 = vmul.f32 %v1748, %v1688
        %v1752 = vmul.f32 %v1748, %v1689
        %v1753 = vmul.f32 %v1750, %v1744
        %v1754 = vmul.f32 %v1751, %v1745
        %v1755 = vmul.f32 %v1752, %v1746
        %v1757 = vperm.slane %v825, 0
        %v1759 = vadd.f32 %v1753, %v1757
        %v1760 = vadd.f32 %v1754, %v1757
        %v1761 = vadd.f32 %v1755, %v1757
        %v1763 = vperm.slane %v840, 0
        %v1766 = vsel %vm792, %v1759, 0
        %v1769 = vsel %vm792, %v1760, 0
        %v1772 = vsel %vm792, %v1761, 0
        %1774 = vmatpush.msra.mxu0 0.0
        %1775 = vmatpush.msra.mxu0 0.0
        %1776 = vmatpush.msra.mxu0 0.0
        %1777 = vmatpush.msra.mxu0 0.0
        %1778 = vmatpush.msra.mxu0 0.0
        %1779 = vmatpush.msra.mxu0 0.0
        %1780 = vmatpush.msra.mxu0 0.0
        %1781 = vmatpush.msra.mxu0 0.0
        %1782 = vmatpush.msra.mxu0 0.0
        %1783 = vmatpush.msra.mxu0 0.0
        %1784 = vmatpush.msra.mxu0 0.0
        %1785 = vmatpush.msra.mxu0 0.0
        %1786 = vmatpush.msra.mxu0 %v839
        %1787 = vmatpush.msra.mxu0 %v838
        %1788 = vmatpush.msra.mxu0 %v837
        %1789 = vmatpush.msra.mxu0 %v836
        %1790 = vmatmul.f32.gmra.mxu0 %v1766
        %v1791 = vpop.f32.mrf.mxu0
        %v1792 = vadd.f32 %v1763, %v1791
        %1793 = vmatmul.f32.gmra.mxu0 %v1769
        %v1794 = vpop.f32.mrf.mxu0
        %v1795 = vadd.f32 %v1763, %v1794
        %1796 = vmatmul.f32.gmra.mxu0 %v1772
        %v1797 = vpop.f32.mrf.mxu0
        %v1798 = vadd.f32 %v1763, %v1797
        %1799 = vdwg.mxu0
        %v1800 = vmul.f32 %v1792, 0.5
        %v1801 = vmul.f32 %v1795, 0.5
        %v1802 = vmul.f32 %v1798, 0.5
        %v1803 = vmul.f32 %v1792, 0.70710677
        %v1804 = vmul.f32 %v1795, 0.70710677
        %v1805 = vmul.f32 %v1798, 0.70710677
        %v1806 = vand.u32 2147483647, %v1803
        %v1807 = vand.u32 2147483647, %v1804
        %v1808 = vand.u32 2147483647, %v1805
        %v1809 = vmul.f32 %v1806, 0.3275911
        %v1810 = vmul.f32 %v1807, 0.3275911
        %v1811 = vmul.f32 %v1808, 0.3275911
        %v1812 = vadd.f32 %v1809, 1.0
        %v1813 = vadd.f32 %v1810, 1.0
        %v1814 = vadd.f32 %v1811, 1.0
        %v1815 = vrcp.pop %v1812
        %v1816 = vmul.f32 %v1812, %v1815
        %v1817 = vsub.f32 1.0, %v1816
        %v1818 = vmul.f32 %v1815, %v1817
        %v1819 = vadd.f32 %v1815, %v1818
        %vm1820 = vweird.f32 %v1812
        %vm1821 = vweird.f32 %v1815
        %vm1822 = vmor %vm1820, %vm1821
        %v1823 = vsel %vm1822, %v1815, %v1819
        %v1824 = vand.u32 2147483647, %v1812
        %vm1825 = vcmp.eq.f32.partialorder %v1824, 8.507059e+37
        %v1826 = vand.u32 %v1812, 2147483648
        %v1827 = vor.u32 1.1754944e-38, %v1826
        %v1828 = vsel %vm1825, %v1827, %v1823
        %v1829 = vmul.f32 1.0, %v1828
        %v1830 = vrcp.pop %v1813
        %v1831 = vmul.f32 %v1813, %v1830
        %v1832 = vsub.f32 1.0, %v1831
        %v1833 = vmul.f32 %v1830, %v1832
        %v1834 = vadd.f32 %v1830, %v1833
        %vm1835 = vweird.f32 %v1813
        %vm1836 = vweird.f32 %v1830
        %vm1837 = vmor %vm1835, %vm1836
        %v1838 = vsel %vm1837, %v1830, %v1834
        %v1839 = vand.u32 2147483647, %v1813
        %vm1840 = vcmp.eq.f32.partialorder %v1839, 8.507059e+37
        %v1841 = vand.u32 %v1813, 2147483648
        %v1842 = vor.u32 1.1754944e-38, %v1841
        %v1843 = vsel %vm1840, %v1842, %v1838
        %v1844 = vmul.f32 1.0, %v1843
        %v1845 = vrcp.pop %v1814
        %v1846 = vmul.f32 %v1814, %v1845
        %v1847 = vsub.f32 1.0, %v1846
        %v1848 = vmul.f32 %v1845, %v1847
        %v1849 = vadd.f32 %v1845, %v1848
        %vm1850 = vweird.f32 %v1814
        %vm1851 = vweird.f32 %v1845
        %vm1852 = vmor %vm1850, %vm1851
        %v1853 = vsel %vm1852, %v1845, %v1849
        %v1854 = vand.u32 2147483647, %v1814
        %vm1855 = vcmp.eq.f32.partialorder %v1854, 8.507059e+37
        %v1856 = vand.u32 %v1814, 2147483648
        %v1857 = vor.u32 1.1754944e-38, %v1856
        %v1858 = vsel %vm1855, %v1857, %v1853
        %v1859 = vmul.f32 1.0, %v1858
        %v1860 = vmul.f32 %v1829, 1.0614054
        %v1861 = vmul.f32 %v1844, 1.0614054
        %v1862 = vmul.f32 %v1859, 1.0614054
        %v1863 = vadd.f32 %v1860, -1.4531521
        %v1864 = vadd.f32 %v1861, -1.4531521
        %v1865 = vadd.f32 %v1862, -1.4531521
        %v1866 = vmul.f32 %v1863, %v1829
        %v1867 = vmul.f32 %v1864, %v1844
        %v1868 = vmul.f32 %v1865, %v1859
        %v1869 = vadd.f32 %v1866, 1.4214138
        %v1870 = vadd.f32 %v1867, 1.4214138
        %v1871 = vadd.f32 %v1868, 1.4214138
        %v1872 = vmul.f32 %v1869, %v1829
        %v1873 = vmul.f32 %v1870, %v1844
        %v1874 = vmul.f32 %v1871, %v1859
        %v1875 = vadd.f32 %v1872, -0.28449672
        %v1876 = vadd.f32 %v1873, -0.28449672
        %v1877 = vadd.f32 %v1874, -0.28449672
        %v1878 = vmul.f32 %v1875, %v1829
        %v1879 = vmul.f32 %v1876, %v1844
        %v1880 = vmul.f32 %v1877, %v1859
        %v1881 = vadd.f32 %v1878, 0.2548296
        %v1882 = vadd.f32 %v1879, 0.2548296
        %v1883 = vadd.f32 %v1880, 0.2548296
        %v1884 = vmul.f32 %v1881, %v1829
        %v1885 = vmul.f32 %v1882, %v1844
        %v1886 = vmul.f32 %v1883, %v1859
        %v1887 = vsub.f32 0.0, %v1806
        %v1888 = vsub.f32 0.0, %v1807
        %v1889 = vsub.f32 0.0, %v1808
        %v1890 = vmul.f32 %v1887, %v1806
        %v1891 = vmul.f32 %v1888, %v1807
        %v1892 = vmul.f32 %v1889, %v1808
        %v1893 = vmul.f32 %v1890, 1.442695
        %v1894 = vpow.pop %v1893
        %v1895 = vmul.f32 %v1891, 1.442695
        %v1896 = vpow.pop %v1895
        %v1897 = vmul.f32 %v1892, 1.442695
        %v1898 = vpow.pop %v1897
        %v1899 = vmul.f32 %v1884, %v1894
        %v1900 = vmul.f32 %v1885, %v1896
        %v1901 = vmul.f32 %v1886, %v1898
        %v1902 = vsub.f32 1.0, %v1899
        %v1903 = vsub.f32 1.0, %v1900
        %v1904 = vsub.f32 1.0, %v1901
        %vm1905 = vcmp.ge.f32.partialorder %v1803, 0.0
        %vm1906 = vcmp.ge.f32.partialorder %v1804, 0.0
        %vm1907 = vcmp.ge.f32.partialorder %v1805, 0.0
        %v1908 = vsub.f32 0.0, %v1902
        %v1909 = vsub.f32 0.0, %v1903
        %v1910 = vsub.f32 0.0, %v1904
        %v1911 = vsel %vm1905, %v1902, %v1908
        %v1912 = vsel %vm1906, %v1903, %v1909
        %v1913 = vsel %vm1907, %v1904, %v1910
        %v1914 = vadd.f32 %v1911, 1.0
        %v1915 = vadd.f32 %v1912, 1.0
        %v1916 = vadd.f32 %v1913, 1.0
        %v1917 = vmul.f32 %v1800, %v1914
        %v1918 = vmul.f32 %v1801, %v1915
        %v1919 = vmul.f32 %v1802, %v1916
        %1920 = vmatpush.msra.mxu0 %v856
        %1921 = vmatpush.msra.mxu0 %v855
        %1922 = vmatpush.msra.mxu0 %v854
        %1923 = vmatpush.msra.mxu0 %v853
        %1924 = vmatpush.msra.mxu0 %v852
        %1925 = vmatpush.msra.mxu0 %v851
        %1926 = vmatpush.msra.mxu0 %v850
        %1927 = vmatpush.msra.mxu0 %v849
        %1928 = vmatpush.msra.mxu0 %v848
        %1929 = vmatpush.msra.mxu0 %v847
        %1930 = vmatpush.msra.mxu0 %v846
        %1931 = vmatpush.msra.mxu0 %v845
        %1932 = vmatpush.msra.mxu0 %v844
        %1933 = vmatpush.msra.mxu0 %v843
        %1934 = vmatpush.msra.mxu0 %v842
        %1935 = vmatpush.msra.mxu0 %v841
        %1936 = vmatmul.f32.gmra.mxu0 %v1917
        %v1937 = vpop.f32.mrf.mxu0
        %v1938 = vadd.f32 0.0, %v1937
        %1939 = vmatmul.f32.gmra.mxu0 %v1918
        %v1940 = vpop.f32.mrf.mxu0
        %v1941 = vadd.f32 0.0, %v1940
        %1942 = vmatmul.f32.gmra.mxu0 %v1919
        %v1943 = vpop.f32.mrf.mxu0
        %v1944 = vadd.f32 0.0, %v1943
        %1945 = vdwg.mxu0
        %v1946 = vadd.f32 %v1672, %v1938
        %v1947 = vadd.f32 %v1673, %v1941
        %v1948 = vadd.f32 %v1674, %v1944
        %v1950 = vperm.slane %v857, 0
        %v1952 = vadd.f32 %v1946, %v1950
        %v1953 = vadd.f32 %v1947, %v1950
        %v1954 = vadd.f32 %v1948, %v1950
        %v1955 = vsel %vm792, %v1952, 0.0
        %1956 = vadd.xlane.f32.xlu0 %v1955
        %v1957 = vpop.xlane.xlu0 %1956
        %v1958 = vsel %vm792, %v1953, 0.0
        %1959 = vadd.xlane.f32.xlu0 %v1958
        %v1960 = vpop.xlane.xlu0 %1959
        %v1961 = vsel %vm792, %v1954, 0.0
        %1962 = vadd.xlane.f32.xlu0 %v1961
        %v1963 = vpop.xlane.xlu0 %1962
        %v1964 = vmul.f32 %v1957, %v873
        %v1965 = vmul.f32 %v1960, %v873
        %v1966 = vmul.f32 %v1963, %v873
        %v1967 = vsub.f32 %v1952, %v1964
        %v1968 = vsub.f32 %v1953, %v1965
        %v1969 = vsub.f32 %v1954, %v1966
        %v1970 = vmul.f32 %v1967, %v1967
        %v1971 = vmul.f32 %v1968, %v1968
        %v1972 = vmul.f32 %v1969, %v1969
        %v1973 = vsel %vm792, %v1970, 0.0
        %1974 = vadd.xlane.f32.xlu0 %v1973
        %v1975 = vpop.xlane.xlu0 %1974
        %v1976 = vsel %vm792, %v1971, 0.0
        %1977 = vadd.xlane.f32.xlu0 %v1976
        %v1978 = vpop.xlane.xlu0 %1977
        %v1979 = vsel %vm792, %v1972, 0.0
        %1980 = vadd.xlane.f32.xlu0 %v1979
        %v1981 = vpop.xlane.xlu0 %1980
        %v1982 = vmul.f32 %v1975, 0.032258064
        %v1983 = vmul.f32 %v1978, 0.032258064
        %v1984 = vmul.f32 %v1981, 0.032258064
        %v1985 = vrsqrt.pop %v1982
        %v1986 = vmul.f32 %v1985, %v1982
        %v1987 = vmul.f32 %v1986, %v1985
        %v1988 = vmul.f32 0.5, %v1987
        %v1989 = vsub.f32 1.5, %v1988
        %v1990 = vmul.f32 %v1985, %v1989
        %v1991 = vmul.f32 %v1982, %v1990
        %vm1992 = vcmp.eq.f32.partialorder %v1982, inf
        %v1993 = vsel %vm1992, %v1982, %v1991
        %vm1994 = vcmp.eq.f32.partialorder %v1982, 0.0
        %v1995 = vand.u32 %v1982, 2147483648
        %v1996 = vsel %vm1994, %v1995, %v1993
        %v1997 = vrsqrt.pop %v1983
        %v1998 = vmul.f32 %v1997, %v1983
        %v1999 = vmul.f32 %v1998, %v1997
        %v2000 = vmul.f32 0.5, %v1999
        %v2001 = vsub.f32 1.5, %v2000
        %v2002 = vmul.f32 %v1997, %v2001
        %v2003 = vmul.f32 %v1983, %v2002
        %vm2004 = vcmp.eq.f32.partialorder %v1983, inf
        %v2005 = vsel %vm2004, %v1983, %v2003
        %vm2006 = vcmp.eq.f32.partialorder %v1983, 0.0
        %v2007 = vand.u32 %v1983, 2147483648
        %v2008 = vsel %vm2006, %v2007, %v2005
        %v2009 = vrsqrt.pop %v1984
        %v2010 = vmul.f32 %v2009, %v1984
        %v2011 = vmul.f32 %v2010, %v2009
        %v2012 = vmul.f32 0.5, %v2011
        %v2013 = vsub.f32 1.5, %v2012
        %v2014 = vmul.f32 %v2009, %v2013
        %v2015 = vmul.f32 %v1984, %v2014
        %vm2016 = vcmp.eq.f32.partialorder %v1984, inf
        %v2017 = vsel %vm2016, %v1984, %v2015
        %vm2018 = vcmp.eq.f32.partialorder %v1984, 0.0
        %v2019 = vand.u32 %v1984, 2147483648
        %v2020 = vsel %vm2018, %v2019, %v2017
        %v2021 = vadd.f32 %v1996, 1e-06
        %v2022 = vadd.f32 %v2008, 1e-06
        %v2023 = vadd.f32 %v2020, 1e-06
        %v2024 = vrcp.pop %v2021
        %v2025 = vrcp.pop %v2022
        %v2026 = vrcp.pop %v2023
        %v2027 = vmul.f32 %v938, %v1967
        %v2028 = vmul.f32 %v938, %v1968
        %v2029 = vmul.f32 %v938, %v1969
        %v2030 = vmul.f32 %v2027, %v2024
        %v2031 = vmul.f32 %v2028, %v2025
        %v2032 = vmul.f32 %v2029, %v2026
        %v2033 = vadd.f32 %v2030, %v947
        %v2034 = vadd.f32 %v2031, %v947
        %v2035 = vadd.f32 %v2032, %v947
        %v2037 = vsel %vm792, %v2033, 0
        %v2040 = vsel %vm792, %v2034, 0
        %v2043 = vsel %vm792, %v2035, 0
        %2045 = vmatpush.msra.mxu0 0.0
        %2046 = vmatpush.msra.mxu0 0.0
        %2047 = vmatpush.msra.mxu0 0.0
        %2048 = vmatpush.msra.mxu0 0.0
        %2049 = vmatpush.msra.mxu0 0.0
        %2050 = vmatpush.msra.mxu0 0.0
        %2051 = vmatpush.msra.mxu0 0.0
        %2052 = vmatpush.msra.mxu0 0.0
        %2053 = vmatpush.msra.mxu0 0.0
        %2054 = vmatpush.msra.mxu0 0.0
        %2055 = vmatpush.msra.mxu0 0.0
        %2056 = vmatpush.msra.mxu0 0.0
        %2057 = vmatpush.msra.mxu0 %v829
        %2058 = vmatpush.msra.mxu0 %v828
        %2059 = vmatpush.msra.mxu0 %v827
        %2060 = vmatpush.msra.mxu0 %v826
        %2061 = vmatmul.f32.gmra.mxu0 %v2037
        %v2062 = vpop.f32.mrf.mxu0
        %v2063 = vadd.f32 %v953, %v2062
        %2064 = vmatmul.f32.gmra.mxu0 %v2040
        %v2065 = vpop.f32.mrf.mxu0
        %v2066 = vadd.f32 %v953, %v2065
        %2067 = vmatmul.f32.gmra.mxu0 %v2043
        %v2068 = vpop.f32.mrf.mxu0
        %v2069 = vadd.f32 %v953, %v2068
        %2070 = vdwg.mxu0
        %2074 = vrot.lane.b32.xlu0 %v2063, 96
        %v2075 = vpop.permute.xlu0 %2074
        %2076 = vrot.lane.b32.xlu0 %v2066, 96
        %v2077 = vpop.permute.xlu0 %2076
        %2078 = vrot.lane.b32.xlu0 %v2069, 96
        %v2079 = vpop.permute.xlu0 %2078
        %v2080 = vsel %vm759, %v2063, 0
        %v2082 = vsel %vm759, %v2066, 0
        %v2084 = vsel %vm759, %v2069, 0
        %v2086 = vsel %vm759, %v2075, 0
        %v2088 = vsel %vm759, %v2077, 0
        %v2090 = vsel %vm759, %v2079, 0
        %2092 = vmatpush.xpose.msra.mxu0 0.0
        %2093 = vmatpush.xpose.msra.mxu0 0.0
        %2094 = vmatpush.xpose.msra.mxu0 0.0
        %2095 = vmatpush.xpose.msra.mxu0 0.0
        %2096 = vmatpush.xpose.msra.mxu0 0.0
        %2097 = vmatpush.xpose.msra.mxu0 0.0
        %2098 = vmatpush.xpose.msra.mxu0 0.0
        %2099 = vmatpush.xpose.msra.mxu0 0.0
        %2100 = vmatpush.xpose.msra.mxu0 0.0
        %2101 = vmatpush.xpose.msra.mxu0 0.0
        %2102 = vmatpush.xpose.msra.mxu0 0.0
        %2103 = vmatpush.xpose.msra.mxu0 0.0
        %2104 = vmatpush.xpose.msra.mxu0 0.0
        %2105 = vmatpush.xpose.msra.mxu0 %v2090
        %2106 = vmatpush.xpose.msra.mxu0 %v2088
        %2107 = vmatpush.xpose.msra.mxu0 %v2086
        %2108 = vmatmul.f32.gmra.mxu0 %v2080
        %v2109 = vpop.f32.mrf.mxu0
        %v2110 = vadd.f32 0.0, %v2109
        %2111 = vmatmul.f32.gmra.mxu0 %v2082
        %v2112 = vpop.f32.mrf.mxu0
        %v2113 = vadd.f32 0.0, %v2112
        %2114 = vmatmul.f32.gmra.mxu0 %v2084
        %v2115 = vpop.f32.mrf.mxu0
        %v2116 = vadd.f32 0.0, %v2115
        %2117 = vdwg.mxu0
        %v2118 = vmul.f32 %v2110, 0.35355338
        %v2119 = vmul.f32 %v2113, 0.35355338
        %v2120 = vmul.f32 %v2116, 0.35355338
        %v2121 = vadd.f32 %v2118, %v821
        %v2122 = vadd.f32 %v2119, %v821
        %v2123 = vadd.f32 %v2120, %v821
        %v2124 = vsel %vm1043, %v2121, -inf
        %2125 = vmax.xlane.f32.xlu0 %v2124
        %v2126 = vpop.xlane.xlu0 %2125
        %v2127 = vsel %vm1043, %v2122, -inf
        %2128 = vmax.xlane.f32.xlu0 %v2127
        %v2129 = vpop.xlane.xlu0 %2128
        %v2130 = vsel %vm1043, %v2123, -inf
        %2131 = vmax.xlane.f32.xlu0 %v2130
        %v2132 = vpop.xlane.xlu0 %2131
        %v2133 = vsub.f32 %v2121, %v2126
        %v2134 = vsub.f32 %v2122, %v2129
        %v2135 = vsub.f32 %v2123, %v2132
        %v2136 = vmul.f32 %v2133, 1.442695
        %v2137 = vpow.pop %v2136
        %v2138 = vmul.f32 %v2134, 1.442695
        %v2139 = vpow.pop %v2138
        %v2140 = vmul.f32 %v2135, 1.442695
        %v2141 = vpow.pop %v2140
        %v2142 = vsel %vm1043, %v2137, 0.0
        %2143 = vadd.xlane.f32.xlu0 %v2142
        %v2144 = vpop.xlane.xlu0 %2143
        %v2145 = vsel %vm1043, %v2139, 0.0
        %2146 = vadd.xlane.f32.xlu0 %v2145
        %v2147 = vpop.xlane.xlu0 %2146
        %v2148 = vsel %vm1043, %v2141, 0.0
        %2149 = vadd.xlane.f32.xlu0 %v2148
        %v2150 = vpop.xlane.xlu0 %2149
        %v2151 = vrcp.pop %v2144
        %v2152 = vrcp.pop %v2147
        %v2153 = vrcp.pop %v2150
        %v2154 = vmul.f32 %v2137, %v2151
        %v2155 = vmul.f32 %v2139, %v2152
        %v2156 = vmul.f32 %v2141, %v2153
        %2157 = vrot.lane.b32.xlu0 %v2063, 64
        %v2158 = vpop.permute.xlu0 %2157
        %2159 = vrot.lane.b32.xlu0 %v2066, 64
        %v2160 = vpop.permute.xlu0 %2159
        %2161 = vrot.lane.b32.xlu0 %v2069, 64
        %v2162 = vpop.permute.xlu0 %2161
        %v2167 = vsel %vm1043, %v2154, 0
        %v2170 = vsel %vm1043, %v2155, 0
        %v2173 = vsel %vm1043, %v2156, 0
        %2175 = vmatpush.msra.mxu0 0.0
        %2176 = vmatpush.msra.mxu0 0.0
        %2177 = vmatpush.msra.mxu0 0.0
        %2178 = vmatpush.msra.mxu0 0.0
        %2179 = vmatpush.msra.mxu0 0.0
        %2180 = vmatpush.msra.mxu0 0.0
        %2181 = vmatpush.msra.mxu0 0.0
        %2182 = vmatpush.msra.mxu0 0.0
        %2183 = vmatpush.msra.mxu0 0.0
        %2184 = vmatpush.msra.mxu0 0.0
        %2185 = vmatpush.msra.mxu0 0.0
        %2186 = vmatpush.msra.mxu0 0.0
        %2187 = vmatpush.msra.mxu0 0.0
        %2188 = vmatpush.msra.mxu0 %v2162
        %2189 = vmatpush.msra.mxu0 %v2160
        %2190 = vmatpush.msra.mxu0 %v2158
        %2191 = vmatmul.f32.gmra.mxu0 %v2167
        %v2192 = vpop.f32.mrf.mxu0
        %v2193 = vadd.f32 0.0, %v2192
        %2194 = vmatmul.f32.gmra.mxu0 %v2170
        %v2195 = vpop.f32.mrf.mxu0
        %v2196 = vadd.f32 0.0, %v2195
        %2197 = vmatmul.f32.gmra.mxu0 %v2173
        %v2198 = vpop.f32.mrf.mxu0
        %v2199 = vadd.f32 0.0, %v2198
        %2200 = vdwg.mxu0
        %2201 = vrot.lane.b32.xlu0 %v2063, 120
        %v2202 = vpop.permute.xlu0 %2201
        %2203 = vrot.lane.b32.xlu0 %v2066, 120
        %v2204 = vpop.permute.xlu0 %2203
        %2205 = vrot.lane.b32.xlu0 %v2069, 120
        %v2206 = vpop.permute.xlu0 %2205
        %2207 = vrot.lane.b32.xlu0 %v2063, 88
        %v2208 = vpop.permute.xlu0 %2207
        %2209 = vrot.lane.b32.xlu0 %v2066, 88
        %v2210 = vpop.permute.xlu0 %2209
        %2211 = vrot.lane.b32.xlu0 %v2069, 88
        %v2212 = vpop.permute.xlu0 %2211
        %v2213 = vsel %vm759, %v2202, 0
        %v2215 = vsel %vm759, %v2204, 0
        %v2217 = vsel %vm759, %v2206, 0
        %v2219 = vsel %vm759, %v2208, 0
        %v2221 = vsel %vm759, %v2210, 0
        %v2223 = vsel %vm759, %v2212, 0
        %2225 = vmatpush.xpose.msra.mxu0 0.0
        %2226 = vmatpush.xpose.msra.mxu0 0.0
        %2227 = vmatpush.xpose.msra.mxu0 0.0
        %2228 = vmatpush.xpose.msra.mxu0 0.0
        %2229 = vmatpush.xpose.msra.mxu0 0.0
        %2230 = vmatpush.xpose.msra.mxu0 0.0
        %2231 = vmatpush.xpose.msra.mxu0 0.0
        %2232 = vmatpush.xpose.msra.mxu0 0.0
        %2233 = vmatpush.xpose.msra.mxu0 0.0
        %2234 = vmatpush.xpose.msra.mxu0 0.0
        %2235 = vmatpush.xpose.msra.mxu0 0.0
        %2236 = vmatpush.xpose.msra.mxu0 0.0
        %2237 = vmatpush.xpose.msra.mxu0 0.0
        %2238 = vmatpush.xpose.msra.mxu0 %v2223
        %2239 = vmatpush.xpose.msra.mxu0 %v2221
        %2240 = vmatpush.xpose.msra.mxu0 %v2219
        %2241 = vmatmul.f32.gmra.mxu0 %v2213
        %v2242 = vpop.f32.mrf.mxu0
        %v2243 = vadd.f32 0.0, %v2242
        %2244 = vmatmul.f32.gmra.mxu0 %v2215
        %v2245 = vpop.f32.mrf.mxu0
        %v2246 = vadd.f32 0.0, %v2245
        %2247 = vmatmul.f32.gmra.mxu0 %v2217
        %v2248 = vpop.f32.mrf.mxu0
        %v2249 = vadd.f32 0.0, %v2248
        %2250 = vdwg.mxu0
        %v2251 = vmul.f32 %v2243, 0.35355338
        %v2252 = vmul.f32 %v2246, 0.35355338
        %v2253 = vmul.f32 %v2249, 0.35355338
        %v2254 = vadd.f32 %v2251, %v821
        %v2255 = vadd.f32 %v2252, %v821
        %v2256 = vadd.f32 %v2253, %v821
        %v2257 = vsel %vm1043, %v2254, -inf
        %2258 = vmax.xlane.f32.xlu0 %v2257
        %v2259 = vpop.xlane.xlu0 %2258
        %v2260 = vsel %vm1043, %v2255, -inf
        %2261 = vmax.xlane.f32.xlu0 %v2260
        %v2262 = vpop.xlane.xlu0 %2261
        %v2263 = vsel %vm1043, %v2256, -inf
        %2264 = vmax.xlane.f32.xlu0 %v2263
        %v2265 = vpop.xlane.xlu0 %2264
        %v2266 = vsub.f32 %v2254, %v2259
        %v2267 = vsub.f32 %v2255, %v2262
        %v2268 = vsub.f32 %v2256, %v2265
        %v2269 = vmul.f32 %v2266, 1.442695
        %v2270 = vpow.pop %v2269
        %v2271 = vmul.f32 %v2267, 1.442695
        %v2272 = vpow.pop %v2271
        %v2273 = vmul.f32 %v2268, 1.442695
        %v2274 = vpow.pop %v2273
        %v2275 = vsel %vm1043, %v2270, 0.0
        %2276 = vadd.xlane.f32.xlu0 %v2275
        %v2277 = vpop.xlane.xlu0 %2276
        %v2278 = vsel %vm1043, %v2272, 0.0
        %2279 = vadd.xlane.f32.xlu0 %v2278
        %v2280 = vpop.xlane.xlu0 %2279
        %v2281 = vsel %vm1043, %v2274, 0.0
        %2282 = vadd.xlane.f32.xlu0 %v2281
        %v2283 = vpop.xlane.xlu0 %2282
        %v2284 = vrcp.pop %v2277
        %v2285 = vrcp.pop %v2280
        %v2286 = vrcp.pop %v2283
        %v2287 = vmul.f32 %v2270, %v2284
        %v2288 = vmul.f32 %v2272, %v2285
        %v2289 = vmul.f32 %v2274, %v2286
        %2290 = vrot.lane.b32.xlu0 %v2063, 56
        %v2291 = vpop.permute.xlu0 %2290
        %2292 = vrot.lane.b32.xlu0 %v2066, 56
        %v2293 = vpop.permute.xlu0 %2292
        %2294 = vrot.lane.b32.xlu0 %v2069, 56
        %v2295 = vpop.permute.xlu0 %2294
        %v2300 = vsel %vm1043, %v2287, 0
        %v2303 = vsel %vm1043, %v2288, 0
        %v2306 = vsel %vm1043, %v2289, 0
        %2308 = vmatpush.msra.mxu0 0.0
        %2309 = vmatpush.msra.mxu0 0.0
        %2310 = vmatpush.msra.mxu0 0.0
        %2311 = vmatpush.msra.mxu0 0.0
        %2312 = vmatpush.msra.mxu0 0.0
        %2313 = vmatpush.msra.mxu0 0.0
        %2314 = vmatpush.msra.mxu0 0.0
        %2315 = vmatpush.msra.mxu0 0.0
        %2316 = vmatpush.msra.mxu0 0.0
        %2317 = vmatpush.msra.mxu0 0.0
        %2318 = vmatpush.msra.mxu0 0.0
        %2319 = vmatpush.msra.mxu0 0.0
        %2320 = vmatpush.msra.mxu0 0.0
        %2321 = vmatpush.msra.mxu0 %v2295
        %2322 = vmatpush.msra.mxu0 %v2293
        %2323 = vmatpush.msra.mxu0 %v2291
        %2324 = vmatmul.f32.gmra.mxu0 %v2300
        %v2325 = vpop.f32.mrf.mxu0
        %v2326 = vadd.f32 0.0, %v2325
        %2327 = vmatmul.f32.gmra.mxu0 %v2303
        %v2328 = vpop.f32.mrf.mxu0
        %v2329 = vadd.f32 0.0, %v2328
        %2330 = vmatmul.f32.gmra.mxu0 %v2306
        %v2331 = vpop.f32.mrf.mxu0
        %v2332 = vadd.f32 0.0, %v2331
        %2333 = vdwg.mxu0
        %v2335 = vsel %vm759, %v2326, 0
        %v2338 = vsel %vm759, %v2329, 0
        %v2341 = vsel %vm759, %v2332, 0
        %2343 = vmatpush.msra.mxu0 0.0
        %2344 = vmatpush.msra.mxu0 0.0
        %2345 = vmatpush.msra.mxu0 0.0
        %2346 = vmatpush.msra.mxu0 0.0
        %2347 = vmatpush.msra.mxu0 0.0
        %2348 = vmatpush.msra.mxu0 0.0
        %2349 = vmatpush.msra.mxu0 0.0
        %2350 = vmatpush.msra.mxu0 0.0
        %2351 = vmatpush.msra.mxu0 0.0
        %2352 = vmatpush.msra.mxu0 0.0
        %2353 = vmatpush.msra.mxu0 0.0
        %2354 = vmatpush.msra.mxu0 0.0
        %2355 = vmatpush.msra.mxu0 0.0
        %2356 = vmatpush.msra.mxu0 0.0
        %2357 = vmatpush.msra.mxu0 0.0
        %2358 = vmatpush.msra.mxu0 %v832
        %2359 = vmatmul.f32.gmra.mxu0 %v2335
        %v2360 = vpop.f32.mrf.mxu0
        %v2361 = vadd.f32 0.0, %v2360
        %2362 = vmatmul.f32.gmra.mxu0 %v2338
        %v2363 = vpop.f32.mrf.mxu0
        %v2364 = vadd.f32 0.0, %v2363
        %2365 = vmatmul.f32.gmra.mxu0 %v2341
        %v2366 = vpop.f32.mrf.mxu0
        %v2367 = vadd.f32 0.0, %v2366
        %2368 = vdwg.mxu0
        %v2370 = vsel %vm759, %v2193, 0
        %v2373 = vsel %vm759, %v2196, 0
        %v2376 = vsel %vm759, %v2199, 0
        %2378 = vmatpush.msra.mxu0 0.0
        %2379 = vmatpush.msra.mxu0 0.0
        %2380 = vmatpush.msra.mxu0 0.0
        %2381 = vmatpush.msra.mxu0 0.0
        %2382 = vmatpush.msra.mxu0 0.0
        %2383 = vmatpush.msra.mxu0 0.0
        %2384 = vmatpush.msra.mxu0 0.0
        %2385 = vmatpush.msra.mxu0 0.0
        %2386 = vmatpush.msra.mxu0 0.0
        %2387 = vmatpush.msra.mxu0 0.0
        %2388 = vmatpush.msra.mxu0 0.0
        %2389 = vmatpush.msra.mxu0 0.0
        %2390 = vmatpush.msra.mxu0 0.0
        %2391 = vmatpush.msra.mxu0 0.0
        %2392 = vmatpush.msra.mxu0 0.0
        %2393 = vmatpush.msra.mxu0 %v831
        %2394 = vmatmul.f32.gmra.mxu0 %v2370
        %v2395 = vpop.f32.mrf.mxu0
        %v2396 = vadd.f32 %v2361, %v2395
        %2397 = vmatmul.f32.gmra.mxu0 %v2373
        %v2398 = vpop.f32.mrf.mxu0
        %v2399 = vadd.f32 %v2364, %v2398
        %2400 = vmatmul.f32.gmra.mxu0 %v2376
        %v2401 = vpop.f32.mrf.mxu0
        %v2402 = vadd.f32 %v2367, %v2401
        %2403 = vdwg.mxu0
        %2404 = vrot.lane.b32.xlu0 %v2063, 112
        %v2405 = vpop.permute.xlu0 %2404
        %2406 = vrot.lane.b32.xlu0 %v2066, 112
        %v2407 = vpop.permute.xlu0 %2406
        %2408 = vrot.lane.b32.xlu0 %v2069, 112
        %v2409 = vpop.permute.xlu0 %2408
        %2410 = vrot.lane.b32.xlu0 %v2063, 80
        %v2411 = vpop.permute.xlu0 %2410
        %2412 = vrot.lane.b32.xlu0 %v2066, 80
        %v2413 = vpop.permute.xlu0 %2412
        %2414 = vrot.lane.b32.xlu0 %v2069, 80
        %v2415 = vpop.permute.xlu0 %2414
        %v2416 = vsel %vm759, %v2405, 0
        %v2418 = vsel %vm759, %v2407, 0
        %v2420 = vsel %vm759, %v2409, 0
        %v2422 = vsel %vm759, %v2411, 0
        %v2424 = vsel %vm759, %v2413, 0
        %v2426 = vsel %vm759, %v2415, 0
        %2428 = vmatpush.xpose.msra.mxu0 0.0
        %2429 = vmatpush.xpose.msra.mxu0 0.0
        %2430 = vmatpush.xpose.msra.mxu0 0.0
        %2431 = vmatpush.xpose.msra.mxu0 0.0
        %2432 = vmatpush.xpose.msra.mxu0 0.0
        %2433 = vmatpush.xpose.msra.mxu0 0.0
        %2434 = vmatpush.xpose.msra.mxu0 0.0
        %2435 = vmatpush.xpose.msra.mxu0 0.0
        %2436 = vmatpush.xpose.msra.mxu0 0.0
        %2437 = vmatpush.xpose.msra.mxu0 0.0
        %2438 = vmatpush.xpose.msra.mxu0 0.0
        %2439 = vmatpush.xpose.msra.mxu0 0.0
        %2440 = vmatpush.xpose.msra.mxu0 0.0
        %2441 = vmatpush.xpose.msra.mxu0 %v2426
        %2442 = vmatpush.xpose.msra.mxu0 %v2424
        %2443 = vmatpush.xpose.msra.mxu0 %v2422
        %2444 = vmatmul.f32.gmra.mxu0 %v2416
        %v2445 = vpop.f32.mrf.mxu0
        %v2446 = vadd.f32 0.0, %v2445
        %2447 = vmatmul.f32.gmra.mxu0 %v2418
        %v2448 = vpop.f32.mrf.mxu0
        %v2449 = vadd.f32 0.0, %v2448
        %2450 = vmatmul.f32.gmra.mxu0 %v2420
        %v2451 = vpop.f32.mrf.mxu0
        %v2452 = vadd.f32 0.0, %v2451
        %2453 = vdwg.mxu0
        %v2454 = vmul.f32 %v2446, 0.35355338
        %v2455 = vmul.f32 %v2449, 0.35355338
        %v2456 = vmul.f32 %v2452, 0.35355338
        %v2457 = vadd.f32 %v2454, %v821
        %v2458 = vadd.f32 %v2455, %v821
        %v2459 = vadd.f32 %v2456, %v821
        %v2460 = vsel %vm1043, %v2457, -inf
        %2461 = vmax.xlane.f32.xlu0 %v2460
        %v2462 = vpop.xlane.xlu0 %2461
        %v2463 = vsel %vm1043, %v2458, -inf
        %2464 = vmax.xlane.f32.xlu0 %v2463
        %v2465 = vpop.xlane.xlu0 %2464
        %v2466 = vsel %vm1043, %v2459, -inf
        %2467 = vmax.xlane.f32.xlu0 %v2466
        %v2468 = vpop.xlane.xlu0 %2467
        %v2469 = vsub.f32 %v2457, %v2462
        %v2470 = vsub.f32 %v2458, %v2465
        %v2471 = vsub.f32 %v2459, %v2468
        %v2472 = vmul.f32 %v2469, 1.442695
        %v2473 = vpow.pop %v2472
        %v2474 = vmul.f32 %v2470, 1.442695
        %v2475 = vpow.pop %v2474
        %v2476 = vmul.f32 %v2471, 1.442695
        %v2477 = vpow.pop %v2476
        %v2478 = vsel %vm1043, %v2473, 0.0
        %2479 = vadd.xlane.f32.xlu0 %v2478
        %v2480 = vpop.xlane.xlu0 %2479
        %v2481 = vsel %vm1043, %v2475, 0.0
        %2482 = vadd.xlane.f32.xlu0 %v2481
        %v2483 = vpop.xlane.xlu0 %2482
        %v2484 = vsel %vm1043, %v2477, 0.0
        %2485 = vadd.xlane.f32.xlu0 %v2484
        %v2486 = vpop.xlane.xlu0 %2485
        %v2487 = vrcp.pop %v2480
        %v2488 = vrcp.pop %v2483
        %v2489 = vrcp.pop %v2486
        %v2490 = vmul.f32 %v2473, %v2487
        %v2491 = vmul.f32 %v2475, %v2488
        %v2492 = vmul.f32 %v2477, %v2489
        %2493 = vrot.lane.b32.xlu0 %v2063, 48
        %v2494 = vpop.permute.xlu0 %2493
        %2495 = vrot.lane.b32.xlu0 %v2066, 48
        %v2496 = vpop.permute.xlu0 %2495
        %2497 = vrot.lane.b32.xlu0 %v2069, 48
        %v2498 = vpop.permute.xlu0 %2497
        %v2503 = vsel %vm1043, %v2490, 0
        %v2506 = vsel %vm1043, %v2491, 0
        %v2509 = vsel %vm1043, %v2492, 0
        %2511 = vmatpush.msra.mxu0 0.0
        %2512 = vmatpush.msra.mxu0 0.0
        %2513 = vmatpush.msra.mxu0 0.0
        %2514 = vmatpush.msra.mxu0 0.0
        %2515 = vmatpush.msra.mxu0 0.0
        %2516 = vmatpush.msra.mxu0 0.0
        %2517 = vmatpush.msra.mxu0 0.0
        %2518 = vmatpush.msra.mxu0 0.0
        %2519 = vmatpush.msra.mxu0 0.0
        %2520 = vmatpush.msra.mxu0 0.0
        %2521 = vmatpush.msra.mxu0 0.0
        %2522 = vmatpush.msra.mxu0 0.0
        %2523 = vmatpush.msra.mxu0 0.0
        %2524 = vmatpush.msra.mxu0 %v2498
        %2525 = vmatpush.msra.mxu0 %v2496
        %2526 = vmatpush.msra.mxu0 %v2494
        %2527 = vmatmul.f32.gmra.mxu0 %v2503
        %v2528 = vpop.f32.mrf.mxu0
        %v2529 = vadd.f32 0.0, %v2528
        %2530 = vmatmul.f32.gmra.mxu0 %v2506
        %v2531 = vpop.f32.mrf.mxu0
        %v2532 = vadd.f32 0.0, %v2531
        %2533 = vmatmul.f32.gmra.mxu0 %v2509
        %v2534 = vpop.f32.mrf.mxu0
        %v2535 = vadd.f32 0.0, %v2534
        %2536 = vdwg.mxu0
        %v2538 = vsel %vm759, %v2529, 0
        %v2541 = vsel %vm759, %v2532, 0
        %v2544 = vsel %vm759, %v2535, 0
        %2546 = vmatpush.msra.mxu0 0.0
        %2547 = vmatpush.msra.mxu0 0.0
        %2548 = vmatpush.msra.mxu0 0.0
        %2549 = vmatpush.msra.mxu0 0.0
        %2550 = vmatpush.msra.mxu0 0.0
        %2551 = vmatpush.msra.mxu0 0.0
        %2552 = vmatpush.msra.mxu0 0.0
        %2553 = vmatpush.msra.mxu0 0.0
        %2554 = vmatpush.msra.mxu0 0.0
        %2555 = vmatpush.msra.mxu0 0.0
        %2556 = vmatpush.msra.mxu0 0.0
        %2557 = vmatpush.msra.mxu0 0.0
        %2558 = vmatpush.msra.mxu0 0.0
        %2559 = vmatpush.msra.mxu0 0.0
        %2560 = vmatpush.msra.mxu0 0.0
        %2561 = vmatpush.msra.mxu0 %v833
        %2562 = vmatmul.f32.gmra.mxu0 %v2538
        %v2563 = vpop.f32.mrf.mxu0
        %v2564 = vadd.f32 0.0, %v2563
        %2565 = vmatmul.f32.gmra.mxu0 %v2541
        %v2566 = vpop.f32.mrf.mxu0
        %v2567 = vadd.f32 0.0, %v2566
        %2568 = vmatmul.f32.gmra.mxu0 %v2544
        %v2569 = vpop.f32.mrf.mxu0
        %v2570 = vadd.f32 0.0, %v2569
        %2571 = vdwg.mxu0
        %v2572 = vadd.f32 %v2396, %v2564
        %v2573 = vadd.f32 %v2399, %v2567
        %v2574 = vadd.f32 %v2402, %v2570
        %2575 = vrot.lane.b32.xlu0 %v2063, 104
        %v2576 = vpop.permute.xlu0 %2575
        %2577 = vrot.lane.b32.xlu0 %v2066, 104
        %v2578 = vpop.permute.xlu0 %2577
        %2579 = vrot.lane.b32.xlu0 %v2069, 104
        %v2580 = vpop.permute.xlu0 %2579
        %2581 = vrot.lane.b32.xlu0 %v2063, 72
        %v2582 = vpop.permute.xlu0 %2581
        %2583 = vrot.lane.b32.xlu0 %v2066, 72
        %v2584 = vpop.permute.xlu0 %2583
        %2585 = vrot.lane.b32.xlu0 %v2069, 72
        %v2586 = vpop.permute.xlu0 %2585
        %v2587 = vsel %vm759, %v2576, 0
        %v2589 = vsel %vm759, %v2578, 0
        %v2591 = vsel %vm759, %v2580, 0
        %v2593 = vsel %vm759, %v2582, 0
        %v2595 = vsel %vm759, %v2584, 0
        %v2597 = vsel %vm759, %v2586, 0
        %2599 = vmatpush.xpose.msra.mxu0 0.0
        %2600 = vmatpush.xpose.msra.mxu0 0.0
        %2601 = vmatpush.xpose.msra.mxu0 0.0
        %2602 = vmatpush.xpose.msra.mxu0 0.0
        %2603 = vmatpush.xpose.msra.mxu0 0.0
        %2604 = vmatpush.xpose.msra.mxu0 0.0
        %2605 = vmatpush.xpose.msra.mxu0 0.0
        %2606 = vmatpush.xpose.msra.mxu0 0.0
        %2607 = vmatpush.xpose.msra.mxu0 0.0
        %2608 = vmatpush.xpose.msra.mxu0 0.0
        %2609 = vmatpush.xpose.msra.mxu0 0.0
        %2610 = vmatpush.xpose.msra.mxu0 0.0
        %2611 = vmatpush.xpose.msra.mxu0 0.0
        %2612 = vmatpush.xpose.msra.mxu0 %v2597
        %2613 = vmatpush.xpose.msra.mxu0 %v2595
        %2614 = vmatpush.xpose.msra.mxu0 %v2593
        %2615 = vmatmul.f32.gmra.mxu0 %v2587
        %v2616 = vpop.f32.mrf.mxu0
        %v2617 = vadd.f32 0.0, %v2616
        %2618 = vmatmul.f32.gmra.mxu0 %v2589
        %v2619 = vpop.f32.mrf.mxu0
        %v2620 = vadd.f32 0.0, %v2619
        %2621 = vmatmul.f32.gmra.mxu0 %v2591
        %v2622 = vpop.f32.mrf.mxu0
        %v2623 = vadd.f32 0.0, %v2622
        %2624 = vdwg.mxu0
        %v2625 = vmul.f32 %v2617, 0.35355338
        %v2626 = vmul.f32 %v2620, 0.35355338
        %v2627 = vmul.f32 %v2623, 0.35355338
        %v2628 = vadd.f32 %v2625, %v821
        %v2629 = vadd.f32 %v2626, %v821
        %v2630 = vadd.f32 %v2627, %v821
        %v2631 = vsel %vm1043, %v2628, -inf
        %2632 = vmax.xlane.f32.xlu0 %v2631
        %v2633 = vpop.xlane.xlu0 %2632
        %v2634 = vsel %vm1043, %v2629, -inf
        %2635 = vmax.xlane.f32.xlu0 %v2634
        %v2636 = vpop.xlane.xlu0 %2635
        %v2637 = vsel %vm1043, %v2630, -inf
        %2638 = vmax.xlane.f32.xlu0 %v2637
        %v2639 = vpop.xlane.xlu0 %2638
        %v2640 = vsub.f32 %v2628, %v2633
        %v2641 = vsub.f32 %v2629, %v2636
        %v2642 = vsub.f32 %v2630, %v2639
        %v2643 = vmul.f32 %v2640, 1.442695
        %v2644 = vpow.pop %v2643
        %v2645 = vmul.f32 %v2641, 1.442695
        %v2646 = vpow.pop %v2645
        %v2647 = vmul.f32 %v2642, 1.442695
        %v2648 = vpow.pop %v2647
        %v2649 = vsel %vm1043, %v2644, 0.0
        %2650 = vadd.xlane.f32.xlu0 %v2649
        %v2651 = vpop.xlane.xlu0 %2650
        %v2652 = vsel %vm1043, %v2646, 0.0
        %2653 = vadd.xlane.f32.xlu0 %v2652
        %v2654 = vpop.xlane.xlu0 %2653
        %v2655 = vsel %vm1043, %v2648, 0.0
        %2656 = vadd.xlane.f32.xlu0 %v2655
        %v2657 = vpop.xlane.xlu0 %2656
        %v2658 = vrcp.pop %v2651
        %v2659 = vrcp.pop %v2654
        %v2660 = vrcp.pop %v2657
        %v2661 = vmul.f32 %v2644, %v2658
        %v2662 = vmul.f32 %v2646, %v2659
        %v2663 = vmul.f32 %v2648, %v2660
        %2664 = vrot.lane.b32.xlu0 %v2063, 40
        %v2665 = vpop.permute.xlu0 %2664
        %2666 = vrot.lane.b32.xlu0 %v2066, 40
        %v2667 = vpop.permute.xlu0 %2666
        %2668 = vrot.lane.b32.xlu0 %v2069, 40
        %v2669 = vpop.permute.xlu0 %2668
        %v2674 = vsel %vm1043, %v2661, 0
        %v2677 = vsel %vm1043, %v2662, 0
        %v2680 = vsel %vm1043, %v2663, 0
        %2682 = vmatpush.msra.mxu0 0.0
        %2683 = vmatpush.msra.mxu0 0.0
        %2684 = vmatpush.msra.mxu0 0.0
        %2685 = vmatpush.msra.mxu0 0.0
        %2686 = vmatpush.msra.mxu0 0.0
        %2687 = vmatpush.msra.mxu0 0.0
        %2688 = vmatpush.msra.mxu0 0.0
        %2689 = vmatpush.msra.mxu0 0.0
        %2690 = vmatpush.msra.mxu0 0.0
        %2691 = vmatpush.msra.mxu0 0.0
        %2692 = vmatpush.msra.mxu0 0.0
        %2693 = vmatpush.msra.mxu0 0.0
        %2694 = vmatpush.msra.mxu0 0.0
        %2695 = vmatpush.msra.mxu0 %v2669
        %2696 = vmatpush.msra.mxu0 %v2667
        %2697 = vmatpush.msra.mxu0 %v2665
        %2698 = vmatmul.f32.gmra.mxu0 %v2674
        %v2699 = vpop.f32.mrf.mxu0
        %v2700 = vadd.f32 0.0, %v2699
        %2701 = vmatmul.f32.gmra.mxu0 %v2677
        %v2702 = vpop.f32.mrf.mxu0
        %v2703 = vadd.f32 0.0, %v2702
        %2704 = vmatmul.f32.gmra.mxu0 %v2680
        %v2705 = vpop.f32.mrf.mxu0
        %v2706 = vadd.f32 0.0, %v2705
        %2707 = vdwg.mxu0
        %v2709 = vsel %vm759, %v2700, 0
        %v2712 = vsel %vm759, %v2703, 0
        %v2715 = vsel %vm759, %v2706, 0
        %2717 = vmatpush.msra.mxu0 0.0
        %2718 = vmatpush.msra.mxu0 0.0
        %2719 = vmatpush.msra.mxu0 0.0
        %2720 = vmatpush.msra.mxu0 0.0
        %2721 = vmatpush.msra.mxu0 0.0
        %2722 = vmatpush.msra.mxu0 0.0
        %2723 = vmatpush.msra.mxu0 0.0
        %2724 = vmatpush.msra.mxu0 0.0
        %2725 = vmatpush.msra.mxu0 0.0
        %2726 = vmatpush.msra.mxu0 0.0
        %2727 = vmatpush.msra.mxu0 0.0
        %2728 = vmatpush.msra.mxu0 0.0
        %2729 = vmatpush.msra.mxu0 0.0
        %2730 = vmatpush.msra.mxu0 0.0
        %2731 = vmatpush.msra.mxu0 0.0
        %2732 = vmatpush.msra.mxu0 %v834
        %2733 = vmatmul.f32.gmra.mxu0 %v2709
        %v2734 = vpop.f32.mrf.mxu0
        %v2735 = vadd.f32 0.0, %v2734
        %2736 = vmatmul.f32.gmra.mxu0 %v2712
        %v2737 = vpop.f32.mrf.mxu0
        %v2738 = vadd.f32 0.0, %v2737
        %2739 = vmatmul.f32.gmra.mxu0 %v2715
        %v2740 = vpop.f32.mrf.mxu0
        %v2741 = vadd.f32 0.0, %v2740
        %2742 = vdwg.mxu0
        %v2743 = vadd.f32 %v2572, %v2735
        %v2744 = vadd.f32 %v2573, %v2738
        %v2745 = vadd.f32 %v2574, %v2741
        %v2746 = vadd.f32 %v1952, %v2743
        %v2747 = vadd.f32 %v1953, %v2744
        %v2748 = vadd.f32 %v1954, %v2745
        %v2749 = vadd.f32 %v2746, %v1670
        %v2750 = vadd.f32 %v2747, %v1670
        %v2751 = vadd.f32 %v2748, %v1670
        %v2752 = vsel %vm792, %v2749, 0.0
        %2753 = vadd.xlane.f32.xlu0 %v2752
        %v2754 = vpop.xlane.xlu0 %2753
        %v2755 = vsel %vm792, %v2750, 0.0
        %2756 = vadd.xlane.f32.xlu0 %v2755
        %v2757 = vpop.xlane.xlu0 %2756
        %v2758 = vsel %vm792, %v2751, 0.0
        %2759 = vadd.xlane.f32.xlu0 %v2758
        %v2760 = vpop.xlane.xlu0 %2759
        %v2761 = vmul.f32 %v2754, %v873
        %v2762 = vmul.f32 %v2757, %v873
        %v2763 = vmul.f32 %v2760, %v873
        %v2764 = vsub.f32 %v2749, %v2761
        %v2765 = vsub.f32 %v2750, %v2762
        %v2766 = vsub.f32 %v2751, %v2763
        %v2767 = vmul.f32 %v2764, %v2764
        %v2768 = vmul.f32 %v2765, %v2765
        %v2769 = vmul.f32 %v2766, %v2766
        %v2770 = vsel %vm792, %v2767, 0.0
        %2771 = vadd.xlane.f32.xlu0 %v2770
        %v2772 = vpop.xlane.xlu0 %2771
        %v2773 = vsel %vm792, %v2768, 0.0
        %2774 = vadd.xlane.f32.xlu0 %v2773
        %v2775 = vpop.xlane.xlu0 %2774
        %v2776 = vsel %vm792, %v2769, 0.0
        %2777 = vadd.xlane.f32.xlu0 %v2776
        %v2778 = vpop.xlane.xlu0 %2777
        %v2779 = vmul.f32 %v2772, 0.032258064
        %v2780 = vmul.f32 %v2775, 0.032258064
        %v2781 = vmul.f32 %v2778, 0.032258064
        %v2782 = vrsqrt.pop %v2779
        %v2783 = vmul.f32 %v2782, %v2779
        %v2784 = vmul.f32 %v2783, %v2782
        %v2785 = vmul.f32 0.5, %v2784
        %v2786 = vsub.f32 1.5, %v2785
        %v2787 = vmul.f32 %v2782, %v2786
        %v2788 = vmul.f32 %v2779, %v2787
        %vm2789 = vcmp.eq.f32.partialorder %v2779, inf
        %v2790 = vsel %vm2789, %v2779, %v2788
        %vm2791 = vcmp.eq.f32.partialorder %v2779, 0.0
        %v2792 = vand.u32 %v2779, 2147483648
        %v2793 = vsel %vm2791, %v2792, %v2790
        %v2794 = vrsqrt.pop %v2780
        %v2795 = vmul.f32 %v2794, %v2780
        %v2796 = vmul.f32 %v2795, %v2794
        %v2797 = vmul.f32 0.5, %v2796
        %v2798 = vsub.f32 1.5, %v2797
        %v2799 = vmul.f32 %v2794, %v2798
        %v2800 = vmul.f32 %v2780, %v2799
        %vm2801 = vcmp.eq.f32.partialorder %v2780, inf
        %v2802 = vsel %vm2801, %v2780, %v2800
        %vm2803 = vcmp.eq.f32.partialorder %v2780, 0.0
        %v2804 = vand.u32 %v2780, 2147483648
        %v2805 = vsel %vm2803, %v2804, %v2802
        %v2806 = vrsqrt.pop %v2781
        %v2807 = vmul.f32 %v2806, %v2781
        %v2808 = vmul.f32 %v2807, %v2806
        %v2809 = vmul.f32 0.5, %v2808
        %v2810 = vsub.f32 1.5, %v2809
        %v2811 = vmul.f32 %v2806, %v2810
        %v2812 = vmul.f32 %v2781, %v2811
        %vm2813 = vcmp.eq.f32.partialorder %v2781, inf
        %v2814 = vsel %vm2813, %v2781, %v2812
        %vm2815 = vcmp.eq.f32.partialorder %v2781, 0.0
        %v2816 = vand.u32 %v2781, 2147483648
        %v2817 = vsel %vm2815, %v2816, %v2814
        %v2818 = vadd.f32 %v2793, 1e-06
        %v2819 = vadd.f32 %v2805, 1e-06
        %v2820 = vadd.f32 %v2817, 1e-06
        %v2821 = vrcp.pop %v2818
        %v2822 = vrcp.pop %v2819
        %v2823 = vrcp.pop %v2820
        %v2824 = vmul.f32 %v1748, %v2764
        %v2825 = vmul.f32 %v1748, %v2765
        %v2826 = vmul.f32 %v1748, %v2766
        %v2827 = vmul.f32 %v2824, %v2821
        %v2828 = vmul.f32 %v2825, %v2822
        %v2829 = vmul.f32 %v2826, %v2823
        %v2830 = vadd.f32 %v2827, %v1757
        %v2831 = vadd.f32 %v2828, %v1757
        %v2832 = vadd.f32 %v2829, %v1757
        %v2834 = vsel %vm792, %v2830, 0
        %v2837 = vsel %vm792, %v2831, 0
        %v2840 = vsel %vm792, %v2832, 0
        %2842 = vmatpush.msra.mxu0 0.0
        %2843 = vmatpush.msra.mxu0 0.0
        %2844 = vmatpush.msra.mxu0 0.0
        %2845 = vmatpush.msra.mxu0 0.0
        %2846 = vmatpush.msra.mxu0 0.0
        %2847 = vmatpush.msra.mxu0 0.0
        %2848 = vmatpush.msra.mxu0 0.0
        %2849 = vmatpush.msra.mxu0 0.0
        %2850 = vmatpush.msra.mxu0 0.0
        %2851 = vmatpush.msra.mxu0 0.0
        %2852 = vmatpush.msra.mxu0 0.0
        %2853 = vmatpush.msra.mxu0 0.0
        %2854 = vmatpush.msra.mxu0 %v839
        %2855 = vmatpush.msra.mxu0 %v838
        %2856 = vmatpush.msra.mxu0 %v837
        %2857 = vmatpush.msra.mxu0 %v836
        %2858 = vmatmul.f32.gmra.mxu0 %v2834
        %v2859 = vpop.f32.mrf.mxu0
        %v2860 = vadd.f32 %v1763, %v2859
        %2861 = vmatmul.f32.gmra.mxu0 %v2837
        %v2862 = vpop.f32.mrf.mxu0
        %v2863 = vadd.f32 %v1763, %v2862
        %2864 = vmatmul.f32.gmra.mxu0 %v2840
        %v2865 = vpop.f32.mrf.mxu0
        %v2866 = vadd.f32 %v1763, %v2865
        %2867 = vdwg.mxu0
        %v2868 = vmul.f32 %v2860, 0.5
        %v2869 = vmul.f32 %v2863, 0.5
        %v2870 = vmul.f32 %v2866, 0.5
        %v2871 = vmul.f32 %v2860, 0.70710677
        %v2872 = vmul.f32 %v2863, 0.70710677
        %v2873 = vmul.f32 %v2866, 0.70710677
        %v2874 = vand.u32 2147483647, %v2871
        %v2875 = vand.u32 2147483647, %v2872
        %v2876 = vand.u32 2147483647, %v2873
        %v2877 = vmul.f32 %v2874, 0.3275911
        %v2878 = vmul.f32 %v2875, 0.3275911
        %v2879 = vmul.f32 %v2876, 0.3275911
        %v2880 = vadd.f32 %v2877, 1.0
        %v2881 = vadd.f32 %v2878, 1.0
        %v2882 = vadd.f32 %v2879, 1.0
        %v2883 = vrcp.pop %v2880
        %v2884 = vmul.f32 %v2880, %v2883
        %v2885 = vsub.f32 1.0, %v2884
        %v2886 = vmul.f32 %v2883, %v2885
        %v2887 = vadd.f32 %v2883, %v2886
        %vm2888 = vweird.f32 %v2880
        %vm2889 = vweird.f32 %v2883
        %vm2890 = vmor %vm2888, %vm2889
        %v2891 = vsel %vm2890, %v2883, %v2887
        %v2892 = vand.u32 2147483647, %v2880
        %vm2893 = vcmp.eq.f32.partialorder %v2892, 8.507059e+37
        %v2894 = vand.u32 %v2880, 2147483648
        %v2895 = vor.u32 1.1754944e-38, %v2894
        %v2896 = vsel %vm2893, %v2895, %v2891
        %v2897 = vmul.f32 1.0, %v2896
        %v2898 = vrcp.pop %v2881
        %v2899 = vmul.f32 %v2881, %v2898
        %v2900 = vsub.f32 1.0, %v2899
        %v2901 = vmul.f32 %v2898, %v2900
        %v2902 = vadd.f32 %v2898, %v2901
        %vm2903 = vweird.f32 %v2881
        %vm2904 = vweird.f32 %v2898
        %vm2905 = vmor %vm2903, %vm2904
        %v2906 = vsel %vm2905, %v2898, %v2902
        %v2907 = vand.u32 2147483647, %v2881
        %vm2908 = vcmp.eq.f32.partialorder %v2907, 8.507059e+37
        %v2909 = vand.u32 %v2881, 2147483648
        %v2910 = vor.u32 1.1754944e-38, %v2909
        %v2911 = vsel %vm2908, %v2910, %v2906
        %v2912 = vmul.f32 1.0, %v2911
        %v2913 = vrcp.pop %v2882
        %v2914 = vmul.f32 %v2882, %v2913
        %v2915 = vsub.f32 1.0, %v2914
        %v2916 = vmul.f32 %v2913, %v2915
        %v2917 = vadd.f32 %v2913, %v2916
        %vm2918 = vweird.f32 %v2882
        %vm2919 = vweird.f32 %v2913
        %vm2920 = vmor %vm2918, %vm2919
        %v2921 = vsel %vm2920, %v2913, %v2917
        %v2922 = vand.u32 2147483647, %v2882
        %vm2923 = vcmp.eq.f32.partialorder %v2922, 8.507059e+37
        %v2924 = vand.u32 %v2882, 2147483648
        %v2925 = vor.u32 1.1754944e-38, %v2924
        %v2926 = vsel %vm2923, %v2925, %v2921
        %v2927 = vmul.f32 1.0, %v2926
        %v2928 = vmul.f32 %v2897, 1.0614054
        %v2929 = vmul.f32 %v2912, 1.0614054
        %v2930 = vmul.f32 %v2927, 1.0614054
        %v2931 = vadd.f32 %v2928, -1.4531521
        %v2932 = vadd.f32 %v2929, -1.4531521
        %v2933 = vadd.f32 %v2930, -1.4531521
        %v2934 = vmul.f32 %v2931, %v2897
        %v2935 = vmul.f32 %v2932, %v2912
        %v2936 = vmul.f32 %v2933, %v2927
        %v2937 = vadd.f32 %v2934, 1.4214138
        %v2938 = vadd.f32 %v2935, 1.4214138
        %v2939 = vadd.f32 %v2936, 1.4214138
        %v2940 = vmul.f32 %v2937, %v2897
        %v2941 = vmul.f32 %v2938, %v2912
        %v2942 = vmul.f32 %v2939, %v2927
        %v2943 = vadd.f32 %v2940, -0.28449672
        %v2944 = vadd.f32 %v2941, -0.28449672
        %v2945 = vadd.f32 %v2942, -0.28449672
        %v2946 = vmul.f32 %v2943, %v2897
        %v2947 = vmul.f32 %v2944, %v2912
        %v2948 = vmul.f32 %v2945, %v2927
        %v2949 = vadd.f32 %v2946, 0.2548296
        %v2950 = vadd.f32 %v2947, 0.2548296
        %v2951 = vadd.f32 %v2948, 0.2548296
        %v2952 = vmul.f32 %v2949, %v2897
        %v2953 = vmul.f32 %v2950, %v2912
        %v2954 = vmul.f32 %v2951, %v2927
        %v2955 = vsub.f32 0.0, %v2874
        %v2956 = vsub.f32 0.0, %v2875
        %v2957 = vsub.f32 0.0, %v2876
        %v2958 = vmul.f32 %v2955, %v2874
        %v2959 = vmul.f32 %v2956, %v2875
        %v2960 = vmul.f32 %v2957, %v2876
        %v2961 = vmul.f32 %v2958, 1.442695
        %v2962 = vpow.pop %v2961
        %v2963 = vmul.f32 %v2959, 1.442695
        %v2964 = vpow.pop %v2963
        %v2965 = vmul.f32 %v2960, 1.442695
        %v2966 = vpow.pop %v2965
        %v2967 = vmul.f32 %v2952, %v2962
        %v2968 = vmul.f32 %v2953, %v2964
        %v2969 = vmul.f32 %v2954, %v2966
        %v2970 = vsub.f32 1.0, %v2967
        %v2971 = vsub.f32 1.0, %v2968
        %v2972 = vsub.f32 1.0, %v2969
        %vm2973 = vcmp.ge.f32.partialorder %v2871, 0.0
        %vm2974 = vcmp.ge.f32.partialorder %v2872, 0.0
        %vm2975 = vcmp.ge.f32.partialorder %v2873, 0.0
        %v2976 = vsub.f32 0.0, %v2970
        %v2977 = vsub.f32 0.0, %v2971
        %v2978 = vsub.f32 0.0, %v2972
        %v2979 = vsel %vm2973, %v2970, %v2976
        %v2980 = vsel %vm2974, %v2971, %v2977
        %v2981 = vsel %vm2975, %v2972, %v2978
        %v2982 = vadd.f32 %v2979, 1.0
        %v2983 = vadd.f32 %v2980, 1.0
        %v2984 = vadd.f32 %v2981, 1.0
        %v2985 = vmul.f32 %v2868, %v2982
        %v2986 = vmul.f32 %v2869, %v2983
        %v2987 = vmul.f32 %v2870, %v2984
        %2988 = vmatpush.msra.mxu0 %v856
        %2989 = vmatpush.msra.mxu0 %v855
        %2990 = vmatpush.msra.mxu0 %v854
        %2991 = vmatpush.msra.mxu0 %v853
        %2992 = vmatpush.msra.mxu0 %v852
        %2993 = vmatpush.msra.mxu0 %v851
        %2994 = vmatpush.msra.mxu0 %v850
        %2995 = vmatpush.msra.mxu0 %v849
        %2996 = vmatpush.msra.mxu0 %v848
        %2997 = vmatpush.msra.mxu0 %v847
        %2998 = vmatpush.msra.mxu0 %v846
        %2999 = vmatpush.msra.mxu0 %v845
        %3000 = vmatpush.msra.mxu0 %v844
        %3001 = vmatpush.msra.mxu0 %v843
        %3002 = vmatpush.msra.mxu0 %v842
        %3003 = vmatpush.msra.mxu0 %v841
        %3004 = vmatmul.f32.gmra.mxu0 %v2985
        %v3005 = vpop.f32.mrf.mxu0
        %v3006 = vadd.f32 0.0, %v3005
        %3007 = vmatmul.f32.gmra.mxu0 %v2986
        %v3008 = vpop.f32.mrf.mxu0
        %3009 = vmatmul.f32.gmra.mxu0 %v2987
        %v3010 = vpop.f32.mrf.mxu0
        %3011 = vdwg.mxu0
        %v3012 = vadd.f32 %v2749, %v3006
        %v3013 = vadd.f32 %v3012, %v1950
        %v3014 = vld [vmem:[%s19] sm:$0x1]
        %v3015 = vld [vmem:[%s20] sm:$0x1]
        %v3016 = vsel %vm798, %v3013, 0.0
        %3017 = vadd.xlane.f32.xlu0 %v3016
        %v3018 = vpop.xlane.xlu0 %3017
        %v3019 = vmul.f32 %v3018, %v873
        %v3020 = vsub.f32 %v3013, %v3019
        %v3021 = vmul.f32 %v3020, %v3020
        %v3022 = vsel %vm798, %v3021, 0.0
        %3023 = vadd.xlane.f32.xlu0 %v3022
        %v3024 = vpop.xlane.xlu0 %3023
        %v3025 = vmul.f32 %v3024, %v873
        %v3026 = vadd.f32 %v3025, 1e-05
        %v3027 = vrsqrt.pop %v3026
        %v3028 = vmul.f32 %v3027, %v3026
        %v3029 = vmul.f32 %v3028, %v3027
        %v3030 = vmul.f32 0.5, %v3029
        %v3031 = vsub.f32 1.5, %v3030
        %v3032 = vmul.f32 %v3027, %v3031
        %vm3033 = vweird.f32 %v3026
        %vm3034 = vweird.f32 %v3027
        %vm3035 = vmor %vm3033, %vm3034
        %v3036 = vsel %vm3035, %v3027, %v3032
        %v3037 = vmul.f32 %v3020, %v3036
        %v3038 = vmul.f32 %v3037, %v3014
        %v3039 = vadd.f32 %v3038, %v3015
        %v3040 = vld [vmem:[%s21] sm:$0xff]
        %v3041 = vld [vmem:[%s21 + $0x8] sm:$0xff]
        %v3042 = vld [vmem:[%s21 + $0x10] sm:$0xff]
        %v3043 = vld [vmem:[%s21 + $0x18] sm:$0xff]
        %v3044 = vld [vmem:[%s22] sm:$0x1]
        %v3046 = vsel %vm792, %v3039, 0
        %3048 = vmatpush.msra.mxu0 0.0
        %3049 = vmatpush.msra.mxu0 0.0
        %3050 = vmatpush.msra.mxu0 0.0
        %3051 = vmatpush.msra.mxu0 0.0
        %3052 = vmatpush.msra.mxu0 0.0
        %3053 = vmatpush.msra.mxu0 0.0
        %3054 = vmatpush.msra.mxu0 0.0
        %3055 = vmatpush.msra.mxu0 0.0
        %3056 = vmatpush.msra.mxu0 0.0
        %3057 = vmatpush.msra.mxu0 0.0
        %3058 = vmatpush.msra.mxu0 0.0
        %3059 = vmatpush.msra.mxu0 0.0
        %3060 = vmatpush.msra.mxu0 %v3043
        %3061 = vmatpush.msra.mxu0 %v3042
        %3062 = vmatpush.msra.mxu0 %v3041
        %3063 = vmatpush.msra.mxu0 %v3040
        %3064 = vmatmul.f32.gmra.mxu0 %v3046
        %v3065 = vpop.f32.mrf.mxu0
        %v3066 = vadd.f32 %v3044, %v3065
        %3067 = vdwg.mxu0
        %vm3068 = vcmask 8192
        %3069 = vst.msk [vmem:[%s703] sm:$0x1] %vm3068, %v3066
        %s3070 = sand.u32 %s533, 1
        %s3071 = scalar_lea.sflag [#allocation4], %s3070
        %s3072 = sand.u32 %s533, 1
        %s3073 = scalar_lea.vmem [#allocation3], %s3072
        // Predicated region
        $region113: #{vit_hybrid_forward.1} parent=111 // pred_check
          %p3074 = pneg %p543
        $region114: #{vit_hybrid_forward.1} parent=111 // pred_check_branch
          %3076 = sbr.rel (%p3074) target = $region116
        $region115: #{vit_hybrid_forward.1} parent=111 // pred_region
          %3078 = vsyncadd %s3071, 0
          %s3079 = scalar_lea.hbm %s23, %s37
          %s3081 = sshll.u32 %s3073, 4
          %s3082 = int_to_ptr.vmem [resolvable:$true] %s3081
          %s3083 = sshll.u32 %s3079, 4
          %s3084 = int_to_ptr.hbm [resolvable:$true] %s3083
          %3086 = dma.vmem_to_hbm [thread:$0]  %s3082, 16, %s3084, %s3071
        $region116: #{vit_hybrid_forward.1} parent=111 // pred_fallthru
          _
      $region112: #{vit_hybrid_forward.1} parent=5 // pred_fallthru
        _
      %p3087 = scmp.le.s32.totalorder 2, %s32
      // Predicated region
      $region117: #{vit_hybrid_forward.1} parent=5 // pred_check
        %p3088 = pneg %p3087
      $region118: #{vit_hybrid_forward.1} parent=5 // pred_check_branch
        %3090 = sbr.rel (%p3088) target = $region120
      $region119: #{vit_hybrid_forward.1} parent=5 // pred_region
        %s3091 = ssub.s32 %s32, 2
        // Predicated region
        $region121: #{vit_hybrid_forward.1} parent=119 // pred_check
          %p3092 = pneg %p549
        $region122: #{vit_hybrid_forward.1} parent=119 // pred_check_branch
          %3094 = sbr.rel (%p3092) target = $region124
        $region123: #{vit_hybrid_forward.1} parent=119 // pred_region
          %s3095 = sand.u32 %s534, 1
          %s3096 = scalar_lea.sflag [#allocation4], %s3095
          %s3097 = sand.u32 %s534, 1
          %s3098 = scalar_lea.vmem [#allocation3], %s3097
          %3100 = dma.done %s3096, 16
        $region124: #{vit_hybrid_forward.1} parent=119 // pred_fallthru
          _
      $region120: #{vit_hybrid_forward.1} parent=5 // pred_fallthru
        _
    $region6: #{vit_hybrid_forward.1} parent=1 // loop_footer
      %s36 = sadd.s32 1, %s32
    $region7: #{vit_hybrid_forward.1} parent=1 // loop_footer_branch
      %31 = sbr.rel target = $region3
    $region8: #{vit_hybrid_forward.1} parent=1 // loop_exit
      _
    %3101 = vsyncpa [#allocation4], 1
    %s3102 = scalar_lea.sflag [#allocation4], 1
    %3103 = vsyncpa %s3102, 1

</llo_original>
